<compile_context>
chip_gen: v6e
topology: v6e:2x2x1
jax: 0.10.0
libtpu: 0.0.40
codegen_flags: <defaults>
</compile_context>

<pallas_src>
import functools

import jax
import jax.numpy as jnp
import numpy as np
from jax import lax
from jax.experimental import pallas as pl
from jax.experimental.pallas import tpu as pltpu


# ---------------------------------------------------------------------------
# helpers
# ---------------------------------------------------------------------------

def _tile(dim, target, align):
    """Largest tile <= target that divides `dim` and is a multiple of `align`;
    falls back to the full dim (always a legal BlockSpec block)."""
    if dim <= target:
        return dim
    t = (target // align) * align
    while t >= align:
        if dim % t == 0:
            return t
        t -= align
    return dim


def _rope_perm(heads, dim_head, dim_rotary):
    """Per-head output-channel permutation turning the interleaved
    rotate-every-two rotary into rotate-half (contiguous lane slices)."""
    half = np.concatenate([np.arange(0, dim_rotary, 2),
                           np.arange(1, dim_rotary, 2),
                           np.arange(dim_rotary, dim_head)])
    return np.concatenate([h * dim_head + half for h in range(heads)])


def _permute_rotary_pos_emb(pos_emb, dim_rotary):
    """sin/cos (B, N, dr) -> rotate-half channel order (tiny gather)."""
    sin, cos = pos_emb
    p = np.concatenate([np.arange(0, dim_rotary, 2),
                        np.arange(1, dim_rotary, 2)])
    return sin[..., p], cos[..., p]


# ---------------------------------------------------------------------------
# Fused LayerNorm + projection kernel (single K tile, no accumulator)
# ---------------------------------------------------------------------------

def _make_proj_kernel(has_ln, has_bias, eps):
    def kernel(*refs):
        i = 0
        x_ref = refs[i]; i += 1
        if has_ln:
            g_ref, b_ref = refs[i], refs[i + 1]; i += 2
        w_ref = refs[i]; i += 1
        if has_bias:
            bias_ref = refs[i]; i += 1
        o_ref = refs[i]

        x = x_ref[...]
        if has_ln:
            x = x.astype(jnp.float32)
            mean = jnp.mean(x, axis=-1, keepdims=True)
            xc = x - mean
            var = jnp.mean(xc * xc, axis=-1, keepdims=True)
            x = xc * lax.rsqrt(var + eps) * g_ref[...] + b_ref[...]
        # bf16 MXU operands, fp32 accumulation
        y = jnp.dot(x.astype(jnp.bfloat16), w_ref[...].astype(jnp.bfloat16),
                    preferred_element_type=jnp.float32)
        if has_bias:
            y = y + bias_ref[...].astype(jnp.float32)
        o_ref[...] = y.astype(o_ref.dtype)
    return kernel


# ------------------- fallback path (K too large for one tile) --------------

def _layernorm_kernel(x_ref, g_ref, b_ref, o_ref, *, eps):
    x = x_ref[...].astype(jnp.float32)
    mean = jnp.mean(x, axis=-1, keepdims=True)
    xc = x - mean
    var = jnp.mean(xc * xc, axis=-1, keepdims=True)
    o_ref[...] = (xc * lax.rsqrt(var + eps) * g_ref[...] + b_ref[...]
                  ).astype(o_ref.dtype)


def pallas_layernorm(x2d, gamma, beta, *, eps=1e-5):
    M, D = x2d.shape
    tm = _tile(M, 256, 8)
    return pl.pallas_call(
        functools.partial(_layernorm_kernel, eps=eps),
        grid=(M // tm,),
        in_specs=[pl.BlockSpec((tm, D), lambda i: (i, 0)),
                  pl.BlockSpec((1, D), lambda i: (0, 0)),
                  pl.BlockSpec((1, D), lambda i: (0, 0))],
        out_specs=pl.BlockSpec((tm, D), lambda i: (i, 0)),
        out_shape=jax.ShapeDtypeStruct((M, D), jnp.bfloat16),
        compiler_params=pltpu.CompilerParams(dimension_semantics=("parallel",)),
    )(x2d, gamma.reshape(1, D), beta.reshape(1, D))


def _matmul_kernel(a_ref, b_ref, o_ref, acc_ref):
    @pl.when(pl.program_id(2) == 0)
    def _():
        acc_ref[...] = jnp.zeros_like(acc_ref)
    acc_ref[...] += jnp.dot(a_ref[...].astype(jnp.bfloat16),
                            b_ref[...].astype(jnp.bfloat16),
                            preferred_element_type=jnp.float32)
    @pl.when(pl.program_id(2) == pl.num_programs(2) - 1)
    def _():
        o_ref[...] = acc_ref[...].astype(o_ref.dtype)


def _matmul_bias_kernel(a_ref, b_ref, bias_ref, o_ref, acc_ref):
    @pl.when(pl.program_id(2) == 0)
    def _():
        acc_ref[...] = jnp.zeros_like(acc_ref)
    acc_ref[...] += jnp.dot(a_ref[...].astype(jnp.bfloat16),
                            b_ref[...].astype(jnp.bfloat16),
                            preferred_element_type=jnp.float32)
    @pl.when(pl.program_id(2) == pl.num_programs(2) - 1)
    def _():
        o_ref[...] = (acc_ref[...] + bias_ref[...]).astype(o_ref.dtype)


def _tiled_matmul(x2d, w, bias, *, out_dtype, tm=256, tn=256, tk=512):
    M, K = x2d.shape
    _, N = w.shape
    tm = _tile(M, tm, 8)
    tn = _tile(N, tn, 128)
    tk = _tile(K, tk, 128)
    grid = (M // tm, N // tn, K // tk)
    in_specs = [pl.BlockSpec((tm, tk), lambda i, j, k: (i, k)),
                pl.BlockSpec((tk, tn), lambda i, j, k: (k, j))]
    args = [x2d, w]
    kernel = _matmul_kernel
    if bias is not None:
        kernel = _matmul_bias_kernel
        in_specs.append(pl.BlockSpec((1, tn), lambda i, j, k: (0, j)))
        args.append(bias.reshape(1, N))
    return pl.pallas_call(
        kernel, grid=grid, in_specs=in_specs,
        out_specs=pl.BlockSpec((tm, tn), lambda i, j, k: (i, j)),
        out_shape=jax.ShapeDtypeStruct((M, N), out_dtype),
        scratch_shapes=[pltpu.VMEM((tm, tn), jnp.float32)],
        compiler_params=pltpu.CompilerParams(
            dimension_semantics=("parallel", "parallel", "arbitrary")),
    )(*args)


_MAX_FUSED_K = 2048


def pallas_linear(x2d, w, bias=None, ln=None, *, out_dtype=jnp.bfloat16,
                  eps=1e-5, tm=256, tn=512):
    """o = [LayerNorm](x2d) @ w (+ bias).

    x2d: (M, K); w: (K, N) pre-transposed bf16; ln: optional (gamma, beta)
    -> LayerNorm over K fused into the matmul prologue (single K tile)."""
    M, K = x2d.shape
    Kw, N = w.shape
    assert K == Kw
    if K > _MAX_FUSED_K:
        # K-tiled fallback: standalone LN kernel + accumulator matmul.
        if ln is not None:
            x2d = pallas_layernorm(x2d, ln[0], ln[1], eps=eps)
        return _tiled_matmul(x2d, w, bias, out_dtype=out_dtype)

    tm = _tile(M, tm, 8)
    tn = _tile(N, tn, 128)
    grid = (M // tm, N // tn)

    in_specs = [pl.BlockSpec((tm, K), lambda i, j: (i, 0))]
    args = [x2d]
    if ln is not None:
        gamma, beta = ln
        in_specs += [pl.BlockSpec((1, K), lambda i, j: (0, 0)),
                     pl.BlockSpec((1, K), lambda i, j: (0, 0))]
        args += [gamma.reshape(1, K), beta.reshape(1, K)]
    in_specs.append(pl.BlockSpec((K, tn), lambda i, j: (0, j)))
    args.append(w)
    if bias is not None:
        in_specs.append(pl.BlockSpec((1, tn), lambda i, j: (0, j)))
        args.append(bias.reshape(1, N))

    return pl.pallas_call(
        _make_proj_kernel(ln is not None, bias is not None, eps),
        grid=grid,
        in_specs=in_specs,
        out_specs=pl.BlockSpec((tm, tn), lambda i, j: (i, j)),
        out_shape=jax.ShapeDtypeStruct((M, N), out_dtype),
        compiler_params=pltpu.CompilerParams(
            dimension_semantics=("parallel", "parallel")),
    )(*args)


# ---------------------------------------------------------------------------
# Flash cross-attention kernel (rotary + scale + head split fused in-kernel)
# ---------------------------------------------------------------------------

def _rope_half(t, sin, cos, dim_rotary):
    """Rotary on channels pre-permuted to rotate-half order.
    t: (rows, dh) f32; sin/cos: (rows, dr) f32."""
    dr = dim_rotary
    if dr == 0:
        return t
    t_rot = t[:, :dr]
    half = dr // 2
    rot = jnp.concatenate([-t_rot[:, half:], t_rot[:, :half]], axis=-1)
    t_rot = t_rot * cos + rot * sin
    if dr == t.shape[-1]:
        return t_rot
    return jnp.concatenate([t_rot, t[:, dr:]], axis=-1)


def _flash_xattn_kernel(q_ref, sq_ref, cq_ref, k_ref, sk_ref, ck_ref, v_ref,
                        o_ref, q_scr, m_s, l_s, acc_s, *,
                        heads, dim_head, dim_rotary, scale):
    kv = pl.program_id(2)
    dh = dim_head

    @pl.when(kv == 0)
    def _():
        # once per (batch, q-tile): rotary + softmax scale folded into q,
        # stored bf16 in VMEM so the MXU operands stay bf16 across kv steps.
        q = q_ref[0].astype(jnp.float32)                   # (tq, H*dh)
        sin_q, cos_q = sq_ref[0], cq_ref[0]                # (tq, dr)
        parts = []
        for h in range(heads):
            qh = _rope_half(q[:, h * dh:(h + 1) * dh], sin_q, cos_q, dim_rotary)
            parts.append((qh * scale).astype(jnp.bfloat16))
        q_scr[...] = jnp.concatenate(parts, axis=-1)
        m_s[...] = jnp.full(m_s.shape, -jnp.inf, m_s.dtype)
        l_s[...] = jnp.zeros(l_s.shape, l_s.dtype)
        acc_s[...] = jnp.zeros(acc_s.shape, acc_s.dtype)

    k = k_ref[0].astype(jnp.float32)                       # (tkv, H*dh)
    v = v_ref[0]                                           # (tkv, H*dh) bf16
    sin_k, cos_k = sk_ref[0], ck_ref[0]                    # (tkv, dr)

    for h in range(heads):
        sl = slice(h * dh, (h + 1) * dh)
        k_h = _rope_half(k[:, sl], sin_k, cos_k, dim_rotary).astype(jnp.bfloat16)
        q_h = q_scr[:, sl]                                 # (tq, dh) bf16

        # q @ k^T on the MXU, fp32 accumulation
        s = lax.dot_general(q_h, k_h, (((1,), (1,)), ((), ())),
                            preferred_element_type=jnp.float32)   # (tq, tkv)

        m_prev = m_s[h]
        m_new = jnp.maximum(m_prev, jnp.max(s, axis=-1, keepdims=True))
        alpha = jnp.exp(m_prev - m_new)
        p = jnp.exp(s - m_new)                             # fp32 (v5e-safe EUP)

        l_s[h] = alpha * l_s[h] + jnp.sum(p, axis=-1, keepdims=True)
        acc_s[:, sl] = alpha * acc_s[:, sl] + jnp.dot(
            p.astype(jnp.bfloat16), v[:, sl], preferred_element_type=jnp.float32)
        m_s[h] = m_new

    @pl.when(kv == pl.num_programs(2) - 1)
    def _():
        parts = []
        for h in range(heads):
            sl = slice(h * dh, (h + 1) * dh)
            # exact reciprocal: runs once per q tile -> negligible cost
            parts.append((acc_s[:, sl] / l_s[h]).astype(o_ref.dtype))
        o_ref[0] = jnp.concatenate(parts, axis=-1)         # lane-dense (tq, H*dh)


def flash_cross_attention(q, k, v, sin_q, cos_q, sin_k, cos_k, *,
                          heads, dim_head, dim_rotary, scale,
                          q_tile=256, kv_tile_target=512, kv_buffers=None):
    """q: (B, Nq, H*dh) bf16; k, v: (B, Nk, H*dh) bf16;
    sin/cos: (B, N, dr) f32 (rotate-half channel order).
    Returns (B, Nq, H*dh) bf16, lane-dense, ready for the output projection."""
    B, Nq, inner = q.shape
    Nk = k.shape[1]
    dr = dim_rotary
    assert inner == heads * dim_head

    tq = _tile(Nq, q_tile, 8)
    # kv tile aligned to the 128-lane MXU dim (use 256 target on v6e/v7x).
    tkv = _tile(Nk, kv_tile_target, 128)
    grid = (B, Nq // tq, Nk // tkv)

    def kv_spec():
        kwargs = {}
        if kv_buffers is not None:   # v5e/v6e: deepen the K/V pipeline
            kwargs["pipeline_mode"] = pl.Buffered(kv_buffers)
        return pl.BlockSpec((1, tkv, inner), lambda b, qi, kv: (b, kv, 0), **kwargs)

    in_specs = [
        pl.BlockSpec((1, tq, inner), lambda b, qi, kv: (b, qi, 0)),   # q
        pl.BlockSpec((1, tq, dr), lambda b, qi, kv: (b, qi, 0)),      # sin_q
        pl.BlockSpec((1, tq, dr), lambda b, qi, kv: (b, qi, 0)),      # cos_q
        kv_spec(),                                                    # k
        pl.BlockSpec((1, tkv, dr), lambda b, qi, kv: (b, kv, 0)),     # sin_k
        pl.BlockSpec((1, tkv, dr), lambda b, qi, kv: (b, kv, 0)),     # cos_k
        kv_spec(),                                                    # v
    ]

    # Explicit VMEM budget (double-buffered blocks + scratch) for v7x's 64 MiB.
    est = (2 * (tq * inner * 2 + 2 * tq * dr * 4
                + 2 * (tkv * inner * 2) + 2 * (tkv * dr * 4)
                + tq * inner * 2)
           + tq * inner * 2 + 2 * heads * tq * 4 + tq * inner * 4)
    vmem_limit = int(min(48 * 2**20, max(32 * 2**20, 2 * est)))

    kernel = functools.partial(_flash_xattn_kernel, heads=heads,
                               dim_head=dim_head, dim_rotary=dim_rotary,
                               scale=scale)
    return pl.pallas_call(
        kernel,
        grid=grid,
        in_specs=in_specs,
        out_specs=pl.BlockSpec((1, tq, inner), lambda b, qi, kv: (b, qi, 0)),
        out_shape=jax.ShapeDtypeStruct((B, Nq, inner), jnp.bfloat16),
        scratch_shapes=[
            pltpu.VMEM((tq, inner), jnp.bfloat16),    # roped + scaled q
            pltpu.VMEM((heads, tq, 1), jnp.float32),  # running max  m
            pltpu.VMEM((heads, tq, 1), jnp.float32),  # running sum  l
            pltpu.VMEM((tq, inner), jnp.float32),     # fp32 accumulator
        ],
        compiler_params=pltpu.CompilerParams(
            dimension_semantics=("parallel", "parallel", "arbitrary"),
            vmem_limit_bytes=vmem_limit),
    )(q, sin_q, cos_q, k, sin_k, cos_k, v)


# ---------------------------------------------------------------------------
# Parameter setup (one-time) and CrossPreNorm forward
# ---------------------------------------------------------------------------

def prepare_params(params, *, heads, dim_head, dim_rotary):
    """One-time setup: split Wkv, pre-transpose all projection weights to
    (K, N), cast them to bf16, and permute Q/K output channels to the
    rotate-half rotary order (q.k dots are invariant under the permutation)."""
    inner = heads * dim_head
    perm = _rope_perm(heads, dim_head, dim_rotary)
    wq = params["wq"]           # (inner, D)     torch Linear layout (out, in)
    wkv = params["wkv"]         # (2*inner, D)
    wk, wv = wkv[:inner], wkv[inner:]
    return {
        "ln_src_g": params["ln_src_g"].astype(jnp.float32),
        "ln_src_b": params["ln_src_b"].astype(jnp.float32),
        "ln_tgt_g": params["ln_tgt_g"].astype(jnp.float32),
        "ln_tgt_b": params["ln_tgt_b"].astype(jnp.float32),
        "wq_t": jnp.asarray(wq[perm].T, jnp.bfloat16),      # (D, inner)
        "wk_t": jnp.asarray(wk[perm].T, jnp.bfloat16),      # (D, inner)
        "wv_t": jnp.asarray(wv.T, jnp.bfloat16),            # (D, inner)
        "wo_t": jnp.asarray(params["wo"].T, jnp.bfloat16),  # (inner, D)
        "bo": params["bo"].astype(jnp.float32),
    }


def cross_pre_norm_forward(ctx, src_pos_emb, ts, tgt_pos_emb, kparams, *,
                           heads, dim_head, dim_rotary):
    """CrossPreNorm.forward = fn(norm_src(ctx), src_pos_emb, norm_tgt(ts),
    tgt_pos_emb), with both LayerNorms fused into the projection kernels and
    rotary/scale fused into the flash-attention kernel prologue."""
    B, Nk, D = ctx.shape
    Nq = ts.shape[1]
    inner = heads * dim_head
    scale = dim_head ** -0.5
    assert dim_rotary % 2 == 0 and dim_rotary <= dim_head
    assert src_pos_emb[0].shape[-1] == dim_rotary

    sin_t, cos_t = _permute_rotary_pos_emb(tgt_pos_emb, dim_rotary)
    sin_s, cos_s = _permute_rotary_pos_emb(src_pos_emb, dim_rotary)

    ln_src = (kparams["ln_src_g"], kparams["ln_src_b"])
    ln_tgt = (kparams["ln_tgt_g"], kparams["ln_tgt_b"])

    # fused LayerNorm + projection -> bf16 lane-dense (B, N, H*dh)
    q = pallas_linear(ts.reshape(B * Nq, D), kparams["wq_t"], ln=ln_tgt)
    k = pallas_linear(ctx.reshape(B * Nk, D), kparams["wk_t"], ln=ln_src)
    v = pallas_linear(ctx.reshape(B * Nk, D), kparams["wv_t"], ln=ln_src)

    out = flash_cross_attention(
        q.reshape(B, Nq, inner), k.reshape(B, Nk, inner), v.reshape(B, Nk, inner),
        sin_t, cos_t, sin_s, cos_s,
        heads=heads, dim_head=dim_head, dim_rotary=dim_rotary, scale=scale)

    out = pallas_linear(out.reshape(B * Nq, inner), kparams["wo_t"],
                        bias=kparams["bo"], out_dtype=jnp.float32)
    # Dropout(p=0.0) -> identity (eval semantics).
    return out.reshape(B, Nq, D)


# ---------------------------------------------------------------------------
# Pure-JAX fp32 reference (mirrors the PyTorch forward)
# ---------------------------------------------------------------------------

def _rotate_every_two(x):
    x1 = x[..., 0::2]
    x2 = x[..., 1::2]
    return jnp.stack([-x2, x1], axis=-1).reshape(x.shape)


def _apply_rotary(t, sin, cos):
    dr = sin.shape[-1]
    sin = sin[:, None, :, :]
    cos = cos[:, None, :, :]
    t_rot, t_pass = t[..., :dr], t[..., dr:]
    t_rot = t_rot * cos + _rotate_every_two(t_rot) * sin
    if t_pass.shape[-1] == 0:
        return t_rot
    return jnp.concatenate([t_rot, t_pass], axis=-1)


def _ref_layernorm(x, g, b, eps=1e-5):
    mean = jnp.mean(x, axis=-1, keepdims=True)
    var = jnp.mean((x - mean) ** 2, axis=-1, keepdims=True)
    return (x - mean) / jnp.sqrt(var + eps) * g + b


def ref_forward(ctx, src_pos_emb, ts, tgt_pos_emb, params, *, heads, dim_head):
    src = _ref_layernorm(ctx, params["ln_src_g"], params["ln_src_b"])
    tgt = _ref_layernorm(ts, params["ln_tgt_g"], params["ln_tgt_b"])

    B, Nk, D = src.shape
    Nq = tgt.shape[1]
    inner = heads * dim_head

    q = tgt @ params["wq"].T
    kv = src @ params["wkv"].T
    k, v = kv[..., :inner], kv[..., inner:]

    def to_heads(t, n):
        return t.reshape(B, n, heads, dim_head).transpose(0, 2, 1, 3)

    q, k, v = to_heads(q, Nq), to_heads(k, Nk), to_heads(v, Nk)
    q = _apply_rotary(q, *tgt_pos_emb)
    k = _apply_rotary(k, *src_pos_emb)

    dots = jnp.einsum("bhid,bhjd->bhij", q, k) * dim_head ** (-0.5)
    attn = jax.nn.softmax(dots, axis=-1)
    out = jnp.einsum("bhij,bhjd->bhid", attn, v)
    out = out.transpose(0, 2, 1, 3).reshape(B, Nq, inner)
    return out @ params["wo"].T + params["bo"]


# ---------------------------------------------------------------------------
# Main
# ---------------------------------------------------------------------------

if __name__ == "__main__":
    B = 2
    Nk, Nq = 16, 8           # source (ctx) and target (ts) sequence lengths
    D = 32
    heads, dim_head = 4, 16
    inner = heads * dim_head
    dim_rotary = 8           # < dim_head, exercises the pass-through path

    key = jax.random.PRNGKey(0)
    keys = jax.random.split(key, 12)

    ctx = jax.random.normal(keys[0], (B, Nk, D), dtype=jnp.float32)
    ts = jax.random.normal(keys[1], (B, Nq, D), dtype=jnp.float32)

    th_s = jax.random.uniform(keys[2], (B, Nk, dim_rotary), jnp.float32,
                              0.0, 2.0 * np.pi)
    th_t = jax.random.uniform(keys[3], (B, Nq, dim_rotary), jnp.float32,
                              0.0, 2.0 * np.pi)
    src_pos_emb = (jnp.sin(th_s), jnp.cos(th_s))
    tgt_pos_emb = (jnp.sin(th_t), jnp.cos(th_t))

    params = {
        "ln_src_g": 1.0 + 0.1 * jax.random.normal(keys[4], (D,), jnp.float32),
        "ln_src_b": 0.1 * jax.random.normal(keys[5], (D,), jnp.float32),
        "ln_tgt_g": 1.0 + 0.1 * jax.random.normal(keys[6], (D,), jnp.float32),
        "ln_tgt_b": 0.1 * jax.random.normal(keys[7], (D,), jnp.float32),
        "wq": jax.random.normal(keys[8], (inner, D), jnp.float32) * 0.05,
        "wkv": jax.random.normal(keys[9], (2 * inner, D), jnp.float32) * 0.05,
        "wo": jax.random.normal(keys[10], (D, inner), jnp.float32) * 0.05,
        "bo": jax.random.normal(keys[11], (D,), jnp.float32) * 0.05,
    }

    # one-time parameter setup: transposed / bf16 / rope-permuted weights
    kparams = prepare_params(params, heads=heads, dim_head=dim_head,
                             dim_rotary=dim_rotary)

    fwd = jax.jit(functools.partial(cross_pre_norm_forward, heads=heads,
                                    dim_head=dim_head, dim_rotary=dim_rotary))
    out = jax.block_until_ready(fwd(ctx, src_pos_emb, ts, tgt_pos_emb, kparams))

    out_ref = ref_forward(ctx, src_pos_emb, ts, tgt_pos_emb, params,
                          heads=heads, dim_head=dim_head)

    # bf16 MXU operands / bf16 inter-kernel activations -> loosened tolerance
    np.testing.assert_allclose(np.asarray(out), np.asarray(out_ref),
                               rtol=2e-2, atol=2e-2)

    print("KERNEL_OK")
</pallas_src>

<mosaic_0001>
module attributes {stable_mosaic.version = 11 : i64} {
  func.func @kernel(%arg0: i32, %arg1: i32, %arg2: memref<32x32xf32, #tpu.memory_space<vmem>>, %arg3: memref<1x32xf32, #tpu.memory_space<vmem>>, %arg4: memref<1x32xf32, #tpu.memory_space<vmem>>, %arg5: memref<32x64xbf16, #tpu.memory_space<vmem>>, %arg6: memref<32x64xbf16, #tpu.memory_space<vmem>>) attributes {dimension_semantics = [#tpu.dimension_semantics<parallel>, #tpu.dimension_semantics<parallel>], iteration_bounds = array<i64: 1, 1>, scalar_prefetch = 0 : i64, scratch_operands = 0 : i64, tpu.core_type = #tpu.core_type<tc>, window_params = [{transform_indices = @transform_0, window_bounds = array<i64: 32, 32>}, {pipeline_mode = #tpu.pipeline_mode<synchronous>, transform_indices = @transform_1, window_bounds = array<i64: 1, 32>}, {pipeline_mode = #tpu.pipeline_mode<synchronous>, transform_indices = @transform_2, window_bounds = array<i64: 1, 32>}, {transform_indices = @transform_3, window_bounds = array<i64: 32, 64>}, {transform_indices = @transform_4, window_bounds = array<i64: 32, 64>}]} {
    %c0 = arith.constant 0 : index
    %c0_0 = arith.constant 0 : index
    %0 = vector.load %arg2[%c0, %c0_0] : memref<32x32xf32, #tpu.memory_space<vmem>>, vector<32x32xf32>
    %cst = arith.constant dense<0.000000e+00> : vector<32xf32>
    %1 = vector.multi_reduction <add>, %0, %cst [1] : vector<32x32xf32> to vector<32xf32>
    %2 = vector.shape_cast %1 : vector<32xf32> to vector<32x1xf32>
    %cst_1 = arith.constant 3.200000e+01 : f32
    %3 = vector.broadcast %cst_1 : f32 to vector<32x1xf32>
    %4 = arith.divf %2, %3 : vector<32x1xf32>
    %5 = vector.broadcast %4 : vector<32x1xf32> to vector<32x32xf32>
    %6 = arith.subf %0, %5 : vector<32x32xf32>
    %7 = arith.mulf %6, %6 : vector<32x32xf32>
    %cst_2 = arith.constant dense<0.000000e+00> : vector<32xf32>
    %8 = vector.multi_reduction <add>, %7, %cst_2 [1] : vector<32x32xf32> to vector<32xf32>
    %9 = vector.shape_cast %8 : vector<32xf32> to vector<32x1xf32>
    %cst_3 = arith.constant 3.200000e+01 : f32
    %10 = vector.broadcast %cst_3 : f32 to vector<32x1xf32>
    %11 = arith.divf %9, %10 : vector<32x1xf32>
    %cst_4 = arith.constant 9.99999974E-6 : f32
    %12 = vector.broadcast %cst_4 : f32 to vector<32x1xf32>
    %13 = arith.addf %11, %12 : vector<32x1xf32>
    %14 = math.rsqrt %13 : vector<32x1xf32>
    %15 = vector.broadcast %14 : vector<32x1xf32> to vector<32x32xf32>
    %16 = arith.mulf %6, %15 : vector<32x32xf32>
    %c0_5 = arith.constant 0 : index
    %c0_6 = arith.constant 0 : index
    %17 = vector.load %arg3[%c0_5, %c0_6] : memref<1x32xf32, #tpu.memory_space<vmem>>, vector<1x32xf32>
    %18 = vector.broadcast %17 : vector<1x32xf32> to vector<32x32xf32>
    %19 = arith.mulf %16, %18 : vector<32x32xf32>
    %c0_7 = arith.constant 0 : index
    %c0_8 = arith.constant 0 : index
    %20 = vector.load %arg4[%c0_7, %c0_8] : memref<1x32xf32, #tpu.memory_space<vmem>>, vector<1x32xf32>
    %21 = vector.broadcast %20 : vector<1x32xf32> to vector<32x32xf32>
    %22 = arith.addf %19, %21 : vector<32x32xf32>
    %23 = arith.truncf %22 : vector<32x32xf32> to vector<32x32xbf16>
    %c0_9 = arith.constant 0 : index
    %c0_10 = arith.constant 0 : index
    %24 = vector.load %arg5[%c0_9, %c0_10] : memref<32x64xbf16, #tpu.memory_space<vmem>>, vector<32x64xbf16>
    %cst_11 = arith.constant dense<0.000000e+00> : vector<32x64xf32>
    %25 = tpu.matmul %23, %24, %cst_11 {dimension_numbers = #tpu.dot_dimension_numbers<[1], [0], [0], [1], [0, 0, 1, 1], [], []>} : vector<32x32xbf16>, vector<32x64xbf16>, vector<32x64xf32> -> vector<32x64xf32>
    %26 = arith.truncf %25 : vector<32x64xf32> to vector<32x64xbf16>
    %c0_12 = arith.constant 0 : index
    %c0_13 = arith.constant 0 : index
    %27 = vector.load %arg6[%c0_12, %c0_13] : memref<32x64xbf16, #tpu.memory_space<vmem>>, vector<32x64xbf16>
    tpu.vector_store %arg6[%c0_12, %c0_13], %26 {strides = array<i32>} : memref<32x64xbf16, #tpu.memory_space<vmem>>, vector<32x64xbf16>,
    return
  }
  func.func @transform_0(%arg0: i32, %arg1: i32) -> (i32, i32) {
    %c0_i32 = arith.constant 0 : i32
    %c0_i32_0 = arith.constant 0 : i32
    return %arg0, %c0_i32 : i32, i32
  }
  func.func @transform_1(%arg0: i32, %arg1: i32) -> (i32, i32) {
    %c0_i32 = arith.constant 0 : i32
    %c0_i32_0 = arith.constant 0 : i32
    %c0_i32_1 = arith.constant 0 : i32
    return %c0_i32, %c0_i32_0 : i32, i32
  }
  func.func @transform_2(%arg0: i32, %arg1: i32) -> (i32, i32) {
    %c0_i32 = arith.constant 0 : i32
    %c0_i32_0 = arith.constant 0 : i32
    %c0_i32_1 = arith.constant 0 : i32
    return %c0_i32, %c0_i32_0 : i32, i32
  }
  func.func @transform_3(%arg0: i32, %arg1: i32) -> (i32, i32) {
    %c0_i32 = arith.constant 0 : i32
    %c0_i32_0 = arith.constant 0 : i32
    return %c0_i32, %arg1 : i32, i32
  }
  func.func @transform_4(%arg0: i32, %arg1: i32) -> (i32, i32) {
    %c0_i32 = arith.constant 0 : i32
    return %arg0, %arg1 : i32, i32
  }
}

module attributes {stable_mosaic.version = 11 : i64} {
  func.func @kernel(%arg0: i32, %arg1: i32, %arg2: memref<16x32xf32, #tpu.memory_space<vmem>>, %arg3: memref<1x32xf32, #tpu.memory_space<vmem>>, %arg4: memref<1x32xf32, #tpu.memory_space<vmem>>, %arg5: memref<32x64xbf16, #tpu.memory_space<vmem>>, %arg6: memref<16x64xbf16, #tpu.memory_space<vmem>>) attributes {dimension_semantics = [#tpu.dimension_semantics<parallel>, #tpu.dimension_semantics<parallel>], iteration_bounds = array<i64: 1, 1>, scalar_prefetch = 0 : i64, scratch_operands = 0 : i64, tpu.core_type = #tpu.core_type<tc>, window_params = [{transform_indices = @transform_0, window_bounds = array<i64: 16, 32>}, {pipeline_mode = #tpu.pipeline_mode<synchronous>, transform_indices = @transform_1, window_bounds = array<i64: 1, 32>}, {pipeline_mode = #tpu.pipeline_mode<synchronous>, transform_indices = @transform_2, window_bounds = array<i64: 1, 32>}, {transform_indices = @transform_3, window_bounds = array<i64: 32, 64>}, {transform_indices = @transform_4, window_bounds = array<i64: 16, 64>}]} {
    %c0 = arith.constant 0 : index
    %c0_0 = arith.constant 0 : index
    %0 = vector.load %arg2[%c0, %c0_0] : memref<16x32xf32, #tpu.memory_space<vmem>>, vector<16x32xf32>
    %cst = arith.constant dense<0.000000e+00> : vector<16xf32>
    %1 = vector.multi_reduction <add>, %0, %cst [1] : vector<16x32xf32> to vector<16xf32>
    %2 = vector.shape_cast %1 : vector<16xf32> to vector<16x1xf32>
    %cst_1 = arith.constant 3.200000e+01 : f32
    %3 = vector.broadcast %cst_1 : f32 to vector<16x1xf32>
    %4 = arith.divf %2, %3 : vector<16x1xf32>
    %5 = vector.broadcast %4 : vector<16x1xf32> to vector<16x32xf32>
    %6 = arith.subf %0, %5 : vector<16x32xf32>
    %7 = arith.mulf %6, %6 : vector<16x32xf32>
    %cst_2 = arith.constant dense<0.000000e+00> : vector<16xf32>
    %8 = vector.multi_reduction <add>, %7, %cst_2 [1] : vector<16x32xf32> to vector<16xf32>
    %9 = vector.shape_cast %8 : vector<16xf32> to vector<16x1xf32>
    %cst_3 = arith.constant 3.200000e+01 : f32
    %10 = vector.broadcast %cst_3 : f32 to vector<16x1xf32>
    %11 = arith.divf %9, %10 : vector<16x1xf32>
    %cst_4 = arith.constant 9.99999974E-6 : f32
    %12 = vector.broadcast %cst_4 : f32 to vector<16x1xf32>
    %13 = arith.addf %11, %12 : vector<16x1xf32>
    %14 = math.rsqrt %13 : vector<16x1xf32>
    %15 = vector.broadcast %14 : vector<16x1xf32> to vector<16x32xf32>
    %16 = arith.mulf %6, %15 : vector<16x32xf32>
    %c0_5 = arith.constant 0 : index
    %c0_6 = arith.constant 0 : index
    %17 = vector.load %arg3[%c0_5, %c0_6] : memref<1x32xf32, #tpu.memory_space<vmem>>, vector<1x32xf32>
    %18 = vector.broadcast %17 : vector<1x32xf32> to vector<16x32xf32>
    %19 = arith.mulf %16, %18 : vector<16x32xf32>
    %c0_7 = arith.constant 0 : index
    %c0_8 = arith.constant 0 : index
    %20 = vector.load %arg4[%c0_7, %c0_8] : memref<1x32xf32, #tpu.memory_space<vmem>>, vector<1x32xf32>
    %21 = vector.broadcast %20 : vector<1x32xf32> to vector<16x32xf32>
    %22 = arith.addf %19, %21 : vector<16x32xf32>
    %23 = arith.truncf %22 : vector<16x32xf32> to vector<16x32xbf16>
    %c0_9 = arith.constant 0 : index
    %c0_10 = arith.constant 0 : index
    %24 = vector.load %arg5[%c0_9, %c0_10] : memref<32x64xbf16, #tpu.memory_space<vmem>>, vector<32x64xbf16>
    %cst_11 = arith.constant dense<0.000000e+00> : vector<16x64xf32>
    %25 = tpu.matmul %23, %24, %cst_11 {dimension_numbers = #tpu.dot_dimension_numbers<[1], [0], [0], [1], [0, 0, 1, 1], [], []>} : vector<16x32xbf16>, vector<32x64xbf16>, vector<16x64xf32> -> vector<16x64xf32>
    %26 = arith.truncf %25 : vector<16x64xf32> to vector<16x64xbf16>
    %c0_12 = arith.constant 0 : index
    %c0_13 = arith.constant 0 : index
    %27 = vector.load %arg6[%c0_12, %c0_13] : memref<16x64xbf16, #tpu.memory_space<vmem>>, vector<16x64xbf16>
    tpu.vector_store %arg6[%c0_12, %c0_13], %26 {strides = array<i32>} : memref<16x64xbf16, #tpu.memory_space<vmem>>, vector<16x64xbf16>,
    return
  }
  func.func @transform_0(%arg0: i32, %arg1: i32) -> (i32, i32) {
    %c0_i32 = arith.constant 0 : i32
    %c0_i32_0 = arith.constant 0 : i32
    return %arg0, %c0_i32 : i32, i32
  }
  func.func @transform_1(%arg0: i32, %arg1: i32) -> (i32, i32) {
    %c0_i32 = arith.constant 0 : i32
    %c0_i32_0 = arith.constant 0 : i32
    %c0_i32_1 = arith.constant 0 : i32
    return %c0_i32, %c0_i32_0 : i32, i32
  }
  func.func @transform_2(%arg0: i32, %arg1: i32) -> (i32, i32) {
    %c0_i32 = arith.constant 0 : i32
    %c0_i32_0 = arith.constant 0 : i32
    %c0_i32_1 = arith.constant 0 : i32
    return %c0_i32, %c0_i32_0 : i32, i32
  }
  func.func @transform_3(%arg0: i32, %arg1: i32) -> (i32, i32) {
    %c0_i32 = arith.constant 0 : i32
    %c0_i32_0 = arith.constant 0 : i32
    return %c0_i32, %arg1 : i32, i32
  }
  func.func @transform_4(%arg0: i32, %arg1: i32) -> (i32, i32) {
    %c0_i32 = arith.constant 0 : i32
    return %arg0, %arg1 : i32, i32
  }
}

module attributes {stable_mosaic.version = 11 : i64} {
  func.func @_flash_xattn_kernel(%arg0: i32, %arg1: i32, %arg2: i32, %arg3: memref<1x8x64xbf16, #tpu.memory_space<vmem>>, %arg4: memref<1x8x8xf32, #tpu.memory_space<vmem>>, %arg5: memref<1x8x8xf32, #tpu.memory_space<vmem>>, %arg6: memref<1x16x64xbf16, #tpu.memory_space<vmem>>, %arg7: memref<1x16x8xf32, #tpu.memory_space<vmem>>, %arg8: memref<1x16x8xf32, #tpu.memory_space<vmem>>, %arg9: memref<1x16x64xbf16, #tpu.memory_space<vmem>>, %arg10: memref<1x8x64xbf16, #tpu.memory_space<vmem>>, %arg11: memref<8x64xbf16, #tpu.memory_space<vmem>>, %arg12: memref<4x8x1xf32, #tpu.memory_space<vmem>>, %arg13: memref<4x8x1xf32, #tpu.memory_space<vmem>>, %arg14: memref<8x64xf32, #tpu.memory_space<vmem>>) attributes {dimension_semantics = [#tpu.dimension_semantics<parallel>, #tpu.dimension_semantics<parallel>, #tpu.dimension_semantics<arbitrary>], iteration_bounds = array<i64: 2, 1, 1>, scalar_prefetch = 0 : i64, scratch_operands = 4 : i64, tpu.core_type = #tpu.core_type<tc>, window_params = [{transform_indices = @transform_0, window_bounds = array<i64: 1, 8, 64>}, {transform_indices = @transform_1, window_bounds = array<i64: 1, 8, 8>}, {transform_indices = @transform_2, window_bounds = array<i64: 1, 8, 8>}, {transform_indices = @transform_3, window_bounds = array<i64: 1, 16, 64>}, {transform_indices = @transform_4, window_bounds = array<i64: 1, 16, 8>}, {transform_indices = @transform_5, window_bounds = array<i64: 1, 16, 8>}, {transform_indices = @transform_6, window_bounds = array<i64: 1, 16, 64>}, {transform_indices = @transform_7, window_bounds = array<i64: 1, 8, 64>}]} {
    %c0_i32 = arith.constant 0 : i32
    %0 = arith.cmpi eq, %arg2, %c0_i32 : i32
    %1 = arith.extui %0 : i1 to i32
    %c0_i32_0 = arith.constant 0 : i32
    %2 = arith.cmpi ne, %1, %c0_i32_0 : i32
    scf.if %2 {
      %c0_99 = arith.constant 0 : index
      %c0_100 = arith.constant 0 : index
      %c0_101 = arith.constant 0 : index
      %195 = vector.load %arg3[%c0_99, %c0_100, %c0_101] : memref<1x8x64xbf16, #tpu.memory_space<vmem>>, vector<1x8x64xbf16>
      %196 = vector.shape_cast %195 : vector<1x8x64xbf16> to vector<8x64xbf16>
      %197 = arith.extf %196 : vector<8x64xbf16> to vector<8x64xf32>
      %c0_102 = arith.constant 0 : index
      %c0_103 = arith.constant 0 : index
      %c0_104 = arith.constant 0 : index
      %198 = vector.load %arg4[%c0_102, %c0_103, %c0_104] : memref<1x8x8xf32, #tpu.memory_space<vmem>>, vector<1x8x8xf32>
      %199 = vector.shape_cast %198 : vector<1x8x8xf32> to vector<8x8xf32>
      %c0_105 = arith.constant 0 : index
      %c0_106 = arith.constant 0 : index
      %c0_107 = arith.constant 0 : index
      %200 = vector.load %arg5[%c0_105, %c0_106, %c0_107] : memref<1x8x8xf32, #tpu.memory_space<vmem>>, vector<1x8x8xf32>
      %201 = vector.shape_cast %200 : vector<1x8x8xf32> to vector<8x8xf32>
      %202 = vector.extract_strided_slice %197 {offsets = [0, 0], sizes = [8, 16], strides = [1, 1]} : vector<8x64xf32> to vector<8x16xf32>
      %203 = vector.extract_strided_slice %202 {offsets = [0, 0], sizes = [8, 8], strides = [1, 1]} : vector<8x16xf32> to vector<8x8xf32>
      %204 = vector.extract_strided_slice %203 {offsets = [0, 4], sizes = [8, 4], strides = [1, 1]} : vector<8x8xf32> to vector<8x4xf32>
      %cst_108 = arith.constant 0.000000e+00 : f32
      %205 = vector.broadcast %cst_108 : f32 to vector<8x4xf32>
      %206 = arith.subf %205, %204 : vector<8x4xf32>
      %207 = vector.extract_strided_slice %203 {offsets = [0, 0], sizes = [8, 4], strides = [1, 1]} : vector<8x8xf32> to vector<8x4xf32>
      %208 = tpu.concatenate %206, %207 in 1 : vector<8x4xf32>, vector<8x4xf32> -> vector<8x8xf32>
      %209 = arith.mulf %203, %201 : vector<8x8xf32>
      %210 = arith.mulf %208, %199 : vector<8x8xf32>
      %211 = arith.addf %209, %210 : vector<8x8xf32>
      %212 = vector.extract_strided_slice %202 {offsets = [0, 8], sizes = [8, 8], strides = [1, 1]} : vector<8x16xf32> to vector<8x8xf32>
      %213 = tpu.concatenate %211, %212 in 1 : vector<8x8xf32>, vector<8x8xf32> -> vector<8x16xf32>
      %cst_109 = arith.constant 2.500000e-01 : f32
      %214 = vector.broadcast %cst_109 : f32 to vector<8x16xf32>
      %215 = arith.mulf %213, %214 : vector<8x16xf32>
      %216 = arith.truncf %215 : vector<8x16xf32> to vector<8x16xbf16>
      %217 = vector.extract_strided_slice %197 {offsets = [0, 16], sizes = [8, 16], strides = [1, 1]} : vector<8x64xf32> to vector<8x16xf32>
      %218 = vector.extract_strided_slice %217 {offsets = [0, 0], sizes = [8, 8], strides = [1, 1]} : vector<8x16xf32> to vector<8x8xf32>
      %219 = vector.extract_strided_slice %218 {offsets = [0, 4], sizes = [8, 4], strides = [1, 1]} : vector<8x8xf32> to vector<8x4xf32>
      %cst_110 = arith.constant 0.000000e+00 : f32
      %220 = vector.broadcast %cst_110 : f32 to vector<8x4xf32>
      %221 = arith.subf %220, %219 : vector<8x4xf32>
      %222 = vector.extract_strided_slice %218 {offsets = [0, 0], sizes = [8, 4], strides = [1, 1]} : vector<8x8xf32> to vector<8x4xf32>
      %223 = tpu.concatenate %221, %222 in 1 : vector<8x4xf32>, vector<8x4xf32> -> vector<8x8xf32>
      %224 = arith.mulf %218, %201 : vector<8x8xf32>
      %225 = arith.mulf %223, %199 : vector<8x8xf32>
      %226 = arith.addf %224, %225 : vector<8x8xf32>
      %227 = vector.extract_strided_slice %217 {offsets = [0, 8], sizes = [8, 8], strides = [1, 1]} : vector<8x16xf32> to vector<8x8xf32>
      %228 = tpu.concatenate %226, %227 in 1 : vector<8x8xf32>, vector<8x8xf32> -> vector<8x16xf32>
      %cst_111 = arith.constant 2.500000e-01 : f32
      %229 = vector.broadcast %cst_111 : f32 to vector<8x16xf32>
      %230 = arith.mulf %228, %229 : vector<8x16xf32>
      %231 = arith.truncf %230 : vector<8x16xf32> to vector<8x16xbf16>
      %232 = vector.extract_strided_slice %197 {offsets = [0, 32], sizes = [8, 16], strides = [1, 1]} : vector<8x64xf32> to vector<8x16xf32>
      %233 = vector.extract_strided_slice %232 {offsets = [0, 0], sizes = [8, 8], strides = [1, 1]} : vector<8x16xf32> to vector<8x8xf32>
      %234 = vector.extract_strided_slice %233 {offsets = [0, 4], sizes = [8, 4], strides = [1, 1]} : vector<8x8xf32> to vector<8x4xf32>
      %cst_112 = arith.constant 0.000000e+00 : f32
      %235 = vector.broadcast %cst_112 : f32 to vector<8x4xf32>
      %236 = arith.subf %235, %234 : vector<8x4xf32>
      %237 = vector.extract_strided_slice %233 {offsets = [0, 0], sizes = [8, 4], strides = [1, 1]} : vector<8x8xf32> to vector<8x4xf32>
      %238 = tpu.concatenate %236, %237 in 1 : vector<8x4xf32>, vector<8x4xf32> -> vector<8x8xf32>
      %239 = arith.mulf %233, %201 : vector<8x8xf32>
      %240 = arith.mulf %238, %199 : vector<8x8xf32>
      %241 = arith.addf %239, %240 : vector<8x8xf32>
      %242 = vector.extract_strided_slice %232 {offsets = [0, 8], sizes = [8, 8], strides = [1, 1]} : vector<8x16xf32> to vector<8x8xf32>
      %243 = tpu.concatenate %241, %242 in 1 : vector<8x8xf32>, vector<8x8xf32> -> vector<8x16xf32>
      %cst_113 = arith.constant 2.500000e-01 : f32
      %244 = vector.broadcast %cst_113 : f32 to vector<8x16xf32>
      %245 = arith.mulf %243, %244 : vector<8x16xf32>
      %246 = arith.truncf %245 : vector<8x16xf32> to vector<8x16xbf16>
      %247 = vector.extract_strided_slice %197 {offsets = [0, 48], sizes = [8, 16], strides = [1, 1]} : vector<8x64xf32> to vector<8x16xf32>
      %248 = vector.extract_strided_slice %247 {offsets = [0, 0], sizes = [8, 8], strides = [1, 1]} : vector<8x16xf32> to vector<8x8xf32>
      %249 = vector.extract_strided_slice %248 {offsets = [0, 4], sizes = [8, 4], strides = [1, 1]} : vector<8x8xf32> to vector<8x4xf32>
      %cst_114 = arith.constant 0.000000e+00 : f32
      %250 = vector.broadcast %cst_114 : f32 to vector<8x4xf32>
      %251 = arith.subf %250, %249 : vector<8x4xf32>
      %252 = vector.extract_strided_slice %248 {offsets = [0, 0], sizes = [8, 4], strides = [1, 1]} : vector<8x8xf32> to vector<8x4xf32>
      %253 = tpu.concatenate %251, %252 in 1 : vector<8x4xf32>, vector<8x4xf32> -> vector<8x8xf32>
      %254 = arith.mulf %248, %201 : vector<8x8xf32>
      %255 = arith.mulf %253, %199 : vector<8x8xf32>
      %256 = arith.addf %254, %255 : vector<8x8xf32>
      %257 = vector.extract_strided_slice %247 {offsets = [0, 8], sizes = [8, 8], strides = [1, 1]} : vector<8x16xf32> to vector<8x8xf32>
      %258 = tpu.concatenate %256, %257 in 1 : vector<8x8xf32>, vector<8x8xf32> -> vector<8x16xf32>
      %cst_115 = arith.constant 2.500000e-01 : f32
      %259 = vector.broadcast %cst_115 : f32 to vector<8x16xf32>
      %260 = arith.mulf %258, %259 : vector<8x16xf32>
      %261 = arith.truncf %260 : vector<8x16xf32> to vector<8x16xbf16>
      %262 = tpu.concatenate %216, %231, %246, %261 in 1 : vector<8x16xbf16>, vector<8x16xbf16>, vector<8x16xbf16>, vector<8x16xbf16> -> vector<8x64xbf16>
      %c0_116 = arith.constant 0 : index
      %c0_117 = arith.constant 0 : index
      %263 = vector.load %arg11[%c0_116, %c0_117] : memref<8x64xbf16, #tpu.memory_space<vmem>>, vector<8x64xbf16>
      tpu.vector_store %arg11[%c0_116, %c0_117], %262 {strides = array<i32>} : memref<8x64xbf16, #tpu.memory_space<vmem>>, vector<8x64xbf16>,
      %cst_118 = arith.constant 0xFF800000 : f32
      %264 = vector.broadcast %cst_118 : f32 to vector<4x8x1xf32>
      %c0_119 = arith.constant 0 : index
      %c0_120 = arith.constant 0 : index
      %c0_121 = arith.constant 0 : index
      %265 = vector.load %arg12[%c0_119, %c0_120, %c0_121] : memref<4x8x1xf32, #tpu.memory_space<vmem>>, vector<4x8x1xf32>
      tpu.vector_store %arg12[%c0_119, %c0_120, %c0_121], %264 {strides = array<i32>} : memref<4x8x1xf32, #tpu.memory_space<vmem>>, vector<4x8x1xf32>,
      %cst_122 = arith.constant 0.000000e+00 : f32
      %266 = vector.broadcast %cst_122 : f32 to vector<4x8x1xf32>
      %c0_123 = arith.constant 0 : index
      %c0_124 = arith.constant 0 : index
      %c0_125 = arith.constant 0 : index
      %267 = vector.load %arg13[%c0_123, %c0_124, %c0_125] : memref<4x8x1xf32, #tpu.memory_space<vmem>>, vector<4x8x1xf32>
      tpu.vector_store %arg13[%c0_123, %c0_124, %c0_125], %266 {strides = array<i32>} : memref<4x8x1xf32, #tpu.memory_space<vmem>>, vector<4x8x1xf32>,
      %cst_126 = arith.constant 0.000000e+00 : f32
      %268 = vector.broadcast %cst_126 : f32 to vector<8x64xf32>
      %c0_127 = arith.constant 0 : index
      %c0_128 = arith.constant 0 : index
      %269 = vector.load %arg14[%c0_127, %c0_128] : memref<8x64xf32, #tpu.memory_space<vmem>>, vector<8x64xf32>
      tpu.vector_store %arg14[%c0_127, %c0_128], %268 {strides = array<i32>} : memref<8x64xf32, #tpu.memory_space<vmem>>, vector<8x64xf32>,
    } else {
    }
    %c0 = arith.constant 0 : index
    %c0_1 = arith.constant 0 : index
    %c0_2 = arith.constant 0 : index
    %3 = vector.load %arg6[%c0, %c0_1, %c0_2] : memref<1x16x64xbf16, #tpu.memory_space<vmem>>, vector<1x16x64xbf16>
    %4 = vector.shape_cast %3 : vector<1x16x64xbf16> to vector<16x64xbf16>
    %5 = arith.extf %4 : vector<16x64xbf16> to vector<16x64xf32>
    %c0_3 = arith.constant 0 : index
    %c0_4 = arith.constant 0 : index
    %c0_5 = arith.constant 0 : index
    %6 = vector.load %arg9[%c0_3, %c0_4, %c0_5] : memref<1x16x64xbf16, #tpu.memory_space<vmem>>, vector<1x16x64xbf16>
    %7 = vector.shape_cast %6 : vector<1x16x64xbf16> to vector<16x64xbf16>
    %c0_6 = arith.constant 0 : index
    %c0_7 = arith.constant 0 : index
    %c0_8 = arith.constant 0 : index
    %8 = vector.load %arg7[%c0_6, %c0_7, %c0_8] : memref<1x16x8xf32, #tpu.memory_space<vmem>>, vector<1x16x8xf32>
    %9 = vector.shape_cast %8 : vector<1x16x8xf32> to vector<16x8xf32>
    %c0_9 = arith.constant 0 : index
    %c0_10 = arith.constant 0 : index
    %c0_11 = arith.constant 0 : index
    %10 = vector.load %arg8[%c0_9, %c0_10, %c0_11] : memref<1x16x8xf32, #tpu.memory_space<vmem>>, vector<1x16x8xf32>
    %11 = vector.shape_cast %10 : vector<1x16x8xf32> to vector<16x8xf32>
    %12 = vector.extract_strided_slice %5 {offsets = [0, 0], sizes = [16, 16], strides = [1, 1]} : vector<16x64xf32> to vector<16x16xf32>
    %13 = vector.extract_strided_slice %12 {offsets = [0, 0], sizes = [16, 8], strides = [1, 1]} : vector<16x16xf32> to vector<16x8xf32>
    %14 = vector.extract_strided_slice %13 {offsets = [0, 4], sizes = [16, 4], strides = [1, 1]} : vector<16x8xf32> to vector<16x4xf32>
    %cst = arith.constant 0.000000e+00 : f32
    %15 = vector.broadcast %cst : f32 to vector<16x4xf32>
    %16 = arith.subf %15, %14 : vector<16x4xf32>
    %17 = vector.extract_strided_slice %13 {offsets = [0, 0], sizes = [16, 4], strides = [1, 1]} : vector<16x8xf32> to vector<16x4xf32>
    %18 = tpu.concatenate %16, %17 in 1 : vector<16x4xf32>, vector<16x4xf32> -> vector<16x8xf32>
    %19 = arith.mulf %13, %11 : vector<16x8xf32>
    %20 = arith.mulf %18, %9 : vector<16x8xf32>
    %21 = arith.addf %19, %20 : vector<16x8xf32>
    %22 = vector.extract_strided_slice %12 {offsets = [0, 8], sizes = [16, 8], strides = [1, 1]} : vector<16x16xf32> to vector<16x8xf32>
    %23 = tpu.concatenate %21, %22 in 1 : vector<16x8xf32>, vector<16x8xf32> -> vector<16x16xf32>
    %24 = arith.truncf %23 : vector<16x16xf32> to vector<16x16xbf16>
    %c0_12 = arith.constant 0 : index
    %c0_13 = arith.constant 0 : index
    %25 = vector.load %arg11[%c0_12, %c0_13] : memref<8x64xbf16, #tpu.memory_space<vmem>>, vector<8x16xbf16>
    %cst_14 = arith.constant dense<0.000000e+00> : vector<8x16xf32>
    %26 = tpu.matmul %25, %24, %cst_14 {dimension_numbers = #tpu.dot_dimension_numbers<[1], [1], [0], [0], [0, 0, 1, 0], [], []>} : vector<8x16xbf16>, vector<16x16xbf16>, vector<8x16xf32> -> vector<8x16xf32>
    %c0_15 = arith.constant 0 : index
    %c0_16 = arith.constant 0 : index
    %c0_17 = arith.constant 0 : index
    %27 = vector.load %arg12[%c0_15, %c0_16, %c0_17] : memref<4x8x1xf32, #tpu.memory_space<vmem>>, vector<1x8x1xf32>
    %28 = vector.shape_cast %27 : vector<1x8x1xf32> to vector<8x1xf32>
    %cst_18 = arith.constant dense<0xFF800000> : vector<8xf32>
    %29 = vector.multi_reduction <maximumf>, %26, %cst_18 [1] : vector<8x16xf32> to vector<8xf32>
    %30 = vector.shape_cast %29 : vector<8xf32> to vector<8x1xf32>
    %31 = arith.maximumf %28, %30 : vector<8x1xf32>
    %32 = arith.subf %28, %31 : vector<8x1xf32>
    %33 = math.exp %32 : vector<8x1xf32>
    %34 = vector.broadcast %31 : vector<8x1xf32> to vector<8x16xf32>
    %35 = arith.subf %26, %34 : vector<8x16xf32>
    %36 = math.exp %35 : vector<8x16xf32>
    %c0_19 = arith.constant 0 : index
    %c0_20 = arith.constant 0 : index
    %c0_21 = arith.constant 0 : index
    %37 = vector.load %arg13[%c0_19, %c0_20, %c0_21] : memref<4x8x1xf32, #tpu.memory_space<vmem>>, vector<1x8x1xf32>
    %38 = vector.shape_cast %37 : vector<1x8x1xf32> to vector<8x1xf32>
    %39 = arith.mulf %33, %38 : vector<8x1xf32>
    %cst_22 = arith.constant dense<0.000000e+00> : vector<8xf32>
    %40 = vector.multi_reduction <add>, %36, %cst_22 [1] : vector<8x16xf32> to vector<8xf32>
    %41 = vector.shape_cast %40 : vector<8xf32> to vector<8x1xf32>
    %42 = arith.addf %39, %41 : vector<8x1xf32>
    %c0_23 = arith.constant 0 : index
    %c0_24 = arith.constant 0 : index
    %c0_25 = arith.constant 0 : index
    %43 = vector.load %arg13[%c0_23, %c0_24, %c0_25] : memref<4x8x1xf32, #tpu.memory_space<vmem>>, vector<1x8x1xf32>
    %44 = vector.shape_cast %43 : vector<1x8x1xf32> to vector<8x1xf32>
    %45 = vector.shape_cast %42 : vector<8x1xf32> to vector<1x8x1xf32>
    tpu.vector_store %arg13[%c0_23, %c0_24, %c0_25], %45 {strides = array<i32>} : memref<4x8x1xf32, #tpu.memory_space<vmem>>, vector<1x8x1xf32>,
    %c0_26 = arith.constant 0 : index
    %c0_27 = arith.constant 0 : index
    %46 = vector.load %arg14[%c0_26, %c0_27] : memref<8x64xf32, #tpu.memory_space<vmem>>, vector<8x16xf32>
    %47 = vector.broadcast %33 : vector<8x1xf32> to vector<8x16xf32>
    %48 = arith.mulf %47, %46 : vector<8x16xf32>
    %49 = arith.truncf %36 : vector<8x16xf32> to vector<8x16xbf16>
    %50 = vector.extract_strided_slice %7 {offsets = [0, 0], sizes = [16, 16], strides = [1, 1]} : vector<16x64xbf16> to vector<16x16xbf16>
    %cst_28 = arith.constant dense<0.000000e+00> : vector<8x16xf32>
    %51 = tpu.matmul %49, %50, %cst_28 {dimension_numbers = #tpu.dot_dimension_numbers<[1], [0], [0], [1], [0, 0, 1, 1], [], []>} : vector<8x16xbf16>, vector<16x16xbf16>, vector<8x16xf32> -> vector<8x16xf32>
    %52 = arith.addf %48, %51 : vector<8x16xf32>
    %c0_29 = arith.constant 0 : index
    %c0_30 = arith.constant 0 : index
    %53 = vector.load %arg14[%c0_29, %c0_30] : memref<8x64xf32, #tpu.memory_space<vmem>>, vector<8x16xf32>
    tpu.vector_store %arg14[%c0_29, %c0_30], %52 {strides = array<i32>} : memref<8x64xf32, #tpu.memory_space<vmem>>, vector<8x16xf32>,
    %c0_31 = arith.constant 0 : index
    %c0_32 = arith.constant 0 : index
    %c0_33 = arith.constant 0 : index
    %54 = vector.load %arg12[%c0_31, %c0_32, %c0_33] : memref<4x8x1xf32, #tpu.memory_space<vmem>>, vector<1x8x1xf32>
    %55 = vector.shape_cast %54 : vector<1x8x1xf32> to vector<8x1xf32>
    %56 = vector.shape_cast %31 : vector<8x1xf32> to vector<1x8x1xf32>
    tpu.vector_store %arg12[%c0_31, %c0_32, %c0_33], %56 {strides = array<i32>} : memref<4x8x1xf32, #tpu.memory_space<vmem>>, vector<1x8x1xf32>,
    %57 = vector.extract_strided_slice %5 {offsets = [0, 16], sizes = [16, 16], strides = [1, 1]} : vector<16x64xf32> to vector<16x16xf32>
    %58 = vector.extract_strided_slice %57 {offsets = [0, 0], sizes = [16, 8], strides = [1, 1]} : vector<16x16xf32> to vector<16x8xf32>
    %59 = vector.extract_strided_slice %58 {offsets = [0, 4], sizes = [16, 4], strides = [1, 1]} : vector<16x8xf32> to vector<16x4xf32>
    %cst_34 = arith.constant 0.000000e+00 : f32
    %60 = vector.broadcast %cst_34 : f32 to vector<16x4xf32>
    %61 = arith.subf %60, %59 : vector<16x4xf32>
    %62 = vector.extract_strided_slice %58 {offsets = [0, 0], sizes = [16, 4], strides = [1, 1]} : vector<16x8xf32> to vector<16x4xf32>
    %63 = tpu.concatenate %61, %62 in 1 : vector<16x4xf32>, vector<16x4xf32> -> vector<16x8xf32>
    %64 = arith.mulf %58, %11 : vector<16x8xf32>
    %65 = arith.mulf %63, %9 : vector<16x8xf32>
    %66 = arith.addf %64, %65 : vector<16x8xf32>
    %67 = vector.extract_strided_slice %57 {offsets = [0, 8], sizes = [16, 8], strides = [1, 1]} : vector<16x16xf32> to vector<16x8xf32>
    %68 = tpu.concatenate %66, %67 in 1 : vector<16x8xf32>, vector<16x8xf32> -> vector<16x16xf32>
    %69 = arith.truncf %68 : vector<16x16xf32> to vector<16x16xbf16>
    %c0_35 = arith.constant 0 : index
    %c16 = arith.constant 16 : index
    %70 = vector.load %arg11[%c0_35, %c16] : memref<8x64xbf16, #tpu.memory_space<vmem>>, vector<8x16xbf16>
    %cst_36 = arith.constant dense<0.000000e+00> : vector<8x16xf32>
    %71 = tpu.matmul %70, %69, %cst_36 {dimension_numbers = #tpu.dot_dimension_numbers<[1], [1], [0], [0], [0, 0, 1, 0], [], []>} : vector<8x16xbf16>, vector<16x16xbf16>, vector<8x16xf32> -> vector<8x16xf32>
    %c1 = arith.constant 1 : index
    %c0_37 = arith.constant 0 : index
    %c0_38 = arith.constant 0 : index
    %72 = vector.load %arg12[%c1, %c0_37, %c0_38] : memref<4x8x1xf32, #tpu.memory_space<vmem>>, vector<1x8x1xf32>
    %73 = vector.shape_cast %72 : vector<1x8x1xf32> to vector<8x1xf32>
    %cst_39 = arith.constant dense<0xFF800000> : vector<8xf32>
    %74 = vector.multi_reduction <maximumf>, %71, %cst_39 [1] : vector<8x16xf32> to vector<8xf32>
    %75 = vector.shape_cast %74 : vector<8xf32> to vector<8x1xf32>
    %76 = arith.maximumf %73, %75 : vector<8x1xf32>
    %77 = arith.subf %73, %76 : vector<8x1xf32>
    %78 = math.exp %77 : vector<8x1xf32>
    %79 = vector.broadcast %76 : vector<8x1xf32> to vector<8x16xf32>
    %80 = arith.subf %71, %79 : vector<8x16xf32>
    %81 = math.exp %80 : vector<8x16xf32>
    %c1_40 = arith.constant 1 : index
    %c0_41 = arith.constant 0 : index
    %c0_42 = arith.constant 0 : index
    %82 = vector.load %arg13[%c1_40, %c0_41, %c0_42] : memref<4x8x1xf32, #tpu.memory_space<vmem>>, vector<1x8x1xf32>
    %83 = vector.shape_cast %82 : vector<1x8x1xf32> to vector<8x1xf32>
    %84 = arith.mulf %78, %83 : vector<8x1xf32>
    %cst_43 = arith.constant dense<0.000000e+00> : vector<8xf32>
    %85 = vector.multi_reduction <add>, %81, %cst_43 [1] : vector<8x16xf32> to vector<8xf32>
    %86 = vector.shape_cast %85 : vector<8xf32> to vector<8x1xf32>
    %87 = arith.addf %84, %86 : vector<8x1xf32>
    %c1_44 = arith.constant 1 : index
    %c0_45 = arith.constant 0 : index
    %c0_46 = arith.constant 0 : index
    %88 = vector.load %arg13[%c1_44, %c0_45, %c0_46] : memref<4x8x1xf32, #tpu.memory_space<vmem>>, vector<1x8x1xf32>
    %89 = vector.shape_cast %88 : vector<1x8x1xf32> to vector<8x1xf32>
    %90 = vector.shape_cast %87 : vector<8x1xf32> to vector<1x8x1xf32>
    tpu.vector_store %arg13[%c1_44, %c0_45, %c0_46], %90 {strides = array<i32>} : memref<4x8x1xf32, #tpu.memory_space<vmem>>, vector<1x8x1xf32>,
    %c0_47 = arith.constant 0 : index
    %c16_48 = arith.constant 16 : index
    %91 = vector.load %arg14[%c0_47, %c16_48] : memref<8x64xf32, #tpu.memory_space<vmem>>, vector<8x16xf32>
    %92 = vector.broadcast %78 : vector<8x1xf32> to vector<8x16xf32>
    %93 = arith.mulf %92, %91 : vector<8x16xf32>
    %94 = arith.truncf %81 : vector<8x16xf32> to vector<8x16xbf16>
    %95 = vector.extract_strided_slice %7 {offsets = [0, 16], sizes = [16, 16], strides = [1, 1]} : vector<16x64xbf16> to vector<16x16xbf16>
    %cst_49 = arith.constant dense<0.000000e+00> : vector<8x16xf32>
    %96 = tpu.matmul %94, %95, %cst_49 {dimension_numbers = #tpu.dot_dimension_numbers<[1], [0], [0], [1], [0, 0, 1, 1], [], []>} : vector<8x16xbf16>, vector<16x16xbf16>, vector<8x16xf32> -> vector<8x16xf32>
    %97 = arith.addf %93, %96 : vector<8x16xf32>
    %c0_50 = arith.constant 0 : index
    %c16_51 = arith.constant 16 : index
    %98 = vector.load %arg14[%c0_50, %c16_51] : memref<8x64xf32, #tpu.memory_space<vmem>>, vector<8x16xf32>
    tpu.vector_store %arg14[%c0_50, %c16_51], %97 {strides = array<i32>} : memref<8x64xf32, #tpu.memory_space<vmem>>, vector<8x16xf32>,
    %c1_52 = arith.constant 1 : index
    %c0_53 = arith.constant 0 : index
    %c0_54 = arith.constant 0 : index
    %99 = vector.load %arg12[%c1_52, %c0_53, %c0_54] : memref<4x8x1xf32, #tpu.memory_space<vmem>>, vector<1x8x1xf32>
    %100 = vector.shape_cast %99 : vector<1x8x1xf32> to vector<8x1xf32>
    %101 = vector.shape_cast %76 : vector<8x1xf32> to vector<1x8x1xf32>
    tpu.vector_store %arg12[%c1_52, %c0_53, %c0_54], %101 {strides = array<i32>} : memref<4x8x1xf32, #tpu.memory_space<vmem>>, vector<1x8x1xf32>,
    %102 = vector.extract_strided_slice %5 {offsets = [0, 32], sizes = [16, 16], strides = [1, 1]} : vector<16x64xf32> to vector<16x16xf32>
    %103 = vector.extract_strided_slice %102 {offsets = [0, 0], sizes = [16, 8], strides = [1, 1]} : vector<16x16xf32> to vector<16x8xf32>
    %104 = vector.extract_strided_slice %103 {offsets = [0, 4], sizes = [16, 4], strides = [1, 1]} : vector<16x8xf32> to vector<16x4xf32>
    %cst_55 = arith.constant 0.000000e+00 : f32
    %105 = vector.broadcast %cst_55 : f32 to vector<16x4xf32>
    %106 = arith.subf %105, %104 : vector<16x4xf32>
    %107 = vector.extract_strided_slice %103 {offsets = [0, 0], sizes = [16, 4], strides = [1, 1]} : vector<16x8xf32> to vector<16x4xf32>
    %108 = tpu.concatenate %106, %107 in 1 : vector<16x4xf32>, vector<16x4xf32> -> vector<16x8xf32>
    %109 = arith.mulf %103, %11 : vector<16x8xf32>
    %110 = arith.mulf %108, %9 : vector<16x8xf32>
    %111 = arith.addf %109, %110 : vector<16x8xf32>
    %112 = vector.extract_strided_slice %102 {offsets = [0, 8], sizes = [16, 8], strides = [1, 1]} : vector<16x16xf32> to vector<16x8xf32>
    %113 = tpu.concatenate %111, %112 in 1 : vector<16x8xf32>, vector<16x8xf32> -> vector<16x16xf32>
    %114 = arith.truncf %113 : vector<16x16xf32> to vector<16x16xbf16>
    %c0_56 = arith.constant 0 : index
    %c32 = arith.constant 32 : index
    %115 = vector.load %arg11[%c0_56, %c32] : memref<8x64xbf16, #tpu.memory_space<vmem>>, vector<8x16xbf16>
    %cst_57 = arith.constant dense<0.000000e+00> : vector<8x16xf32>
    %116 = tpu.matmul %115, %114, %cst_57 {dimension_numbers = #tpu.dot_dimension_numbers<[1], [1], [0], [0], [0, 0, 1, 0], [], []>} : vector<8x16xbf16>, vector<16x16xbf16>, vector<8x16xf32> -> vector<8x16xf32>
    %c2 = arith.constant 2 : index
    %c0_58 = arith.constant 0 : index
    %c0_59 = arith.constant 0 : index
    %117 = vector.load %arg12[%c2, %c0_58, %c0_59] : memref<4x8x1xf32, #tpu.memory_space<vmem>>, vector<1x8x1xf32>
    %118 = vector.shape_cast %117 : vector<1x8x1xf32> to vector<8x1xf32>
    %cst_60 = arith.constant dense<0xFF800000> : vector<8xf32>
    %119 = vector.multi_reduction <maximumf>, %116, %cst_60 [1] : vector<8x16xf32> to vector<8xf32>
    %120 = vector.shape_cast %119 : vector<8xf32> to vector<8x1xf32>
    %121 = arith.maximumf %118, %120 : vector<8x1xf32>
    %122 = arith.subf %118, %121 : vector<8x1xf32>
    %123 = math.exp %122 : vector<8x1xf32>
    %124 = vector.broadcast %121 : vector<8x1xf32> to vector<8x16xf32>
    %125 = arith.subf %116, %124 : vector<8x16xf32>
    %126 = math.exp %125 : vector<8x16xf32>
    %c2_61 = arith.constant 2 : index
    %c0_62 = arith.constant 0 : index
    %c0_63 = arith.constant 0 : index
    %127 = vector.load %arg13[%c2_61, %c0_62, %c0_63] : memref<4x8x1xf32, #tpu.memory_space<vmem>>, vector<1x8x1xf32>
    %128 = vector.shape_cast %127 : vector<1x8x1xf32> to vector<8x1xf32>
    %129 = arith.mulf %123, %128 : vector<8x1xf32>
    %cst_64 = arith.constant dense<0.000000e+00> : vector<8xf32>
    %130 = vector.multi_reduction <add>, %126, %cst_64 [1] : vector<8x16xf32> to vector<8xf32>
    %131 = vector.shape_cast %130 : vector<8xf32> to vector<8x1xf32>
    %132 = arith.addf %129, %131 : vector<8x1xf32>
    %c2_65 = arith.constant 2 : index
    %c0_66 = arith.constant 0 : index
    %c0_67 = arith.constant 0 : index
    %133 = vector.load %arg13[%c2_65, %c0_66, %c0_67] : memref<4x8x1xf32, #tpu.memory_space<vmem>>, vector<1x8x1xf32>
    %134 = vector.shape_cast %133 : vector<1x8x1xf32> to vector<8x1xf32>
    %135 = vector.shape_cast %132 : vector<8x1xf32> to vector<1x8x1xf32>
    tpu.vector_store %arg13[%c2_65, %c0_66, %c0_67], %135 {strides = array<i32>} : memref<4x8x1xf32, #tpu.memory_space<vmem>>, vector<1x8x1xf32>,
    %c0_68 = arith.constant 0 : index
    %c32_69 = arith.constant 32 : index
    %136 = vector.load %arg14[%c0_68, %c32_69] : memref<8x64xf32, #tpu.memory_space<vmem>>, vector<8x16xf32>
    %137 = vector.broadcast %123 : vector<8x1xf32> to vector<8x16xf32>
    %138 = arith.mulf %137, %136 : vector<8x16xf32>
    %139 = arith.truncf %126 : vector<8x16xf32> to vector<8x16xbf16>
    %140 = vector.extract_strided_slice %7 {offsets = [0, 32], sizes = [16, 16], strides = [1, 1]} : vector<16x64xbf16> to vector<16x16xbf16>
    %cst_70 = arith.constant dense<0.000000e+00> : vector<8x16xf32>
    %141 = tpu.matmul %139, %140, %cst_70 {dimension_numbers = #tpu.dot_dimension_numbers<[1], [0], [0], [1], [0, 0, 1, 1], [], []>} : vector<8x16xbf16>, vector<16x16xbf16>, vector<8x16xf32> -> vector<8x16xf32>
    %142 = arith.addf %138, %141 : vector<8x16xf32>
    %c0_71 = arith.constant 0 : index
    %c32_72 = arith.constant 32 : index
    %143 = vector.load %arg14[%c0_71, %c32_72] : memref<8x64xf32, #tpu.memory_space<vmem>>, vector<8x16xf32>
    tpu.vector_store %arg14[%c0_71, %c32_72], %142 {strides = array<i32>} : memref<8x64xf32, #tpu.memory_space<vmem>>, vector<8x16xf32>,
    %c2_73 = arith.constant 2 : index
    %c0_74 = arith.constant 0 : index
    %c0_75 = arith.constant 0 : index
    %144 = vector.load %arg12[%c2_73, %c0_74, %c0_75] : memref<4x8x1xf32, #tpu.memory_space<vmem>>, vector<1x8x1xf32>
    %145 = vector.shape_cast %144 : vector<1x8x1xf32> to vector<8x1xf32>
    %146 = vector.shape_cast %121 : vector<8x1xf32> to vector<1x8x1xf32>
    tpu.vector_store %arg12[%c2_73, %c0_74, %c0_75], %146 {strides = array<i32>} : memref<4x8x1xf32, #tpu.memory_space<vmem>>, vector<1x8x1xf32>,
    %147 = vector.extract_strided_slice %5 {offsets = [0, 48], sizes = [16, 16], strides = [1, 1]} : vector<16x64xf32> to vector<16x16xf32>
    %148 = vector.extract_strided_slice %147 {offsets = [0, 0], sizes = [16, 8], strides = [1, 1]} : vector<16x16xf32> to vector<16x8xf32>
    %149 = vector.extract_strided_slice %148 {offsets = [0, 4], sizes = [16, 4], strides = [1, 1]} : vector<16x8xf32> to vector<16x4xf32>
    %cst_76 = arith.constant 0.000000e+00 : f32
    %150 = vector.broadcast %cst_76 : f32 to vector<16x4xf32>
    %151 = arith.subf %150, %149 : vector<16x4xf32>
    %152 = vector.extract_strided_slice %148 {offsets = [0, 0], sizes = [16, 4], strides = [1, 1]} : vector<16x8xf32> to vector<16x4xf32>
    %153 = tpu.concatenate %151, %152 in 1 : vector<16x4xf32>, vector<16x4xf32> -> vector<16x8xf32>
    %154 = arith.mulf %148, %11 : vector<16x8xf32>
    %155 = arith.mulf %153, %9 : vector<16x8xf32>
    %156 = arith.addf %154, %155 : vector<16x8xf32>
    %157 = vector.extract_strided_slice %147 {offsets = [0, 8], sizes = [16, 8], strides = [1, 1]} : vector<16x16xf32> to vector<16x8xf32>
    %158 = tpu.concatenate %156, %157 in 1 : vector<16x8xf32>, vector<16x8xf32> -> vector<16x16xf32>
    %159 = arith.truncf %158 : vector<16x16xf32> to vector<16x16xbf16>
    %c0_77 = arith.constant 0 : index
    %c48 = arith.constant 48 : index
    %160 = vector.load %arg11[%c0_77, %c48] : memref<8x64xbf16, #tpu.memory_space<vmem>>, vector<8x16xbf16>
    %cst_78 = arith.constant dense<0.000000e+00> : vector<8x16xf32>
    %161 = tpu.matmul %160, %159, %cst_78 {dimension_numbers = #tpu.dot_dimension_numbers<[1], [1], [0], [0], [0, 0, 1, 0], [], []>} : vector<8x16xbf16>, vector<16x16xbf16>, vector<8x16xf32> -> vector<8x16xf32>
    %c3 = arith.constant 3 : index
    %c0_79 = arith.constant 0 : index
    %c0_80 = arith.constant 0 : index
    %162 = vector.load %arg12[%c3, %c0_79, %c0_80] : memref<4x8x1xf32, #tpu.memory_space<vmem>>, vector<1x8x1xf32>
    %163 = vector.shape_cast %162 : vector<1x8x1xf32> to vector<8x1xf32>
    %cst_81 = arith.constant dense<0xFF800000> : vector<8xf32>
    %164 = vector.multi_reduction <maximumf>, %161, %cst_81 [1] : vector<8x16xf32> to vector<8xf32>
    %165 = vector.shape_cast %164 : vector<8xf32> to vector<8x1xf32>
    %166 = arith.maximumf %163, %165 : vector<8x1xf32>
    %167 = arith.subf %163, %166 : vector<8x1xf32>
    %168 = math.exp %167 : vector<8x1xf32>
    %169 = vector.broadcast %166 : vector<8x1xf32> to vector<8x16xf32>
    %170 = arith.subf %161, %169 : vector<8x16xf32>
    %171 = math.exp %170 : vector<8x16xf32>
    %c3_82 = arith.constant 3 : index
    %c0_83 = arith.constant 0 : index
    %c0_84 = arith.constant 0 : index
    %172 = vector.load %arg13[%c3_82, %c0_83, %c0_84] : memref<4x8x1xf32, #tpu.memory_space<vmem>>, vector<1x8x1xf32>
    %173 = vector.shape_cast %172 : vector<1x8x1xf32> to vector<8x1xf32>
    %174 = arith.mulf %168, %173 : vector<8x1xf32>
    %cst_85 = arith.constant dense<0.000000e+00> : vector<8xf32>
    %175 = vector.multi_reduction <add>, %171, %cst_85 [1] : vector<8x16xf32> to vector<8xf32>
    %176 = vector.shape_cast %175 : vector<8xf32> to vector<8x1xf32>
    %177 = arith.addf %174, %176 : vector<8x1xf32>
    %c3_86 = arith.constant 3 : index
    %c0_87 = arith.constant 0 : index
    %c0_88 = arith.constant 0 : index
    %178 = vector.load %arg13[%c3_86, %c0_87, %c0_88] : memref<4x8x1xf32, #tpu.memory_space<vmem>>, vector<1x8x1xf32>
    %179 = vector.shape_cast %178 : vector<1x8x1xf32> to vector<8x1xf32>
    %180 = vector.shape_cast %177 : vector<8x1xf32> to vector<1x8x1xf32>
    tpu.vector_store %arg13[%c3_86, %c0_87, %c0_88], %180 {strides = array<i32>} : memref<4x8x1xf32, #tpu.memory_space<vmem>>, vector<1x8x1xf32>,
    %c0_89 = arith.constant 0 : index
    %c48_90 = arith.constant 48 : index
    %181 = vector.load %arg14[%c0_89, %c48_90] : memref<8x64xf32, #tpu.memory_space<vmem>>, vector<8x16xf32>
    %182 = vector.broadcast %168 : vector<8x1xf32> to vector<8x16xf32>
    %183 = arith.mulf %182, %181 : vector<8x16xf32>
    %184 = arith.truncf %171 : vector<8x16xf32> to vector<8x16xbf16>
    %185 = vector.extract_strided_slice %7 {offsets = [0, 48], sizes = [16, 16], strides = [1, 1]} : vector<16x64xbf16> to vector<16x16xbf16>
    %cst_91 = arith.constant dense<0.000000e+00> : vector<8x16xf32>
    %186 = tpu.matmul %184, %185, %cst_91 {dimension_numbers = #tpu.dot_dimension_numbers<[1], [0], [0], [1], [0, 0, 1, 1], [], []>} : vector<8x16xbf16>, vector<16x16xbf16>, vector<8x16xf32> -> vector<8x16xf32>
    %187 = arith.addf %183, %186 : vector<8x16xf32>
    %c0_92 = arith.constant 0 : index
    %c48_93 = arith.constant 48 : index
    %188 = vector.load %arg14[%c0_92, %c48_93] : memref<8x64xf32, #tpu.memory_space<vmem>>, vector<8x16xf32>
    tpu.vector_store %arg14[%c0_92, %c48_93], %187 {strides = array<i32>} : memref<8x64xf32, #tpu.memory_space<vmem>>, vector<8x16xf32>,
    %c3_94 = arith.constant 3 : index
    %c0_95 = arith.constant 0 : index
    %c0_96 = arith.constant 0 : index
    %189 = vector.load %arg12[%c3_94, %c0_95, %c0_96] : memref<4x8x1xf32, #tpu.memory_space<vmem>>, vector<1x8x1xf32>
    %190 = vector.shape_cast %189 : vector<1x8x1xf32> to vector<8x1xf32>
    %191 = vector.shape_cast %166 : vector<8x1xf32> to vector<1x8x1xf32>
    tpu.vector_store %arg12[%c3_94, %c0_95, %c0_96], %191 {strides = array<i32>} : memref<4x8x1xf32, #tpu.memory_space<vmem>>, vector<1x8x1xf32>,
    %c0_i32_97 = arith.constant 0 : i32
    %192 = arith.cmpi eq, %arg2, %c0_i32_97 : i32
    %193 = arith.extui %192 : i1 to i32
    %c0_i32_98 = arith.constant 0 : i32
    %194 = arith.cmpi ne, %193, %c0_i32_98 : i32
    scf.if %194 {
      %c0_99 = arith.constant 0 : index
      %c0_100 = arith.constant 0 : index
      %195 = vector.load %arg14[%c0_99, %c0_100] : memref<8x64xf32, #tpu.memory_space<vmem>>, vector<8x16xf32>
      %c0_101 = arith.constant 0 : index
      %c0_102 = arith.constant 0 : index
      %c0_103 = arith.constant 0 : index
      %196 = vector.load %arg13[%c0_101, %c0_102, %c0_103] : memref<4x8x1xf32, #tpu.memory_space<vmem>>, vector<1x8x1xf32>
      %197 = vector.shape_cast %196 : vector<1x8x1xf32> to vector<8x1xf32>
      %198 = vector.broadcast %197 : vector<8x1xf32> to vector<8x16xf32>
      %199 = arith.divf %195, %198 : vector<8x16xf32>
      %200 = arith.truncf %199 : vector<8x16xf32> to vector<8x16xbf16>
      %c0_104 = arith.constant 0 : index
      %c16_105 = arith.constant 16 : index
      %201 = vector.load %arg14[%c0_104, %c16_105] : memref<8x64xf32, #tpu.memory_space<vmem>>, vector<8x16xf32>
      %c1_106 = arith.constant 1 : index
      %c0_107 = arith.constant 0 : index
      %c0_108 = arith.constant 0 : index
      %202 = vector.load %arg13[%c1_106, %c0_107, %c0_108] : memref<4x8x1xf32, #tpu.memory_space<vmem>>, vector<1x8x1xf32>
      %203 = vector.shape_cast %202 : vector<1x8x1xf32> to vector<8x1xf32>
      %204 = vector.broadcast %203 : vector<8x1xf32> to vector<8x16xf32>
      %205 = arith.divf %201, %204 : vector<8x16xf32>
      %206 = arith.truncf %205 : vector<8x16xf32> to vector<8x16xbf16>
      %c0_109 = arith.constant 0 : index
      %c32_110 = arith.constant 32 : index
      %207 = vector.load %arg14[%c0_109, %c32_110] : memref<8x64xf32, #tpu.memory_space<vmem>>, vector<8x16xf32>
      %c2_111 = arith.constant 2 : index
      %c0_112 = arith.constant 0 : index
      %c0_113 = arith.constant 0 : index
      %208 = vector.load %arg13[%c2_111, %c0_112, %c0_113] : memref<4x8x1xf32, #tpu.memory_space<vmem>>, vector<1x8x1xf32>
      %209 = vector.shape_cast %208 : vector<1x8x1xf32> to vector<8x1xf32>
      %210 = vector.broadcast %209 : vector<8x1xf32> to vector<8x16xf32>
      %211 = arith.divf %207, %210 : vector<8x16xf32>
      %212 = arith.truncf %211 : vector<8x16xf32> to vector<8x16xbf16>
      %c0_114 = arith.constant 0 : index
      %c48_115 = arith.constant 48 : index
      %213 = vector.load %arg14[%c0_114, %c48_115] : memref<8x64xf32, #tpu.memory_space<vmem>>, vector<8x16xf32>
      %c3_116 = arith.constant 3 : index
      %c0_117 = arith.constant 0 : index
      %c0_118 = arith.constant 0 : index
      %214 = vector.load %arg13[%c3_116, %c0_117, %c0_118] : memref<4x8x1xf32, #tpu.memory_space<vmem>>, vector<1x8x1xf32>
      %215 = vector.shape_cast %214 : vector<1x8x1xf32> to vector<8x1xf32>
      %216 = vector.broadcast %215 : vector<8x1xf32> to vector<8x16xf32>
      %217 = arith.divf %213, %216 : vector<8x16xf32>
      %218 = arith.truncf %217 : vector<8x16xf32> to vector<8x16xbf16>
      %219 = tpu.concatenate %200, %206, %212, %218 in 1 : vector<8x16xbf16>, vector<8x16xbf16>, vector<8x16xbf16>, vector<8x16xbf16> -> vector<8x64xbf16>
      %c0_119 = arith.constant 0 : index
      %c0_120 = arith.constant 0 : index
      %c0_121 = arith.constant 0 : index
      %220 = vector.load %arg10[%c0_119, %c0_120, %c0_121] : memref<1x8x64xbf16, #tpu.memory_space<vmem>>, vector<1x8x64xbf16>
      %221 = vector.shape_cast %220 : vector<1x8x64xbf16> to vector<8x64xbf16>
      %222 = vector.shape_cast %219 : vector<8x64xbf16> to vector<1x8x64xbf16>
      tpu.vector_store %arg10[%c0_119, %c0_120, %c0_121], %222 {strides = array<i32>} : memref<1x8x64xbf16, #tpu.memory_space<vmem>>, vector<1x8x64xbf16>,
    } else {
    }
    return
  }
  func.func @transform_0(%arg0: i32, %arg1: i32, %arg2: i32) -> (i32, i32, i32) {
    %c0_i32 = arith.constant 0 : i32
    %c0_i32_0 = arith.constant 0 : i32
    return %arg0, %arg1, %c0_i32 : i32, i32, i32
  }
  func.func @transform_1(%arg0: i32, %arg1: i32, %arg2: i32) -> (i32, i32, i32) {
    %c0_i32 = arith.constant 0 : i32
    %c0_i32_0 = arith.constant 0 : i32
    return %arg0, %arg1, %c0_i32 : i32, i32, i32
  }
  func.func @transform_2(%arg0: i32, %arg1: i32, %arg2: i32) -> (i32, i32, i32) {
    %c0_i32 = arith.constant 0 : i32
    %c0_i32_0 = arith.constant 0 : i32
    return %arg0, %arg1, %c0_i32 : i32, i32, i32
  }
  func.func @transform_3(%arg0: i32, %arg1: i32, %arg2: i32) -> (i32, i32, i32) {
    %c0_i32 = arith.constant 0 : i32
    %c0_i32_0 = arith.constant 0 : i32
    return %arg0, %arg2, %c0_i32 : i32, i32, i32
  }
  func.func @transform_4(%arg0: i32, %arg1: i32, %arg2: i32) -> (i32, i32, i32) {
    %c0_i32 = arith.constant 0 : i32
    %c0_i32_0 = arith.constant 0 : i32
    return %arg0, %arg2, %c0_i32 : i32, i32, i32
  }
  func.func @transform_5(%arg0: i32, %arg1: i32, %arg2: i32) -> (i32, i32, i32) {
    %c0_i32 = arith.constant 0 : i32
    %c0_i32_0 = arith.constant 0 : i32
    return %arg0, %arg2, %c0_i32 : i32, i32, i32
  }
  func.func @transform_6(%arg0: i32, %arg1: i32, %arg2: i32) -> (i32, i32, i32) {
    %c0_i32 = arith.constant 0 : i32
    %c0_i32_0 = arith.constant 0 : i32
    return %arg0, %arg2, %c0_i32 : i32, i32, i32
  }
  func.func @transform_7(%arg0: i32, %arg1: i32, %arg2: i32) -> (i32, i32, i32) {
    %c0_i32 = arith.constant 0 : i32
    %c0_i32_0 = arith.constant 0 : i32
    return %arg0, %arg1, %c0_i32 : i32, i32, i32
  }
}

module attributes {stable_mosaic.version = 11 : i64} {
  func.func @kernel(%arg0: i32, %arg1: i32, %arg2: memref<16x64xbf16, #tpu.memory_space<vmem>>, %arg3: memref<64x32xbf16, #tpu.memory_space<vmem>>, %arg4: memref<1x32xf32, #tpu.memory_space<vmem>>, %arg5: memref<16x32xf32, #tpu.memory_space<vmem>>) attributes {dimension_semantics = [#tpu.dimension_semantics<parallel>, #tpu.dimension_semantics<parallel>], iteration_bounds = array<i64: 1, 1>, scalar_prefetch = 0 : i64, scratch_operands = 0 : i64, tpu.core_type = #tpu.core_type<tc>, window_params = [{transform_indices = @transform_0, window_bounds = array<i64: 16, 64>}, {transform_indices = @transform_1, window_bounds = array<i64: 64, 32>}, {transform_indices = @transform_2, window_bounds = array<i64: 1, 32>}, {transform_indices = @transform_3, window_bounds = array<i64: 16, 32>}]} {
    %c0 = arith.constant 0 : index
    %c0_0 = arith.constant 0 : index
    %0 = vector.load %arg2[%c0, %c0_0] : memref<16x64xbf16, #tpu.memory_space<vmem>>, vector<16x64xbf16>
    %c0_1 = arith.constant 0 : index
    %c0_2 = arith.constant 0 : index
    %1 = vector.load %arg3[%c0_1, %c0_2] : memref<64x32xbf16, #tpu.memory_space<vmem>>, vector<64x32xbf16>
    %cst = arith.constant dense<0.000000e+00> : vector<16x32xf32>
    %2 = tpu.matmul %0, %1, %cst {dimension_numbers = #tpu.dot_dimension_numbers<[1], [0], [0], [1], [0, 0, 1, 1], [], []>} : vector<16x64xbf16>, vector<64x32xbf16>, vector<16x32xf32> -> vector<16x32xf32>
    %c0_3 = arith.constant 0 : index
    %c0_4 = arith.constant 0 : index
    %3 = vector.load %arg4[%c0_3, %c0_4] : memref<1x32xf32, #tpu.memory_space<vmem>>, vector<1x32xf32>
    %4 = vector.broadcast %3 : vector<1x32xf32> to vector<16x32xf32>
    %5 = arith.addf %2, %4 : vector<16x32xf32>
    %c0_5 = arith.constant 0 : index
    %c0_6 = arith.constant 0 : index
    %6 = vector.load %arg5[%c0_5, %c0_6] : memref<16x32xf32, #tpu.memory_space<vmem>>, vector<16x32xf32>
    tpu.vector_store %arg5[%c0_5, %c0_6], %5 {strides = array<i32>} : memref<16x32xf32, #tpu.memory_space<vmem>>, vector<16x32xf32>,
    return
  }
  func.func @transform_0(%arg0: i32, %arg1: i32) -> (i32, i32) {
    %c0_i32 = arith.constant 0 : i32
    %c0_i32_0 = arith.constant 0 : i32
    return %arg0, %c0_i32 : i32, i32
  }
  func.func @transform_1(%arg0: i32, %arg1: i32) -> (i32, i32) {
    %c0_i32 = arith.constant 0 : i32
    %c0_i32_0 = arith.constant 0 : i32
    return %c0_i32, %arg1 : i32, i32
  }
  func.func @transform_2(%arg0: i32, %arg1: i32) -> (i32, i32) {
    %c0_i32 = arith.constant 0 : i32
    %c0_i32_0 = arith.constant 0 : i32
    return %c0_i32, %arg1 : i32, i32
  }
  func.func @transform_3(%arg0: i32, %arg1: i32) -> (i32, i32) {
    %c0_i32 = arith.constant 0 : i32
    return %arg0, %arg1 : i32, i32
  }
}

</mosaic_0001>

<llo_original>
// kernel: cross_pre_norm_forward.7
$region0: #{cross_pre_norm_forward.7}
  #allocation0 [shape = 'u32[]', space=smem, size = 0x4, offset = 0x4, fixed_abs, tag = 'smem constant byte address 0x4 - core index']
  #allocation1 [shape = 'u32[144,128]{1,0:T(1,128)}', space=vmem, size = 0x12000, scoped, tag = 'internal scratch']
  %s0 = inlined_call_operand.vmem [shape: f32[32,32], index: 0, kind: input, shape index: {}]
  %s1 = inlined_call_operand.vmem [shape: f32[1,32], index: 1, kind: input, shape index: {}]
  %s2 = inlined_call_operand.vmem [shape: f32[1,32], index: 2, kind: input, shape index: {}]
  %s3 = inlined_call_operand.vmem [shape: bf16[32,64], index: 3, kind: input, shape index: {}]
  %s4 = inlined_call_operand.vmem [shape: bf16[32,64], index: 4, kind: output, shape index: {}]
  %s5 = sld [smem:[#allocation0]]
  $region26: #{cross_pre_norm_forward.7} parent=0
    _
  %s7 = ssub.s32 1, %s5
  %s8 = scalar_select 0, %s7, %s5
  // Predicated region
  $region2: #{cross_pre_norm_forward.7} parent=0 // pred_check
    _
  $region3: #{cross_pre_norm_forward.7} parent=0 // pred_check_branch
    %10 = sbr.rel (0) target = $region5
  $region4: #{cross_pre_norm_forward.7} parent=0 // pred_region
    _
  $region5: #{cross_pre_norm_forward.7} parent=0 // pred_fallthru
    _
  // Predicated region
  $region6: #{cross_pre_norm_forward.7} parent=0 // pred_check
    _
  $region7: #{cross_pre_norm_forward.7} parent=0 // pred_check_branch
    %12 = sbr.rel (0) target = $region9
  $region8: #{cross_pre_norm_forward.7} parent=0 // pred_region
    _
  $region9: #{cross_pre_norm_forward.7} parent=0 // pred_fallthru
    _
  // Predicated region
  $region10: #{cross_pre_norm_forward.7} parent=0 // pred_check
    _
  $region11: #{cross_pre_norm_forward.7} parent=0 // pred_check_branch
    %14 = sbr.rel (0) target = $region13
  $region12: #{cross_pre_norm_forward.7} parent=0 // pred_region
    _
  $region13: #{cross_pre_norm_forward.7} parent=0 // pred_fallthru
    _
  // Predicated region
  $region14: #{cross_pre_norm_forward.7} parent=0 // pred_check
    _
  $region15: #{cross_pre_norm_forward.7} parent=0 // pred_check_branch
    %16 = sbr.rel (0) target = $region17
  $region16: #{cross_pre_norm_forward.7} parent=0 // pred_region
    _
  $region17: #{cross_pre_norm_forward.7} parent=0 // pred_fallthru
    _
  %v18 = vld [vmem:[%s0] sm:$0xff]
  %v19 = vld [vmem:[%s0 + $0x8] sm:$0xff]
  %v20 = vld [vmem:[%s0 + $0x10] sm:$0xff]
  %v21 = vld [vmem:[%s0 + $0x18] sm:$0xff]
  %vm22 = vcmask 261120
  %v23 = vsel %vm22, %v18, 0.0
  %24 = vadd.xlane.f32.xlu0 %v23
  %v25 = vpop.xlane.xlu0 %24
  %v26 = vsel %vm22, %v19, 0.0
  %27 = vadd.xlane.f32.xlu0 %v26
  %v28 = vpop.xlane.xlu0 %27
  %v29 = vsel %vm22, %v20, 0.0
  %30 = vadd.xlane.f32.xlu0 %v29
  %v31 = vpop.xlane.xlu0 %30
  %v32 = vsel %vm22, %v21, 0.0
  %33 = vadd.xlane.f32.xlu0 %v32
  %v34 = vpop.xlane.xlu0 %33
  %v35 = vrcp.pop 32.0
  %v36 = vmul.f32 %v25, %v35
  %v37 = vmul.f32 %v28, %v35
  %v38 = vmul.f32 %v31, %v35
  %v39 = vmul.f32 %v34, %v35
  %v40 = vsub.f32 %v18, %v36
  %v41 = vsub.f32 %v19, %v37
  %v42 = vsub.f32 %v20, %v38
  %v43 = vsub.f32 %v21, %v39
  %v44 = vmul.f32 %v40, %v40
  %v45 = vmul.f32 %v41, %v41
  %v46 = vmul.f32 %v42, %v42
  %v47 = vmul.f32 %v43, %v43
  %v48 = vsel %vm22, %v44, 0.0
  %49 = vadd.xlane.f32.xlu0 %v48
  %v50 = vpop.xlane.xlu0 %49
  %v51 = vsel %vm22, %v45, 0.0
  %52 = vadd.xlane.f32.xlu0 %v51
  %v53 = vpop.xlane.xlu0 %52
  %v54 = vsel %vm22, %v46, 0.0
  %55 = vadd.xlane.f32.xlu0 %v54
  %v56 = vpop.xlane.xlu0 %55
  %v57 = vsel %vm22, %v47, 0.0
  %58 = vadd.xlane.f32.xlu0 %v57
  %v59 = vpop.xlane.xlu0 %58
  %v60 = vmul.f32 %v50, %v35
  %v61 = vmul.f32 %v53, %v35
  %v62 = vmul.f32 %v56, %v35
  %v63 = vmul.f32 %v59, %v35
  %v64 = vadd.f32 %v60, 1e-05
  %v65 = vadd.f32 %v61, 1e-05
  %v66 = vadd.f32 %v62, 1e-05
  %v67 = vadd.f32 %v63, 1e-05
  %v68 = vrsqrt.pop %v64
  %v69 = vrsqrt.pop %v65
  %v70 = vrsqrt.pop %v66
  %v71 = vrsqrt.pop %v67
  %v72 = vmul.f32 %v40, %v68
  %v73 = vmul.f32 %v41, %v69
  %v74 = vmul.f32 %v42, %v70
  %v75 = vmul.f32 %v43, %v71
  %v76 = vld [vmem:[%s1] sm:$0x1]
  %v78 = vlaneseq
  %v79 = vshrl.u32 %v78, 7
  %v80 = vsub.s32 0, %v79
  %v81 = vrot.slane %v76, %v80
  %v83 = vmul.f32 %v72, %v81
  %v84 = vmul.f32 %v73, %v81
  %v85 = vmul.f32 %v74, %v81
  %v86 = vmul.f32 %v75, %v81
  %v87 = vld [vmem:[%s2] sm:$0x1]
  %v89 = vlaneseq
  %v90 = vshrl.u32 %v89, 7
  %v91 = vsub.s32 0, %v90
  %v92 = vrot.slane %v87, %v91
  %v94 = vadd.f32 %v83, %v92
  %v95 = vadd.f32 %v84, %v92
  %v96 = vadd.f32 %v85, %v92
  %v97 = vadd.f32 %v86, %v92
  %v98 = vpack.c.bf16 %v95, %v94
  %v99 = vpack.c.bf16 %v97, %v96
  %v100 = vld [vmem:[%s3] sm:$0xf]
  %v101 = vld [vmem:[%s3 + $0x4] sm:$0xf]
  %v102 = vld [vmem:[%s3 + $0x8] sm:$0xf]
  %v103 = vld [vmem:[%s3 + $0xc] sm:$0xf]
  %v108 = vunpack.c.l.b16 %v100
  %v109 = vunpack.c.l.b16 %v101
  %v110 = vunpack.c.l.b16 %v102
  %v111 = vunpack.c.l.b16 %v103
  %v112 = vpack.c.b16 %v109, %v108
  %v113 = vpack.c.b16 %v111, %v110
  %v117 = vsel %vm22, %v98, 0
  %v120 = vsel %vm22, %v99, 0
  %122 = vmatprep.subr.bf16.mxu0 0
  %123 = vmatpush1.bf16.msra.mxu0 0
  %124 = vmatprep.subr.bf16.mxu0 0
  %125 = vmatpush1.bf16.msra.mxu0 0
  %126 = vmatprep.subr.bf16.mxu0 0
  %127 = vmatpush1.bf16.msra.mxu0 0
  %128 = vmatprep.subr.bf16.mxu0 0
  %129 = vmatpush1.bf16.msra.mxu0 0
  %130 = vmatprep.subr.bf16.mxu0 0
  %131 = vmatpush1.bf16.msra.mxu0 0
  %132 = vmatprep.subr.bf16.mxu0 0
  %133 = vmatpush1.bf16.msra.mxu0 0
  %134 = vmatprep.subr.bf16.mxu0 0
  %135 = vmatpush1.bf16.msra.mxu0 %v113
  %136 = vmatprep.subr.bf16.mxu0 0
  %137 = vmatpush1.bf16.msra.mxu0 %v112
  %138 = vmatprep.subr.bf16.mxu0 0
  %139 = vmatpush2.bf16.msra.mxu0 0
  %140 = vmatprep.subr.bf16.mxu0 0
  %141 = vmatpush2.bf16.msra.mxu0 0
  %142 = vmatprep.subr.bf16.mxu0 0
  %143 = vmatpush2.bf16.msra.mxu0 0
  %144 = vmatprep.subr.bf16.mxu0 0
  %145 = vmatpush2.bf16.msra.mxu0 0
  %146 = vmatprep.subr.bf16.mxu0 0
  %147 = vmatpush2.bf16.msra.mxu0 0
  %148 = vmatprep.subr.bf16.mxu0 0
  %149 = vmatpush2.bf16.msra.mxu0 0
  %150 = vmatprep.subr.bf16.mxu0 0
  %151 = vmatpush2.bf16.msra.mxu0 0
  %152 = vmatprep.subr.bf16.mxu0 0
  %153 = vmatpush2.bf16.msra.mxu0 0
  %154 = vmatprep.mubr.bf16.mxu0 0
  %155 = vmatmul.mubr.bf16.gmra.mxu0 %v117
  %v156 = vpop.f32.mrf.mxu0
  %v157 = vadd.f32 0.0, %v156
  %v158 = vpop.f32.mrf.mxu0
  %v159 = vpop.f32.mrf.mxu0
  %v160 = vadd.f32 0.0, %v159
  %v161 = vpop.f32.mrf.mxu0
  %162 = vmatprep.mubr.bf16.mxu0 0
  %163 = vmatmul.mubr.bf16.gmra.mxu0 %v120
  %v164 = vpop.f32.mrf.mxu0
  %v165 = vadd.f32 0.0, %v164
  %v166 = vpop.f32.mrf.mxu0
  %v167 = vpop.f32.mrf.mxu0
  %v168 = vadd.f32 0.0, %v167
  %v169 = vpop.f32.mrf.mxu0
  %170 = vdwg.mxu0
  %v171 = vpack.c.bf16 %v160, %v157
  %v172 = vpack.c.bf16 %v168, %v165
  %v175 = vunpack.c.l.b16 %v171
  %v176 = vunpack.c.h.b16 %v171
  %v177 = vunpack.c.l.b16 %v172
  %v178 = vunpack.c.h.b16 %v172
  %v179 = vpack.c.b16 %v175, %v175
  %v180 = vpack.c.b16 %v176, %v176
  %v181 = vpack.c.b16 %v177, %v177
  %v182 = vpack.c.b16 %v178, %v178
  %vm187 = vcmask 519168
  %188 = vst.msk [vmem:[%s4] sm:$0xf] %vm187, %v179
  %189 = vst.msk [vmem:[%s4 + $0x4] sm:$0xf] %vm187, %v180
  %190 = vst.msk [vmem:[%s4 + $0x8] sm:$0xf] %vm187, %v181
  %191 = vst.msk [vmem:[%s4 + $0xc] sm:$0xf] %vm187, %v182
  // Predicated region
  $region18: #{cross_pre_norm_forward.7} parent=0 // pred_check
    _
  $region19: #{cross_pre_norm_forward.7} parent=0 // pred_check_branch
    %193 = sbr.rel (0) target = $region21
  $region20: #{cross_pre_norm_forward.7} parent=0 // pred_region
    _
  $region21: #{cross_pre_norm_forward.7} parent=0 // pred_fallthru
    _
  // Predicated region
  $region22: #{cross_pre_norm_forward.7} parent=0 // pred_check
    _
  $region23: #{cross_pre_norm_forward.7} parent=0 // pred_check_branch
    %195 = sbr.rel (0) target = $region25
  $region24: #{cross_pre_norm_forward.7} parent=0 // pred_region
    _
  $region25: #{cross_pre_norm_forward.7} parent=0 // pred_fallthru
    _

// kernel: cross_pre_norm_forward.5
$region0: #{cross_pre_norm_forward.5}
  #allocation0 [shape = 'u32[]', space=smem, size = 0x4, offset = 0x4, fixed_abs, tag = 'smem constant byte address 0x4 - core index']
  #allocation1 [shape = 'u32[144,128]{1,0:T(1,128)}', space=vmem, size = 0x12000, scoped, tag = 'internal scratch']
  %s0 = inlined_call_operand.vmem [shape: f32[16,32], index: 0, kind: input, shape index: {}]
  %s1 = inlined_call_operand.vmem [shape: f32[1,32], index: 1, kind: input, shape index: {}]
  %s2 = inlined_call_operand.vmem [shape: f32[1,32], index: 2, kind: input, shape index: {}]
  %s3 = inlined_call_operand.vmem [shape: bf16[32,64], index: 3, kind: input, shape index: {}]
  %s4 = inlined_call_operand.vmem [shape: bf16[16,64], index: 4, kind: output, shape index: {}]
  %s5 = sld [smem:[#allocation0]]
  $region26: #{cross_pre_norm_forward.5} parent=0
    _
  %s7 = ssub.s32 1, %s5
  %s8 = scalar_select 0, %s7, %s5
  // Predicated region
  $region2: #{cross_pre_norm_forward.5} parent=0 // pred_check
    _
  $region3: #{cross_pre_norm_forward.5} parent=0 // pred_check_branch
    %10 = sbr.rel (0) target = $region5
  $region4: #{cross_pre_norm_forward.5} parent=0 // pred_region
    _
  $region5: #{cross_pre_norm_forward.5} parent=0 // pred_fallthru
    _
  // Predicated region
  $region6: #{cross_pre_norm_forward.5} parent=0 // pred_check
    _
  $region7: #{cross_pre_norm_forward.5} parent=0 // pred_check_branch
    %12 = sbr.rel (0) target = $region9
  $region8: #{cross_pre_norm_forward.5} parent=0 // pred_region
    _
  $region9: #{cross_pre_norm_forward.5} parent=0 // pred_fallthru
    _
  // Predicated region
  $region10: #{cross_pre_norm_forward.5} parent=0 // pred_check
    _
  $region11: #{cross_pre_norm_forward.5} parent=0 // pred_check_branch
    %14 = sbr.rel (0) target = $region13
  $region12: #{cross_pre_norm_forward.5} parent=0 // pred_region
    _
  $region13: #{cross_pre_norm_forward.5} parent=0 // pred_fallthru
    _
  // Predicated region
  $region14: #{cross_pre_norm_forward.5} parent=0 // pred_check
    _
  $region15: #{cross_pre_norm_forward.5} parent=0 // pred_check_branch
    %16 = sbr.rel (0) target = $region17
  $region16: #{cross_pre_norm_forward.5} parent=0 // pred_region
    _
  $region17: #{cross_pre_norm_forward.5} parent=0 // pred_fallthru
    _
  %v18 = vld [vmem:[%s0] sm:$0xff]
  %v19 = vld [vmem:[%s0 + $0x8] sm:$0xff]
  %vm20 = vcmask 261120
  %v21 = vsel %vm20, %v18, 0.0
  %22 = vadd.xlane.f32.xlu0 %v21
  %v23 = vpop.xlane.xlu0 %22
  %v24 = vsel %vm20, %v19, 0.0
  %25 = vadd.xlane.f32.xlu0 %v24
  %v26 = vpop.xlane.xlu0 %25
  %v27 = vrcp.pop 32.0
  %v28 = vmul.f32 %v23, %v27
  %v29 = vmul.f32 %v26, %v27
  %v30 = vsub.f32 %v18, %v28
  %v31 = vsub.f32 %v19, %v29
  %v32 = vmul.f32 %v30, %v30
  %v33 = vmul.f32 %v31, %v31
  %v34 = vsel %vm20, %v32, 0.0
  %35 = vadd.xlane.f32.xlu0 %v34
  %v36 = vpop.xlane.xlu0 %35
  %v37 = vsel %vm20, %v33, 0.0
  %38 = vadd.xlane.f32.xlu0 %v37
  %v39 = vpop.xlane.xlu0 %38
  %v40 = vmul.f32 %v36, %v27
  %v41 = vmul.f32 %v39, %v27
  %v42 = vadd.f32 %v40, 1e-05
  %v43 = vadd.f32 %v41, 1e-05
  %v44 = vrsqrt.pop %v42
  %v45 = vrsqrt.pop %v43
  %v46 = vmul.f32 %v30, %v44
  %v47 = vmul.f32 %v31, %v45
  %v48 = vld [vmem:[%s1] sm:$0x1]
  %v50 = vlaneseq
  %v51 = vshrl.u32 %v50, 7
  %v52 = vsub.s32 0, %v51
  %v53 = vrot.slane %v48, %v52
  %v55 = vmul.f32 %v46, %v53
  %v56 = vmul.f32 %v47, %v53
  %v57 = vld [vmem:[%s2] sm:$0x1]
  %v59 = vlaneseq
  %v60 = vshrl.u32 %v59, 7
  %v61 = vsub.s32 0, %v60
  %v62 = vrot.slane %v57, %v61
  %v64 = vadd.f32 %v55, %v62
  %v65 = vadd.f32 %v56, %v62
  %v66 = vpack.c.bf16 %v65, %v64
  %v67 = vld [vmem:[%s3] sm:$0xf]
  %v68 = vld [vmem:[%s3 + $0x4] sm:$0xf]
  %v69 = vld [vmem:[%s3 + $0x8] sm:$0xf]
  %v70 = vld [vmem:[%s3 + $0xc] sm:$0xf]
  %v75 = vunpack.c.l.b16 %v67
  %v76 = vunpack.c.l.b16 %v68
  %v77 = vunpack.c.l.b16 %v69
  %v78 = vunpack.c.l.b16 %v70
  %v79 = vpack.c.b16 %v76, %v75
  %v80 = vpack.c.b16 %v78, %v77
  %v84 = vsel %vm20, %v66, 0
  %86 = vmatprep.subr.bf16.mxu0 0
  %87 = vmatpush1.bf16.msra.mxu0 0
  %88 = vmatprep.subr.bf16.mxu0 0
  %89 = vmatpush1.bf16.msra.mxu0 0
  %90 = vmatprep.subr.bf16.mxu0 0
  %91 = vmatpush1.bf16.msra.mxu0 0
  %92 = vmatprep.subr.bf16.mxu0 0
  %93 = vmatpush1.bf16.msra.mxu0 0
  %94 = vmatprep.subr.bf16.mxu0 0
  %95 = vmatpush1.bf16.msra.mxu0 0
  %96 = vmatprep.subr.bf16.mxu0 0
  %97 = vmatpush1.bf16.msra.mxu0 0
  %98 = vmatprep.subr.bf16.mxu0 0
  %99 = vmatpush1.bf16.msra.mxu0 %v80
  %100 = vmatprep.subr.bf16.mxu0 0
  %101 = vmatpush1.bf16.msra.mxu0 %v79
  %102 = vmatprep.subr.bf16.mxu0 0
  %103 = vmatpush2.bf16.msra.mxu0 0
  %104 = vmatprep.subr.bf16.mxu0 0
  %105 = vmatpush2.bf16.msra.mxu0 0
  %106 = vmatprep.subr.bf16.mxu0 0
  %107 = vmatpush2.bf16.msra.mxu0 0
  %108 = vmatprep.subr.bf16.mxu0 0
  %109 = vmatpush2.bf16.msra.mxu0 0
  %110 = vmatprep.subr.bf16.mxu0 0
  %111 = vmatpush2.bf16.msra.mxu0 0
  %112 = vmatprep.subr.bf16.mxu0 0
  %113 = vmatpush2.bf16.msra.mxu0 0
  %114 = vmatprep.subr.bf16.mxu0 0
  %115 = vmatpush2.bf16.msra.mxu0 0
  %116 = vmatprep.subr.bf16.mxu0 0
  %117 = vmatpush2.bf16.msra.mxu0 0
  %118 = vmatprep.mubr.bf16.mxu0 0
  %119 = vmatmul.mubr.bf16.gmra.mxu0 %v84
  %v120 = vpop.f32.mrf.mxu0
  %v121 = vadd.f32 0.0, %v120
  %v122 = vpop.f32.mrf.mxu0
  %v123 = vpop.f32.mrf.mxu0
  %v124 = vadd.f32 0.0, %v123
  %v125 = vpop.f32.mrf.mxu0
  %126 = vdwg.mxu0
  %v127 = vpack.c.bf16 %v124, %v121
  %v129 = vunpack.c.l.b16 %v127
  %v130 = vunpack.c.h.b16 %v127
  %v131 = vpack.c.b16 %v129, %v129
  %v132 = vpack.c.b16 %v130, %v130
  %vm135 = vcmask 519168
  %136 = vst.msk [vmem:[%s4] sm:$0xf] %vm135, %v131
  %137 = vst.msk [vmem:[%s4 + $0x4] sm:$0xf] %vm135, %v132
  // Predicated region
  $region18: #{cross_pre_norm_forward.5} parent=0 // pred_check
    _
  $region19: #{cross_pre_norm_forward.5} parent=0 // pred_check_branch
    %139 = sbr.rel (0) target = $region21
  $region20: #{cross_pre_norm_forward.5} parent=0 // pred_region
    _
  $region21: #{cross_pre_norm_forward.5} parent=0 // pred_fallthru
    _
  // Predicated region
  $region22: #{cross_pre_norm_forward.5} parent=0 // pred_check
    _
  $region23: #{cross_pre_norm_forward.5} parent=0 // pred_check_branch
    %141 = sbr.rel (0) target = $region25
  $region24: #{cross_pre_norm_forward.5} parent=0 // pred_region
    _
  $region25: #{cross_pre_norm_forward.5} parent=0 // pred_fallthru
    _

// kernel: cross_pre_norm_forward.9
$region0: #{cross_pre_norm_forward.9}
  #allocation0 [shape = 'u32[]', space=smem, size = 0x4, offset = 0x4, fixed_abs, tag = 'smem constant byte address 0x4 - core index']
  #allocation1 [shape = 'u32[144,128]{1,0:T(1,128)}', space=vmem, size = 0x12000, scoped, tag = 'internal scratch']
  %s0 = inlined_call_operand.vmem [shape: bf16[16,64], index: 0, kind: input, shape index: {}]
  %s1 = inlined_call_operand.vmem [shape: bf16[64,32], index: 1, kind: input, shape index: {}]
  %s2 = inlined_call_operand.vmem [shape: f32[1,32], index: 2, kind: input, shape index: {}]
  %s3 = inlined_call_operand.hbm [shape: f32[16,32], index: 3, kind: output, shape index: {}]
  %s4 = sld [smem:[#allocation0]]
  $region22: #{cross_pre_norm_forward.9} parent=0
    _
  %s6 = ssub.s32 1, %s4
  %s7 = scalar_select 0, %s6, %s4
  $region1: #{cross_pre_norm_forward.9} parent=0
    #allocation2 [shape = 'u8[8192]{0}', space=vmem, size = 0x2000, scoped, tag = 'output window, operand 0, single buffered']
    #allocation3 [shape = 's32[1]{0}', space=sflag, size = 0x4, scoped, tag = 'scoped memory for cross_pre_norm_forward.9']
    %8 = vsyncpa [#allocation3], 0
    // Predicated region
    $region2: #{cross_pre_norm_forward.9} parent=1 // pred_check
      _
    $region3: #{cross_pre_norm_forward.9} parent=1 // pred_check_branch
      %10 = sbr.rel (0) target = $region5
    $region4: #{cross_pre_norm_forward.9} parent=1 // pred_region
      _
    $region5: #{cross_pre_norm_forward.9} parent=1 // pred_fallthru
      _
    // Predicated region
    $region6: #{cross_pre_norm_forward.9} parent=1 // pred_check
      _
    $region7: #{cross_pre_norm_forward.9} parent=1 // pred_check_branch
      %12 = sbr.rel (0) target = $region9
    $region8: #{cross_pre_norm_forward.9} parent=1 // pred_region
      _
    $region9: #{cross_pre_norm_forward.9} parent=1 // pred_fallthru
      _
    // Predicated region
    $region10: #{cross_pre_norm_forward.9} parent=1 // pred_check
      _
    $region11: #{cross_pre_norm_forward.9} parent=1 // pred_check_branch
      %14 = sbr.rel (0) target = $region13
    $region12: #{cross_pre_norm_forward.9} parent=1 // pred_region
      _
    $region13: #{cross_pre_norm_forward.9} parent=1 // pred_fallthru
      _
    %v16 = vld [vmem:[%s0] sm:$0xf]
    %v17 = vld [vmem:[%s0 + $0x4] sm:$0xf]
    %v18 = vld [vmem:[%s1] sm:$0xf]
    %v19 = vld [vmem:[%s1 + $0x4] sm:$0xf]
    %v20 = vld [vmem:[%s1 + $0x8] sm:$0xf]
    %v21 = vld [vmem:[%s1 + $0xc] sm:$0xf]
    %v22 = vld [vmem:[%s1 + $0x10] sm:$0xf]
    %v23 = vld [vmem:[%s1 + $0x14] sm:$0xf]
    %v24 = vld [vmem:[%s1 + $0x18] sm:$0xf]
    %v25 = vld [vmem:[%s1 + $0x1c] sm:$0xf]
    %v26 = vld [vmem:[%s2] sm:$0x1]
    %v28 = vlaneseq
    %v29 = vshrl.u32 %v28, 7
    %v30 = vsub.s32 0, %v29
    %v31 = vrot.slane %v26, %v30
    %v35 = vunpack.c.l.b16 %v16
    %v36 = vunpack.c.l.b16 %v17
    %v37 = vpack.c.b16 %v36, %v35
    %v46 = vunpack.c.l.b16 %v18
    %v47 = vunpack.c.l.b16 %v19
    %v48 = vunpack.c.l.b16 %v20
    %v49 = vunpack.c.l.b16 %v21
    %v50 = vunpack.c.l.b16 %v22
    %v51 = vunpack.c.l.b16 %v23
    %v52 = vunpack.c.l.b16 %v24
    %v53 = vunpack.c.l.b16 %v25
    %v54 = vpack.c.b16 %v47, %v46
    %v55 = vpack.c.b16 %v49, %v48
    %v56 = vpack.c.b16 %v51, %v50
    %v57 = vpack.c.b16 %v53, %v52
    %vm62 = vcmask 523264
    %v64 = vsel %vm62, %v37, 0
    %66 = vmatprep.subr.bf16.mxu0 0
    %67 = vmatpush1.bf16.msra.mxu0 0
    %68 = vmatprep.subr.bf16.mxu0 0
    %69 = vmatpush1.bf16.msra.mxu0 0
    %70 = vmatprep.subr.bf16.mxu0 0
    %71 = vmatpush1.bf16.msra.mxu0 0
    %72 = vmatprep.subr.bf16.mxu0 0
    %73 = vmatpush1.bf16.msra.mxu0 0
    %74 = vmatprep.subr.bf16.mxu0 0
    %75 = vmatpush1.bf16.msra.mxu0 %v57
    %76 = vmatprep.subr.bf16.mxu0 0
    %77 = vmatpush1.bf16.msra.mxu0 %v56
    %78 = vmatprep.subr.bf16.mxu0 0
    %79 = vmatpush1.bf16.msra.mxu0 %v55
    %80 = vmatprep.subr.bf16.mxu0 0
    %81 = vmatpush1.bf16.msra.mxu0 %v54
    %82 = vmatprep.subr.bf16.mxu0 0
    %83 = vmatpush2.bf16.msra.mxu0 0
    %84 = vmatprep.subr.bf16.mxu0 0
    %85 = vmatpush2.bf16.msra.mxu0 0
    %86 = vmatprep.subr.bf16.mxu0 0
    %87 = vmatpush2.bf16.msra.mxu0 0
    %88 = vmatprep.subr.bf16.mxu0 0
    %89 = vmatpush2.bf16.msra.mxu0 0
    %90 = vmatprep.subr.bf16.mxu0 0
    %91 = vmatpush2.bf16.msra.mxu0 0
    %92 = vmatprep.subr.bf16.mxu0 0
    %93 = vmatpush2.bf16.msra.mxu0 0
    %94 = vmatprep.subr.bf16.mxu0 0
    %95 = vmatpush2.bf16.msra.mxu0 0
    %96 = vmatprep.subr.bf16.mxu0 0
    %97 = vmatpush2.bf16.msra.mxu0 0
    %98 = vmatprep.mubr.bf16.mxu0 0
    %99 = vmatmul.mubr.bf16.gmra.mxu0 %v64
    %v100 = vpop.f32.mrf.mxu0
    %v101 = vadd.f32 %v31, %v100
    %v102 = vpop.f32.mrf.mxu0
    %v103 = vpop.f32.mrf.mxu0
    %v104 = vadd.f32 %v31, %v103
    %v105 = vpop.f32.mrf.mxu0
    %106 = vdwg.mxu0
    %vm107 = vcmask 261120
    %108 = vst.msk [vmem:[#allocation2] sm:$0xff] %vm107, %v101
    %109 = vst.msk [vmem:[#allocation2 + $0x8] sm:$0xff] %vm107, %v104
    // Predicated region
    $region14: #{cross_pre_norm_forward.9} parent=1 // pred_check
      _
    $region15: #{cross_pre_norm_forward.9} parent=1 // pred_check_branch
      %111 = sbr.rel (0) target = $region17
    $region16: #{cross_pre_norm_forward.9} parent=1 // pred_region
      %s113 = ssub.s32 256, 256
      %114 = vsyncadd [#allocation3], %s113
      %s115 = sshll.u32 [#allocation2], 4
      %s116 = int_to_ptr.vmem [resolvable:$true] %s115
      %121 = dma.vmem_to_hbm [thread:$0]  %s116, 256, %s3, [#allocation3], 128, 128, 8
    $region17: #{cross_pre_norm_forward.9} parent=1 // pred_fallthru
      _
    // Predicated region
    $region18: #{cross_pre_norm_forward.9} parent=1 // pred_check
      _
    $region19: #{cross_pre_norm_forward.9} parent=1 // pred_check_branch
      %123 = sbr.rel (0) target = $region21
    $region20: #{cross_pre_norm_forward.9} parent=1 // pred_region
      %124 = dma.done [#allocation3], 256
    $region21: #{cross_pre_norm_forward.9} parent=1 // pred_fallthru
      _
    %125 = vsyncpa [#allocation3], 1

// kernel: cross_pre_norm_forward.8
$region0: #{cross_pre_norm_forward.8}
  #allocation0 [shape = 'u32[]', space=smem, size = 0x4, offset = 0x4, fixed_abs, tag = 'smem constant byte address 0x4 - core index']
  #allocation1 [shape = 'u32[144,128]{1,0:T(1,128)}', space=vmem, size = 0x12000, scoped, tag = 'internal scratch']
  #allocation2 [shape = 'bf16[8,64]{1,0:T(8,128)(2,1)}', space=vmem, size = 0x800, scoped, tag = 'scratch operand']
  #allocation3 [shape = 'f32[4,8,1]{2,1,0:T(8,128)}', space=vmem, size = 0x4000, scoped, tag = 'scratch operand']
  #allocation4 [shape = 'f32[4,8,1]{2,1,0:T(8,128)}', space=vmem, size = 0x4000, scoped, tag = 'scratch operand']
  #allocation5 [shape = 'f32[8,64]{1,0:T(8,128)}', space=vmem, size = 0x1000, scoped, tag = 'scratch operand']
  %s0 = inlined_call_operand.vmem [shape: bf16[2,8,64], index: 0, kind: input, shape index: {}]
  %s1 = inlined_call_operand.vmem [shape: f32[2,8,8], index: 1, kind: input, shape index: {}]
  %s2 = inlined_call_operand.vmem [shape: f32[2,8,8], index: 2, kind: input, shape index: {}]
  %s3 = inlined_call_operand.vmem [shape: bf16[2,16,64], index: 3, kind: input, shape index: {}]
  %s4 = inlined_call_operand.vmem [shape: f32[2,16,8], index: 4, kind: input, shape index: {}]
  %s5 = inlined_call_operand.vmem [shape: f32[2,16,8], index: 5, kind: input, shape index: {}]
  %s6 = inlined_call_operand.vmem [shape: bf16[2,16,64], index: 6, kind: input, shape index: {}]
  %s7 = inlined_call_operand.vmem [shape: bf16[2,8,64], index: 7, kind: output, shape index: {}]
  %s8 = sld [smem:[#allocation0]]
  $region69: #{cross_pre_norm_forward.8} parent=0
    _
  %s10 = ssub.s32 1, %s8
  %s11 = scalar_select 0, %s10, %s8
  loop: start=0, step=1, limit=4
  $region2: #{cross_pre_norm_forward.8} parent=0 // loop_pre_header
    _
  $region3: #{cross_pre_norm_forward.8} parent=0 // loop_header
    %s13 = sphi 0, %s17
    %p14 = scmp.ge.s32.totalorder %s13, 4
    %s20 = sphi 0, %s39
    %s21 = sphi 0, %s35
    %s22 = sphi 0, %s31
    %s23 = sphi 0, %s20
    %s24 = sphi 0, %s21
    %s25 = sphi 0, %s22
    %s26 = sphi 0, %s23
    %s27 = sphi 0, %s24
    %s28 = sphi 0, %s25
    %s44 = sphi 0, %s46
    %s47 = sphi 0, %s44
    %s48 = sphi 0, %s47
    %s64 = sphi 0, %s48
    %s72 = sphi 0, %s74
    %s75 = sphi 0, %s72
    %s76 = sphi 0, %s75
    %s92 = sphi 0, %s76
    %s100 = sphi 0, %s102
    %s103 = sphi 0, %s100
    %s104 = sphi 0, %s103
    %s120 = sphi 0, %s104
    %s128 = sphi 0, %s130
    %s131 = sphi 0, %s128
    %s132 = sphi 0, %s131
    %s148 = sphi 0, %s132
    %s156 = sphi 0, %s158
    %s159 = sphi 0, %s156
    %s160 = sphi 0, %s159
    %s176 = sphi 0, %s160
    %s184 = sphi 0, %s186
    %s187 = sphi 0, %s184
    %s188 = sphi 0, %s187
    %s204 = sphi 0, %s188
    %s212 = sphi 0, %s214
    %s215 = sphi 0, %s212
    %s216 = sphi 0, %s215
    %s232 = sphi 0, %s216
    %s240 = sphi 0, %s242
    %s243 = sphi 0, %s240
    %s244 = sphi 0, %s243
    %s260 = sphi 0, %s244
  $region4: #{cross_pre_norm_forward.8} parent=0 // loop_header_branch
    %16 = sbr.rel (%p14) target = $region8
  $region5: #{cross_pre_norm_forward.8} parent=0 // loop_body
    %s18 = ssub.s32 %s13, 1
    %s19 = ssub.s32 %s13, 2
    %s29 = sadd.s32 1, %s22
    %p30 = scmp.ge.s32.totalorder %s29, 1
    %s31 = scalar_select %p30, 0, %s29
    %s32 = sadd.s32 1, %s21
    %s33 = scalar_select %p30, %s32, %s21
    %p34 = scmp.ge.s32.totalorder %s33, 1
    %s35 = scalar_select %p34, 0, %s33
    %s36 = sadd.s32 1, %s20
    %s37 = scalar_select %p34, %s36, %s20
    %p38 = scmp.ge.s32.totalorder %s37, 2
    %s39 = scalar_select %p38, 0, %s37
    %s40 = ssub.s32 %s20, %s39
    %s41 = ssub.s32 %s21, %s35
    %s42 = sor.u32 %s40, %s41
    %p43 = scmp.eq.s32.totalorder %s42, 0
    %s45 = sadd.s32 %s44, 1
    %s46 = scalar_select %p43, %s44, %s45
    %p49 = pneg %p43
    %p50 = scmp.eq.s32.totalorder %s13, 1
    %p51 = por %p49, %p50
    %p52 = scmp.ne.s32.totalorder %s44, %s47
    %p53 = scmp.eq.s32.totalorder %s13, 0
    %p54 = por %p52, %p53
    %p55 = scmp.ne.s32.totalorder %s44, %s47
    %p56 = scmp.eq.s32.totalorder %s18, 1
    %p57 = por %p55, %p56
    %p58 = scmp.ne.s32.totalorder %s47, %s48
    %p59 = scmp.eq.s32.totalorder %s18, 0
    %p60 = por %p58, %p59
    %p61 = scmp.ne.s32.totalorder %s47, %s48
    %p62 = scmp.eq.s32.totalorder %s19, 1
    %p63 = por %p61, %p62
    %p65 = scmp.ne.s32.totalorder %s48, %s64
    %p66 = scmp.eq.s32.totalorder %s19, 0
    %p67 = por %p65, %p66
    %s68 = ssub.s32 %s20, %s39
    %s69 = ssub.s32 %s21, %s35
    %s70 = sor.u32 %s68, %s69
    %p71 = scmp.eq.s32.totalorder %s70, 0
    %s73 = sadd.s32 %s72, 1
    %s74 = scalar_select %p71, %s72, %s73
    %p77 = pneg %p71
    %p78 = scmp.eq.s32.totalorder %s13, 1
    %p79 = por %p77, %p78
    %p80 = scmp.ne.s32.totalorder %s72, %s75
    %p81 = scmp.eq.s32.totalorder %s13, 0
    %p82 = por %p80, %p81
    %p83 = scmp.ne.s32.totalorder %s72, %s75
    %p84 = scmp.eq.s32.totalorder %s18, 1
    %p85 = por %p83, %p84
    %p86 = scmp.ne.s32.totalorder %s75, %s76
    %p87 = scmp.eq.s32.totalorder %s18, 0
    %p88 = por %p86, %p87
    %p89 = scmp.ne.s32.totalorder %s75, %s76
    %p90 = scmp.eq.s32.totalorder %s19, 1
    %p91 = por %p89, %p90
    %p93 = scmp.ne.s32.totalorder %s76, %s92
    %p94 = scmp.eq.s32.totalorder %s19, 0
    %p95 = por %p93, %p94
    %s96 = ssub.s32 %s20, %s39
    %s97 = ssub.s32 %s21, %s35
    %s98 = sor.u32 %s96, %s97
    %p99 = scmp.eq.s32.totalorder %s98, 0
    %s101 = sadd.s32 %s100, 1
    %s102 = scalar_select %p99, %s100, %s101
    %p105 = pneg %p99
    %p106 = scmp.eq.s32.totalorder %s13, 1
    %p107 = por %p105, %p106
    %p108 = scmp.ne.s32.totalorder %s100, %s103
    %p109 = scmp.eq.s32.totalorder %s13, 0
    %p110 = por %p108, %p109
    %p111 = scmp.ne.s32.totalorder %s100, %s103
    %p112 = scmp.eq.s32.totalorder %s18, 1
    %p113 = por %p111, %p112
    %p114 = scmp.ne.s32.totalorder %s103, %s104
    %p115 = scmp.eq.s32.totalorder %s18, 0
    %p116 = por %p114, %p115
    %p117 = scmp.ne.s32.totalorder %s103, %s104
    %p118 = scmp.eq.s32.totalorder %s19, 1
    %p119 = por %p117, %p118
    %p121 = scmp.ne.s32.totalorder %s104, %s120
    %p122 = scmp.eq.s32.totalorder %s19, 0
    %p123 = por %p121, %p122
    %s124 = ssub.s32 %s20, %s39
    %s125 = ssub.s32 %s22, %s31
    %s126 = sor.u32 %s124, %s125
    %p127 = scmp.eq.s32.totalorder %s126, 0
    %s129 = sadd.s32 %s128, 1
    %s130 = scalar_select %p127, %s128, %s129
    %p133 = pneg %p127
    %p134 = scmp.eq.s32.totalorder %s13, 1
    %p135 = por %p133, %p134
    %p136 = scmp.ne.s32.totalorder %s128, %s131
    %p137 = scmp.eq.s32.totalorder %s13, 0
    %p138 = por %p136, %p137
    %p139 = scmp.ne.s32.totalorder %s128, %s131
    %p140 = scmp.eq.s32.totalorder %s18, 1
    %p141 = por %p139, %p140
    %p142 = scmp.ne.s32.totalorder %s131, %s132
    %p143 = scmp.eq.s32.totalorder %s18, 0
    %p144 = por %p142, %p143
    %p145 = scmp.ne.s32.totalorder %s131, %s132
    %p146 = scmp.eq.s32.totalorder %s19, 1
    %p147 = por %p145, %p146
    %p149 = scmp.ne.s32.totalorder %s132, %s148
    %p150 = scmp.eq.s32.totalorder %s19, 0
    %p151 = por %p149, %p150
    %s152 = ssub.s32 %s20, %s39
    %s153 = ssub.s32 %s22, %s31
    %s154 = sor.u32 %s152, %s153
    %p155 = scmp.eq.s32.totalorder %s154, 0
    %s157 = sadd.s32 %s156, 1
    %s158 = scalar_select %p155, %s156, %s157
    %p161 = pneg %p155
    %p162 = scmp.eq.s32.totalorder %s13, 1
    %p163 = por %p161, %p162
    %p164 = scmp.ne.s32.totalorder %s156, %s159
    %p165 = scmp.eq.s32.totalorder %s13, 0
    %p166 = por %p164, %p165
    %p167 = scmp.ne.s32.totalorder %s156, %s159
    %p168 = scmp.eq.s32.totalorder %s18, 1
    %p169 = por %p167, %p168
    %p170 = scmp.ne.s32.totalorder %s159, %s160
    %p171 = scmp.eq.s32.totalorder %s18, 0
    %p172 = por %p170, %p171
    %p173 = scmp.ne.s32.totalorder %s159, %s160
    %p174 = scmp.eq.s32.totalorder %s19, 1
    %p175 = por %p173, %p174
    %p177 = scmp.ne.s32.totalorder %s160, %s176
    %p178 = scmp.eq.s32.totalorder %s19, 0
    %p179 = por %p177, %p178
    %s180 = ssub.s32 %s20, %s39
    %s181 = ssub.s32 %s22, %s31
    %s182 = sor.u32 %s180, %s181
    %p183 = scmp.eq.s32.totalorder %s182, 0
    %s185 = sadd.s32 %s184, 1
    %s186 = scalar_select %p183, %s184, %s185
    %p189 = pneg %p183
    %p190 = scmp.eq.s32.totalorder %s13, 1
    %p191 = por %p189, %p190
    %p192 = scmp.ne.s32.totalorder %s184, %s187
    %p193 = scmp.eq.s32.totalorder %s13, 0
    %p194 = por %p192, %p193
    %p195 = scmp.ne.s32.totalorder %s184, %s187
    %p196 = scmp.eq.s32.totalorder %s18, 1
    %p197 = por %p195, %p196
    %p198 = scmp.ne.s32.totalorder %s187, %s188
    %p199 = scmp.eq.s32.totalorder %s18, 0
    %p200 = por %p198, %p199
    %p201 = scmp.ne.s32.totalorder %s187, %s188
    %p202 = scmp.eq.s32.totalorder %s19, 1
    %p203 = por %p201, %p202
    %p205 = scmp.ne.s32.totalorder %s188, %s204
    %p206 = scmp.eq.s32.totalorder %s19, 0
    %p207 = por %p205, %p206
    %s208 = ssub.s32 %s20, %s39
    %s209 = ssub.s32 %s22, %s31
    %s210 = sor.u32 %s208, %s209
    %p211 = scmp.eq.s32.totalorder %s210, 0
    %s213 = sadd.s32 %s212, 1
    %s214 = scalar_select %p211, %s212, %s213
    %p217 = pneg %p211
    %p218 = scmp.eq.s32.totalorder %s13, 1
    %p219 = por %p217, %p218
    %p220 = scmp.ne.s32.totalorder %s212, %s215
    %p221 = scmp.eq.s32.totalorder %s13, 0
    %p222 = por %p220, %p221
    %p223 = scmp.ne.s32.totalorder %s212, %s215
    %p224 = scmp.eq.s32.totalorder %s18, 1
    %p225 = por %p223, %p224
    %p226 = scmp.ne.s32.totalorder %s215, %s216
    %p227 = scmp.eq.s32.totalorder %s18, 0
    %p228 = por %p226, %p227
    %p229 = scmp.ne.s32.totalorder %s215, %s216
    %p230 = scmp.eq.s32.totalorder %s19, 1
    %p231 = por %p229, %p230
    %p233 = scmp.ne.s32.totalorder %s216, %s232
    %p234 = scmp.eq.s32.totalorder %s19, 0
    %p235 = por %p233, %p234
    %s236 = ssub.s32 %s20, %s39
    %s237 = ssub.s32 %s21, %s35
    %s238 = sor.u32 %s236, %s237
    %p239 = scmp.eq.s32.totalorder %s238, 0
    %s241 = sadd.s32 %s240, 1
    %s242 = scalar_select %p239, %s240, %s241
    %p245 = pneg %p239
    %p246 = scmp.eq.s32.totalorder %s13, 1
    %p247 = por %p245, %p246
    %p248 = scmp.ne.s32.totalorder %s240, %s243
    %p249 = scmp.eq.s32.totalorder %s13, 0
    %p250 = por %p248, %p249
    %p251 = scmp.ne.s32.totalorder %s240, %s243
    %p252 = scmp.eq.s32.totalorder %s18, 1
    %p253 = por %p251, %p252
    %p254 = scmp.ne.s32.totalorder %s243, %s244
    %p255 = scmp.eq.s32.totalorder %s18, 0
    %p256 = por %p254, %p255
    %p257 = scmp.ne.s32.totalorder %s243, %s244
    %p258 = scmp.eq.s32.totalorder %s19, 1
    %p259 = por %p257, %p258
    %p261 = scmp.ne.s32.totalorder %s244, %s260
    %p262 = scmp.eq.s32.totalorder %s19, 0
    %p263 = por %p261, %p262
    %p264 = scmp.le.s32.totalorder 1, %s13
    %p265 = scmp.lt.s32.totalorder %s13, 3
    %p266 = pnand %p264, %p265
    %p267 = pneg %p266
    // Predicated region
    $region9: #{cross_pre_norm_forward.8} parent=5 // pred_check
      _
    $region10: #{cross_pre_norm_forward.8} parent=5 // pred_check_branch
      %269 = sbr.rel (%p266) target = $region12
    $region11: #{cross_pre_norm_forward.8} parent=5 // pred_region
      %s270 = ssub.s32 %s13, 1
    $region12: #{cross_pre_norm_forward.8} parent=5 // pred_fallthru
      _
    %p271 = scmp.lt.s32.totalorder %s13, 2
    // Predicated region
    $region13: #{cross_pre_norm_forward.8} parent=5 // pred_check
      %p272 = pneg %p271
    $region14: #{cross_pre_norm_forward.8} parent=5 // pred_check_branch
      %274 = sbr.rel (%p272) target = $region16
    $region15: #{cross_pre_norm_forward.8} parent=5 // pred_region
      // Predicated region
      $region17: #{cross_pre_norm_forward.8} parent=15 // pred_check
        %p275 = pneg %p54
      $region18: #{cross_pre_norm_forward.8} parent=15 // pred_check_branch
        %277 = sbr.rel (%p275) target = $region20
      $region19: #{cross_pre_norm_forward.8} parent=15 // pred_region
        %p278 = scmp.lt.s32.totalorder %s20, 1
        %s279 = scalar_select %p278, %s20, 1
        %p280 = scmp.lt.s32.totalorder %s21, 0
        %s281 = scalar_select %p280, %s21, 0
        %s282 = sadd.s32 %s281, %s279
        %s283 = smul.addr %s282, 4
        %s284 = scalar_lea.vmem %s0, %s283
      $region20: #{cross_pre_norm_forward.8} parent=15 // pred_fallthru
        _
      // Predicated region
      $region21: #{cross_pre_norm_forward.8} parent=15 // pred_check
        %p285 = pneg %p82
      $region22: #{cross_pre_norm_forward.8} parent=15 // pred_check_branch
        %287 = sbr.rel (%p285) target = $region24
      $region23: #{cross_pre_norm_forward.8} parent=15 // pred_region
        %p288 = scmp.lt.s32.totalorder %s20, 1
        %s289 = scalar_select %p288, %s20, 1
        %p290 = scmp.lt.s32.totalorder %s21, 0
        %s291 = scalar_select %p290, %s21, 0
        %s292 = sadd.s32 %s291, %s289
        %s293 = smul.addr %s292, 8
        %s294 = scalar_lea.vmem %s1, %s293
      $region24: #{cross_pre_norm_forward.8} parent=15 // pred_fallthru
        _
      // Predicated region
      $region25: #{cross_pre_norm_forward.8} parent=15 // pred_check
        %p295 = pneg %p110
      $region26: #{cross_pre_norm_forward.8} parent=15 // pred_check_branch
        %297 = sbr.rel (%p295) target = $region28
      $region27: #{cross_pre_norm_forward.8} parent=15 // pred_region
        %p298 = scmp.lt.s32.totalorder %s20, 1
        %s299 = scalar_select %p298, %s20, 1
        %p300 = scmp.lt.s32.totalorder %s21, 0
        %s301 = scalar_select %p300, %s21, 0
        %s302 = sadd.s32 %s301, %s299
        %s303 = smul.addr %s302, 8
        %s304 = scalar_lea.vmem %s2, %s303
      $region28: #{cross_pre_norm_forward.8} parent=15 // pred_fallthru
        _
      // Predicated region
      $region29: #{cross_pre_norm_forward.8} parent=15 // pred_check
        %p305 = pneg %p138
      $region30: #{cross_pre_norm_forward.8} parent=15 // pred_check_branch
        %307 = sbr.rel (%p305) target = $region32
      $region31: #{cross_pre_norm_forward.8} parent=15 // pred_region
        %s308 = smul.u32 2, %s22
        %p309 = scmp.lt.s32.totalorder %s20, 1
        %s310 = scalar_select %p309, %s20, 1
        %p311 = scmp.lt.s32.totalorder %s308, 1
        %s312 = scalar_select %p311, %s308, 1
        %s313 = smul.addr %s310, 2
        %s314 = sadd.s32 %s312, %s313
        %s315 = smul.addr %s314, 4
        %s316 = scalar_lea.vmem %s3, %s315
        %s317 = smul.u32 2, %s22
      $region32: #{cross_pre_norm_forward.8} parent=15 // pred_fallthru
        _
      // Predicated region
      $region33: #{cross_pre_norm_forward.8} parent=15 // pred_check
        %p318 = pneg %p166
      $region34: #{cross_pre_norm_forward.8} parent=15 // pred_check_branch
        %320 = sbr.rel (%p318) target = $region36
      $region35: #{cross_pre_norm_forward.8} parent=15 // pred_region
        %s321 = smul.u32 2, %s22
        %p322 = scmp.lt.s32.totalorder %s20, 1
        %s323 = scalar_select %p322, %s20, 1
        %p324 = scmp.lt.s32.totalorder %s321, 1
        %s325 = scalar_select %p324, %s321, 1
        %s326 = smul.addr %s323, 2
        %s327 = sadd.s32 %s325, %s326
        %s328 = smul.addr %s327, 8
        %s329 = scalar_lea.vmem %s4, %s328
        %s330 = smul.u32 2, %s22
      $region36: #{cross_pre_norm_forward.8} parent=15 // pred_fallthru
        _
      // Predicated region
      $region37: #{cross_pre_norm_forward.8} parent=15 // pred_check
        %p331 = pneg %p194
      $region38: #{cross_pre_norm_forward.8} parent=15 // pred_check_branch
        %333 = sbr.rel (%p331) target = $region40
      $region39: #{cross_pre_norm_forward.8} parent=15 // pred_region
        %s334 = smul.u32 2, %s22
        %p335 = scmp.lt.s32.totalorder %s20, 1
        %s336 = scalar_select %p335, %s20, 1
        %p337 = scmp.lt.s32.totalorder %s334, 1
        %s338 = scalar_select %p337, %s334, 1
        %s339 = smul.addr %s336, 2
        %s340 = sadd.s32 %s338, %s339
        %s341 = smul.addr %s340, 8
        %s342 = scalar_lea.vmem %s5, %s341
        %s343 = smul.u32 2, %s22
      $region40: #{cross_pre_norm_forward.8} parent=15 // pred_fallthru
        _
      // Predicated region
      $region41: #{cross_pre_norm_forward.8} parent=15 // pred_check
        %p344 = pneg %p222
      $region42: #{cross_pre_norm_forward.8} parent=15 // pred_check_branch
        %346 = sbr.rel (%p344) target = $region44
      $region43: #{cross_pre_norm_forward.8} parent=15 // pred_region
        %s347 = smul.u32 2, %s22
        %p348 = scmp.lt.s32.totalorder %s20, 1
        %s349 = scalar_select %p348, %s20, 1
        %p350 = scmp.lt.s32.totalorder %s347, 1
        %s351 = scalar_select %p350, %s347, 1
        %s352 = smul.addr %s349, 2
        %s353 = sadd.s32 %s351, %s352
        %s354 = smul.addr %s353, 4
        %s355 = scalar_lea.vmem %s6, %s354
        %s356 = smul.u32 2, %s22
      $region44: #{cross_pre_norm_forward.8} parent=15 // pred_fallthru
        _
    $region16: #{cross_pre_norm_forward.8} parent=5 // pred_fallthru
      _
    %p357 = scmp.le.s32.totalorder 1, %s13
    %p358 = scmp.lt.s32.totalorder %s13, 3
    %p359 = pnand %p357, %p358
    %p360 = pneg %p359
    // Predicated region
    $region45: #{cross_pre_norm_forward.8} parent=5 // pred_check
      _
    $region46: #{cross_pre_norm_forward.8} parent=5 // pred_check_branch
      %362 = sbr.rel (%p359) target = $region48
    $region47: #{cross_pre_norm_forward.8} parent=5 // pred_region
      %s363 = ssub.s32 %s13, 1
      %p364 = scmp.lt.s32.totalorder %s23, 1
      %s365 = scalar_select %p364, %s23, 1
      %p366 = scmp.lt.s32.totalorder %s24, 0
      %s367 = scalar_select %p366, %s24, 0
      %s368 = sadd.s32 %s367, %s365
      %s369 = smul.addr %s368, 4
      %s370 = scalar_lea.vmem %s0, %s369
      %p371 = pneg %p60
      %p372 = pneg %p57
      %p373 = scmp.lt.s32.totalorder %s23, 1
      %s374 = scalar_select %p373, %s23, 1
      %p375 = scmp.lt.s32.totalorder %s24, 0
      %s376 = scalar_select %p375, %s24, 0
      %s377 = sadd.s32 %s376, %s374
      %s378 = smul.addr %s377, 8
      %s379 = scalar_lea.vmem %s1, %s378
      %p380 = pneg %p88
      %p381 = pneg %p85
      %p382 = scmp.lt.s32.totalorder %s23, 1
      %s383 = scalar_select %p382, %s23, 1
      %p384 = scmp.lt.s32.totalorder %s24, 0
      %s385 = scalar_select %p384, %s24, 0
      %s386 = sadd.s32 %s385, %s383
      %s387 = smul.addr %s386, 8
      %s388 = scalar_lea.vmem %s2, %s387
      %p389 = pneg %p116
      %p390 = pneg %p113
      %s391 = smul.u32 2, %s25
      %p392 = scmp.lt.s32.totalorder %s23, 1
      %s393 = scalar_select %p392, %s23, 1
      %p394 = scmp.lt.s32.totalorder %s391, 1
      %s395 = scalar_select %p394, %s391, 1
      %s396 = smul.addr %s393, 2
      %s397 = sadd.s32 %s395, %s396
      %s398 = smul.addr %s397, 4
      %s399 = scalar_lea.vmem %s3, %s398
      %p400 = pneg %p144
      %p401 = pneg %p141
      %s402 = smul.u32 2, %s25
      %p403 = scmp.lt.s32.totalorder %s23, 1
      %s404 = scalar_select %p403, %s23, 1
      %p405 = scmp.lt.s32.totalorder %s402, 1
      %s406 = scalar_select %p405, %s402, 1
      %s407 = smul.addr %s404, 2
      %s408 = sadd.s32 %s406, %s407
      %s409 = smul.addr %s408, 8
      %s410 = scalar_lea.vmem %s4, %s409
      %p411 = pneg %p172
      %p412 = pneg %p169
      %s413 = smul.u32 2, %s25
      %p414 = scmp.lt.s32.totalorder %s23, 1
      %s415 = scalar_select %p414, %s23, 1
      %p416 = scmp.lt.s32.totalorder %s413, 1
      %s417 = scalar_select %p416, %s413, 1
      %s418 = smul.addr %s415, 2
      %s419 = sadd.s32 %s417, %s418
      %s420 = smul.addr %s419, 8
      %s421 = scalar_lea.vmem %s5, %s420
      %p422 = pneg %p200
      %p423 = pneg %p197
      %s424 = smul.u32 2, %s25
      %p425 = scmp.lt.s32.totalorder %s23, 1
      %s426 = scalar_select %p425, %s23, 1
      %p427 = scmp.lt.s32.totalorder %s424, 1
      %s428 = scalar_select %p427, %s424, 1
      %s429 = smul.addr %s426, 2
      %s430 = sadd.s32 %s428, %s429
      %s431 = smul.addr %s430, 4
      %s432 = scalar_lea.vmem %s6, %s431
      %p433 = pneg %p228
      %p434 = pneg %p225
      %p435 = pneg %p256
      %p436 = pneg %p253
      %p437 = scmp.lt.s32.totalorder %s23, 1
      %s438 = scalar_select %p437, %s23, 1
      %p439 = scmp.lt.s32.totalorder %s24, 0
      %s440 = scalar_select %p439, %s24, 0
      %s441 = sadd.s32 %s440, %s438
      %s442 = smul.addr %s441, 4
      %s443 = scalar_lea.vmem %s7, %s442
      %p444 = scmp.lt.s32.totalorder %s23, 1
      %s445 = scalar_select %p444, %s23, 1
      %p446 = scmp.lt.s32.totalorder %s24, 0
      %s447 = scalar_select %p446, %s24, 0
      %s448 = sadd.s32 %s447, %s445
      %s449 = smul.addr %s448, 4
      %s450 = scalar_lea.vmem %s0, %s449
      %p451 = scmp.lt.s32.totalorder %s23, 1
      %s452 = scalar_select %p451, %s23, 1
      %p453 = scmp.lt.s32.totalorder %s24, 0
      %s454 = scalar_select %p453, %s24, 0
      %s455 = sadd.s32 %s454, %s452
      %s456 = smul.addr %s455, 8
      %s457 = scalar_lea.vmem %s1, %s456
      %p458 = scmp.lt.s32.totalorder %s23, 1
      %s459 = scalar_select %p458, %s23, 1
      %p460 = scmp.lt.s32.totalorder %s24, 0
      %s461 = scalar_select %p460, %s24, 0
      %s462 = sadd.s32 %s461, %s459
      %s463 = smul.addr %s462, 8
      %s464 = scalar_lea.vmem %s2, %s463
      %s465 = smul.u32 2, %s25
      %p466 = scmp.lt.s32.totalorder %s23, 1
      %s467 = scalar_select %p466, %s23, 1
      %p468 = scmp.lt.s32.totalorder %s465, 1
      %s469 = scalar_select %p468, %s465, 1
      %s470 = smul.addr %s467, 2
      %s471 = sadd.s32 %s469, %s470
      %s472 = smul.addr %s471, 4
      %s473 = scalar_lea.vmem %s3, %s472
      %s474 = smul.u32 2, %s25
      %s475 = smul.u32 2, %s25
      %p476 = scmp.lt.s32.totalorder %s23, 1
      %s477 = scalar_select %p476, %s23, 1
      %p478 = scmp.lt.s32.totalorder %s475, 1
      %s479 = scalar_select %p478, %s475, 1
      %s480 = smul.addr %s477, 2
      %s481 = sadd.s32 %s479, %s480
      %s482 = smul.addr %s481, 8
      %s483 = scalar_lea.vmem %s4, %s482
      %s484 = smul.u32 2, %s25
      %s485 = smul.u32 2, %s25
      %p486 = scmp.lt.s32.totalorder %s23, 1
      %s487 = scalar_select %p486, %s23, 1
      %p488 = scmp.lt.s32.totalorder %s485, 1
      %s489 = scalar_select %p488, %s485, 1
      %s490 = smul.addr %s487, 2
      %s491 = sadd.s32 %s489, %s490
      %s492 = smul.addr %s491, 8
      %s493 = scalar_lea.vmem %s5, %s492
      %s494 = smul.u32 2, %s25
      %s495 = smul.u32 2, %s25
      %p496 = scmp.lt.s32.totalorder %s23, 1
      %s497 = scalar_select %p496, %s23, 1
      %p498 = scmp.lt.s32.totalorder %s495, 1
      %s499 = scalar_select %p498, %s495, 1
      %s500 = smul.addr %s497, 2
      %s501 = sadd.s32 %s499, %s500
      %s502 = smul.addr %s501, 4
      %s503 = scalar_lea.vmem %s6, %s502
      %s504 = smul.u32 2, %s25
      %p505 = scmp.lt.s32.totalorder %s23, 1
      %s506 = scalar_select %p505, %s23, 1
      %p507 = scmp.lt.s32.totalorder %s24, 0
      %s508 = scalar_select %p507, %s24, 0
      %s509 = sadd.s32 %s508, %s506
      %s510 = smul.addr %s509, 4
      %s511 = scalar_lea.vmem %s7, %s510
      %p513 = scmp.eq.s32.totalorder %s25, 0
      // Predicated region
      $region49: #{cross_pre_norm_forward.8} parent=47 // pred_check
        %p514 = pneg %p513
      $region50: #{cross_pre_norm_forward.8} parent=47 // pred_check_branch
        %516 = sbr.rel (%p514) target = $region52
      $region51: #{cross_pre_norm_forward.8} parent=47 // pred_region
        %v517 = vld [vmem:[%s450] sm:$0xf]
        %v518 = vunpack.c.l.bf16 %v517
        %v519 = vld [vmem:[%s457] sm:$0xff]
        %v520 = vld [vmem:[%s464] sm:$0xff]
        %v521 = vsub.f32 0.0, %v518
        %523 = vrot.lane.b32.xlu0 %v521, 124
        %v524 = vpop.permute.xlu0 %523
        %527 = vrot.lane.b32.xlu0 %v518, 4
        %v528 = vpop.permute.xlu0 %527
        %vm530 = vcmask 31744
        %v531 = vsel %vm530, %v524, %v528
        %v532 = vmul.f32 %v518, %v520
        %v533 = vmul.f32 %v531, %v519
        %v534 = vadd.f32 %v532, %v533
        %vm535 = vcmask 64512
        %v536 = vsel %vm535, %v534, %v518
        %v537 = vmul.f32 %v536, 0.25
        %v538 = vpack.c.bf16 %v537, %v537
        %539 = vrot.lane.b32.xlu0 %v521, 108
        %v540 = vpop.permute.xlu0 %539
        %542 = vrot.lane.b32.xlu0 %v518, 116
        %v543 = vpop.permute.xlu0 %542
        %v545 = vsel %vm530, %v540, %v543
        %547 = vrot.lane.b32.xlu0 %v520, 16
        %v548 = vpop.permute.xlu0 %547
        %v550 = vmul.f32 %v518, %v548
        %v551 = vmul.f32 %v545, %v519
        %553 = vrot.lane.b32.xlu0 %v551, 16
        %v554 = vpop.permute.xlu0 %553
        %v556 = vadd.f32 %v550, %v554
        %558 = vrot.lane.b32.xlu0 %v556, 112
        %v559 = vpop.permute.xlu0 %558
        %561 = vrot.lane.b32.xlu0 %v518, 112
        %v562 = vpop.permute.xlu0 %561
        %v564 = vsel %vm535, %v559, %v562
        %v565 = vmul.f32 %v564, 0.25
        %v566 = vpack.c.bf16 %v565, %v565
        %567 = vrot.lane.b32.xlu0 %v521, 92
        %v568 = vpop.permute.xlu0 %567
        %570 = vrot.lane.b32.xlu0 %v518, 100
        %v571 = vpop.permute.xlu0 %570
        %v573 = vsel %vm530, %v568, %v571
        %574 = vrot.lane.b32.xlu0 %v520, 32
        %v575 = vpop.permute.xlu0 %574
        %v577 = vmul.f32 %v518, %v575
        %v578 = vmul.f32 %v573, %v519
        %580 = vrot.lane.b32.xlu0 %v578, 32
        %v581 = vpop.permute.xlu0 %580
        %v583 = vadd.f32 %v577, %v581
        %585 = vrot.lane.b32.xlu0 %v583, 96
        %v586 = vpop.permute.xlu0 %585
        %588 = vrot.lane.b32.xlu0 %v518, 96
        %v589 = vpop.permute.xlu0 %588
        %v591 = vsel %vm535, %v586, %v589
        %v592 = vmul.f32 %v591, 0.25
        %v593 = vpack.c.bf16 %v592, %v592
        %594 = vrot.lane.b32.xlu0 %v521, 76
        %v595 = vpop.permute.xlu0 %594
        %597 = vrot.lane.b32.xlu0 %v518, 84
        %v598 = vpop.permute.xlu0 %597
        %v600 = vsel %vm530, %v595, %v598
        %601 = vrot.lane.b32.xlu0 %v520, 48
        %v602 = vpop.permute.xlu0 %601
        %v604 = vmul.f32 %v518, %v602
        %v605 = vmul.f32 %v600, %v519
        %607 = vrot.lane.b32.xlu0 %v605, 48
        %v608 = vpop.permute.xlu0 %607
        %v610 = vadd.f32 %v604, %v608
        %612 = vrot.lane.b32.xlu0 %v610, 80
        %v613 = vpop.permute.xlu0 %612
        %615 = vrot.lane.b32.xlu0 %v518, 80
        %v616 = vpop.permute.xlu0 %615
        %v618 = vsel %vm535, %v613, %v616
        %v619 = vmul.f32 %v618, 0.25
        %v620 = vpack.c.bf16 %v619, %v619
        %622 = vrot.lane.b32.xlu0 %v566, 16
        %v623 = vpop.permute.xlu0 %622
        %625 = vrot.lane.b32.xlu0 %v593, 32
        %v626 = vpop.permute.xlu0 %625
        %628 = vrot.lane.b32.xlu0 %v620, 48
        %v629 = vpop.permute.xlu0 %628
        %vm630 = vcmask 130048
        %v633 = vsel %vm630, %v538, %v623
        %vm634 = vcmask 261120
        %v636 = vsel %vm634, %v633, %v626
        %vm637 = vcmask 392192
        %v639 = vsel %vm637, %v636, %v629
        %vm641 = vcmask 519168
        %642 = vst.msk [vmem:[#allocation2] sm:$0xf] %vm641, %v639
        %vm643 = vcmask 7168
        %644 = vst.msk [vmem:[#allocation3] sm:$0xff] %vm643, -inf
        %645 = vst.msk [vmem:[#allocation3 + $0x8] sm:$0xff] %vm643, -inf
        %646 = vst.msk [vmem:[#allocation3 + $0x10] sm:$0xff] %vm643, -inf
        %647 = vst.msk [vmem:[#allocation3 + $0x18] sm:$0xff] %vm643, -inf
        %648 = vst.msk [vmem:[#allocation4] sm:$0xff] %vm643, 0.0
        %649 = vst.msk [vmem:[#allocation4 + $0x8] sm:$0xff] %vm643, 0.0
        %650 = vst.msk [vmem:[#allocation4 + $0x10] sm:$0xff] %vm643, 0.0
        %651 = vst.msk [vmem:[#allocation4 + $0x18] sm:$0xff] %vm643, 0.0
        %vm652 = vcmask 523264
        %653 = vst.msk [vmem:[#allocation5] sm:$0xff] %vm652, 0.0
      $region52: #{cross_pre_norm_forward.8} parent=47 // pred_fallthru
        _
      %v654 = vld [vmem:[%s473] sm:$0xf]
      %v655 = vld [vmem:[%s473 + $0x4] sm:$0xf]
      %v656 = vunpack.c.l.bf16 %v654
      %v657 = vunpack.c.l.bf16 %v655
      %v658 = vld [vmem:[%s503] sm:$0xf]
      %v659 = vld [vmem:[%s503 + $0x4] sm:$0xf]
      %v660 = vld [vmem:[%s483] sm:$0xff]
      %v661 = vld [vmem:[%s483 + $0x8] sm:$0xff]
      %v662 = vld [vmem:[%s493] sm:$0xff]
      %v663 = vld [vmem:[%s493 + $0x8] sm:$0xff]
      %v664 = vsub.f32 0.0, %v656
      %v665 = vsub.f32 0.0, %v657
      %668 = vrot.lane.b32.xlu0 %v664, 124
      %v669 = vpop.permute.xlu0 %668
      %670 = vrot.lane.b32.xlu0 %v665, 124
      %v671 = vpop.permute.xlu0 %670
      %676 = vrot.lane.b32.xlu0 %v656, 4
      %v677 = vpop.permute.xlu0 %676
      %678 = vrot.lane.b32.xlu0 %v657, 4
      %v679 = vpop.permute.xlu0 %678
      %vm682 = vcmask 31744
      %v683 = vsel %vm682, %v669, %v677
      %v684 = vsel %vm682, %v671, %v679
      %v685 = vmul.f32 %v656, %v662
      %v686 = vmul.f32 %v657, %v663
      %v687 = vmul.f32 %v683, %v660
      %v688 = vmul.f32 %v684, %v661
      %v689 = vadd.f32 %v685, %v687
      %v690 = vadd.f32 %v686, %v688
      %vm691 = vcmask 64512
      %v692 = vsel %vm691, %v689, %v656
      %v693 = vsel %vm691, %v690, %v657
      %v694 = vpack.c.bf16 %v693, %v692
      %v695 = vld [vmem:[#allocation2] sm:$0xf]
      %vm696 = vcmask 130048
      %v698 = vsel %vm696, %v695, 0
      %v701 = vsel %vm696, %v694, 0
      %703 = vmatprep.subr.bf16.mxu0 0
      %704 = vmatpush1.bf16.xpose.msra.mxu0 0
      %705 = vmatprep.subr.bf16.mxu0 0
      %706 = vmatpush1.bf16.xpose.msra.mxu0 0
      %707 = vmatprep.subr.bf16.mxu0 0
      %708 = vmatpush1.bf16.xpose.msra.mxu0 0
      %709 = vmatprep.subr.bf16.mxu0 0
      %710 = vmatpush1.bf16.xpose.msra.mxu0 0
      %711 = vmatprep.subr.bf16.mxu0 0
      %712 = vmatpush1.bf16.xpose.msra.mxu0 0
      %713 = vmatprep.subr.bf16.mxu0 0
      %714 = vmatpush1.bf16.xpose.msra.mxu0 0
      %715 = vmatprep.subr.bf16.mxu0 0
      %716 = vmatpush1.bf16.xpose.msra.mxu0 0
      %717 = vmatprep.subr.bf16.mxu0 0
      %718 = vmatpush1.bf16.xpose.msra.mxu0 %v701
      %719 = vmatprep.subr.bf16.mxu0 0
      %720 = vmatpush2.bf16.xpose.msra.mxu0 0
      %721 = vmatprep.subr.bf16.mxu0 0
      %722 = vmatpush2.bf16.xpose.msra.mxu0 0
      %723 = vmatprep.subr.bf16.mxu0 0
      %724 = vmatpush2.bf16.xpose.msra.mxu0 0
      %725 = vmatprep.subr.bf16.mxu0 0
      %726 = vmatpush2.bf16.xpose.msra.mxu0 0
      %727 = vmatprep.subr.bf16.mxu0 0
      %728 = vmatpush2.bf16.xpose.msra.mxu0 0
      %729 = vmatprep.subr.bf16.mxu0 0
      %730 = vmatpush2.bf16.xpose.msra.mxu0 0
      %731 = vmatprep.subr.bf16.mxu0 0
      %732 = vmatpush2.bf16.xpose.msra.mxu0 0
      %733 = vmatprep.subr.bf16.mxu0 0
      %734 = vmatpush2.bf16.xpose.msra.mxu0 0
      %735 = vmatprep.mubr.bf16.mxu0 0
      %736 = vmatmul.mubr.bf16.gmra.mxu0 %v698
      %v737 = vpop.f32.mrf.mxu0
      %v738 = vadd.f32 0.0, %v737
      %v739 = vpop.f32.mrf.mxu0
      %v740 = vpop.f32.mrf.mxu0
      %v741 = vpop.f32.mrf.mxu0
      %742 = vdwg.mxu0
      %v743 = vld [vmem:[#allocation3] sm:$0xff]
      %v744 = vsel %vm696, %v738, -inf
      %745 = vmax.xlane.f32.xlu0 %v744
      %v746 = vpop.xlane.xlu0 %745
      %v747 = vmax.f32 %v743, %v746
      %v748 = vsub.f32 %v743, %v747
      %v749 = vmul.f32 %v748, 1.442695
      %v750 = vpow.pop %v749
      %752 = vset.pattern.permute.xlu0 0
      %753 = vperm.xlu0 %752, %v747
      %v754 = vpop.permute.xlu0 %753
      %v756 = vsub.f32 %v738, %v754
      %v757 = vmul.f32 %v756, 1.442695
      %v758 = vpow.pop %v757
      %v759 = vld [vmem:[#allocation4] sm:$0xff]
      %v760 = vmul.f32 %v750, %v759
      %v761 = vsel %vm696, %v758, 0.0
      %762 = vadd.xlane.f32.xlu0 %v761
      %v763 = vpop.xlane.xlu0 %762
      %v764 = vadd.f32 %v760, %v763
      %vm765 = vcmask 7168
      %766 = vst.msk [vmem:[#allocation4] sm:$0xff] %vm765, %v764
      %v767 = vld [vmem:[#allocation5] sm:$0xff]
      %769 = vset.pattern.permute.xlu0 0
      %770 = vperm.xlu0 %769, %v750
      %v771 = vpop.permute.xlu0 %770
      %v773 = vmul.f32 %v771, %v767
      %v774 = vpack.c.bf16 %v758, %v758
      %v777 = vunpack.c.l.b16 %v658
      %v778 = vunpack.c.l.b16 %v659
      %v779 = vpack.c.b16 %v778, %v777
      %v782 = vsel %vm696, %v774, 0
      %784 = vmatprep.subr.bf16.mxu0 0
      %785 = vmatpush1.bf16.msra.mxu0 0
      %786 = vmatprep.subr.bf16.mxu0 0
      %787 = vmatpush1.bf16.msra.mxu0 0
      %788 = vmatprep.subr.bf16.mxu0 0
      %789 = vmatpush1.bf16.msra.mxu0 0
      %790 = vmatprep.subr.bf16.mxu0 0
      %791 = vmatpush1.bf16.msra.mxu0 0
      %792 = vmatprep.subr.bf16.mxu0 0
      %793 = vmatpush1.bf16.msra.mxu0 0
      %794 = vmatprep.subr.bf16.mxu0 0
      %795 = vmatpush1.bf16.msra.mxu0 0
      %796 = vmatprep.subr.bf16.mxu0 0
      %797 = vmatpush1.bf16.msra.mxu0 0
      %798 = vmatprep.subr.bf16.mxu0 0
      %799 = vmatpush1.bf16.msra.mxu0 %v779
      %800 = vmatprep.subr.bf16.mxu0 0
      %801 = vmatpush2.bf16.msra.mxu0 0
      %802 = vmatprep.subr.bf16.mxu0 0
      %803 = vmatpush2.bf16.msra.mxu0 0
      %804 = vmatprep.subr.bf16.mxu0 0
      %805 = vmatpush2.bf16.msra.mxu0 0
      %806 = vmatprep.subr.bf16.mxu0 0
      %807 = vmatpush2.bf16.msra.mxu0 0
      %808 = vmatprep.subr.bf16.mxu0 0
      %809 = vmatpush2.bf16.msra.mxu0 0
      %810 = vmatprep.subr.bf16.mxu0 0
      %811 = vmatpush2.bf16.msra.mxu0 0
      %812 = vmatprep.subr.bf16.mxu0 0
      %813 = vmatpush2.bf16.msra.mxu0 0
      %814 = vmatprep.subr.bf16.mxu0 0
      %815 = vmatpush2.bf16.msra.mxu0 0
      %816 = vmatprep.mubr.bf16.mxu0 0
      %817 = vmatmul.mubr.bf16.gmra.mxu0 %v782
      %v818 = vpop.f32.mrf.mxu0
      %v819 = vadd.f32 0.0, %v818
      %v820 = vpop.f32.mrf.mxu0
      %v821 = vpop.f32.mrf.mxu0
      %v822 = vpop.f32.mrf.mxu0
      %823 = vdwg.mxu0
      %v824 = vadd.f32 %v773, %v819
      %825 = vst.msk [vmem:[#allocation5] sm:$0xff] %vm696, %v824
      %826 = vst.msk [vmem:[#allocation3] sm:$0xff] %vm765, %v747
      %827 = vrot.lane.b32.xlu0 %v664, 108
      %v828 = vpop.permute.xlu0 %827
      %829 = vrot.lane.b32.xlu0 %v665, 108
      %v830 = vpop.permute.xlu0 %829
      %833 = vrot.lane.b32.xlu0 %v656, 116
      %v834 = vpop.permute.xlu0 %833
      %835 = vrot.lane.b32.xlu0 %v657, 116
      %v836 = vpop.permute.xlu0 %835
      %v839 = vsel %vm682, %v828, %v834
      %v840 = vsel %vm682, %v830, %v836
      %843 = vrot.lane.b32.xlu0 %v662, 16
      %v844 = vpop.permute.xlu0 %843
      %845 = vrot.lane.b32.xlu0 %v663, 16
      %v846 = vpop.permute.xlu0 %845
      %v849 = vmul.f32 %v656, %v844
      %v850 = vmul.f32 %v657, %v846
      %v851 = vmul.f32 %v839, %v660
      %v852 = vmul.f32 %v840, %v661
      %855 = vrot.lane.b32.xlu0 %v851, 16
      %v856 = vpop.permute.xlu0 %855
      %857 = vrot.lane.b32.xlu0 %v852, 16
      %v858 = vpop.permute.xlu0 %857
      %v861 = vadd.f32 %v849, %v856
      %v862 = vadd.f32 %v850, %v858
      %865 = vrot.lane.b32.xlu0 %v861, 112
      %v866 = vpop.permute.xlu0 %865
      %867 = vrot.lane.b32.xlu0 %v862, 112
      %v868 = vpop.permute.xlu0 %867
      %871 = vrot.lane.b32.xlu0 %v656, 112
      %v872 = vpop.permute.xlu0 %871
      %873 = vrot.lane.b32.xlu0 %v657, 112
      %v874 = vpop.permute.xlu0 %873
      %v877 = vsel %vm691, %v866, %v872
      %v878 = vsel %vm691, %v868, %v874
      %v879 = vpack.c.bf16 %v878, %v877
      %v880 = vld [vmem:[#allocation2] sm:$0xf]
      %v882 = vunpack.c.l.b16 %v880
      %v883 = vpack.c.b16 %v882, %v882
      %884 = vrot.lane.b32.xlu0 %v883, 112
      %v885 = vpop.permute.xlu0 %884
      %v887 = vsel %vm696, %v885, 0
      %v890 = vsel %vm696, %v879, 0
      %892 = vmatprep.subr.bf16.mxu0 0
      %893 = vmatpush1.bf16.xpose.msra.mxu0 0
      %894 = vmatprep.subr.bf16.mxu0 0
      %895 = vmatpush1.bf16.xpose.msra.mxu0 0
      %896 = vmatprep.subr.bf16.mxu0 0
      %897 = vmatpush1.bf16.xpose.msra.mxu0 0
      %898 = vmatprep.subr.bf16.mxu0 0
      %899 = vmatpush1.bf16.xpose.msra.mxu0 0
      %900 = vmatprep.subr.bf16.mxu0 0
      %901 = vmatpush1.bf16.xpose.msra.mxu0 0
      %902 = vmatprep.subr.bf16.mxu0 0
      %903 = vmatpush1.bf16.xpose.msra.mxu0 0
      %904 = vmatprep.subr.bf16.mxu0 0
      %905 = vmatpush1.bf16.xpose.msra.mxu0 0
      %906 = vmatprep.subr.bf16.mxu0 0
      %907 = vmatpush1.bf16.xpose.msra.mxu0 %v890
      %908 = vmatprep.subr.bf16.mxu0 0
      %909 = vmatpush2.bf16.xpose.msra.mxu0 0
      %910 = vmatprep.subr.bf16.mxu0 0
      %911 = vmatpush2.bf16.xpose.msra.mxu0 0
      %912 = vmatprep.subr.bf16.mxu0 0
      %913 = vmatpush2.bf16.xpose.msra.mxu0 0
      %914 = vmatprep.subr.bf16.mxu0 0
      %915 = vmatpush2.bf16.xpose.msra.mxu0 0
      %916 = vmatprep.subr.bf16.mxu0 0
      %917 = vmatpush2.bf16.xpose.msra.mxu0 0
      %918 = vmatprep.subr.bf16.mxu0 0
      %919 = vmatpush2.bf16.xpose.msra.mxu0 0
      %920 = vmatprep.subr.bf16.mxu0 0
      %921 = vmatpush2.bf16.xpose.msra.mxu0 0
      %922 = vmatprep.subr.bf16.mxu0 0
      %923 = vmatpush2.bf16.xpose.msra.mxu0 0
      %924 = vmatprep.mubr.bf16.mxu0 0
      %925 = vmatmul.mubr.bf16.gmra.mxu0 %v887
      %v926 = vpop.f32.mrf.mxu0
      %v927 = vadd.f32 0.0, %v926
      %v928 = vpop.f32.mrf.mxu0
      %v929 = vpop.f32.mrf.mxu0
      %v930 = vpop.f32.mrf.mxu0
      %931 = vdwg.mxu0
      %s932 = scalar_lea.vmem [#allocation3], 8
      %v933 = vld [vmem:[%s932] sm:$0xff]
      %v934 = vsel %vm696, %v927, -inf
      %935 = vmax.xlane.f32.xlu0 %v934
      %v936 = vpop.xlane.xlu0 %935
      %v937 = vmax.f32 %v933, %v936
      %v938 = vsub.f32 %v933, %v937
      %v939 = vmul.f32 %v938, 1.442695
      %v940 = vpow.pop %v939
      %942 = vset.pattern.permute.xlu0 0
      %943 = vperm.xlu0 %942, %v937
      %v944 = vpop.permute.xlu0 %943
      %v946 = vsub.f32 %v927, %v944
      %v947 = vmul.f32 %v946, 1.442695
      %v948 = vpow.pop %v947
      %s949 = scalar_lea.vmem [#allocation4], 8
      %v950 = vld [vmem:[%s949] sm:$0xff]
      %v951 = vmul.f32 %v940, %v950
      %v952 = vsel %vm696, %v948, 0.0
      %953 = vadd.xlane.f32.xlu0 %v952
      %v954 = vpop.xlane.xlu0 %953
      %v955 = vadd.f32 %v951, %v954
      %956 = vst.msk [vmem:[%s949] sm:$0xff] %vm765, %v955
      %v957 = vld [vmem:[#allocation5] sm:$0xff]
      %959 = vset.pattern.permute.xlu0 0
      %960 = vperm.xlu0 %959, %v940
      %v961 = vpop.permute.xlu0 %960
      %v963 = vmul.f32 %v961, %v957
      %v964 = vpack.c.bf16 %v948, %v948
      %965 = vrot.lane.b32.xlu0 %v779, 112
      %v966 = vpop.permute.xlu0 %965
      %v969 = vsel %vm696, %v964, 0
      %971 = vmatprep.subr.bf16.mxu0 0
      %972 = vmatpush1.bf16.msra.mxu0 0
      %973 = vmatprep.subr.bf16.mxu0 0
      %974 = vmatpush1.bf16.msra.mxu0 0
      %975 = vmatprep.subr.bf16.mxu0 0
      %976 = vmatpush1.bf16.msra.mxu0 0
      %977 = vmatprep.subr.bf16.mxu0 0
      %978 = vmatpush1.bf16.msra.mxu0 0
      %979 = vmatprep.subr.bf16.mxu0 0
      %980 = vmatpush1.bf16.msra.mxu0 0
      %981 = vmatprep.subr.bf16.mxu0 0
      %982 = vmatpush1.bf16.msra.mxu0 0
      %983 = vmatprep.subr.bf16.mxu0 0
      %984 = vmatpush1.bf16.msra.mxu0 0
      %985 = vmatprep.subr.bf16.mxu0 0
      %986 = vmatpush1.bf16.msra.mxu0 %v966
      %987 = vmatprep.subr.bf16.mxu0 0
      %988 = vmatpush2.bf16.msra.mxu0 0
      %989 = vmatprep.subr.bf16.mxu0 0
      %990 = vmatpush2.bf16.msra.mxu0 0
      %991 = vmatprep.subr.bf16.mxu0 0
      %992 = vmatpush2.bf16.msra.mxu0 0
      %993 = vmatprep.subr.bf16.mxu0 0
      %994 = vmatpush2.bf16.msra.mxu0 0
      %995 = vmatprep.subr.bf16.mxu0 0
      %996 = vmatpush2.bf16.msra.mxu0 0
      %997 = vmatprep.subr.bf16.mxu0 0
      %998 = vmatpush2.bf16.msra.mxu0 0
      %999 = vmatprep.subr.bf16.mxu0 0
      %1000 = vmatpush2.bf16.msra.mxu0 0
      %1001 = vmatprep.subr.bf16.mxu0 0
      %1002 = vmatpush2.bf16.msra.mxu0 0
      %1003 = vmatprep.mubr.bf16.mxu0 0
      %1004 = vmatmul.mubr.bf16.gmra.mxu0 %v969
      %v1005 = vpop.f32.mrf.mxu0
      %v1006 = vadd.f32 0.0, %v1005
      %v1007 = vpop.f32.mrf.mxu0
      %v1008 = vpop.f32.mrf.mxu0
      %v1009 = vpop.f32.mrf.mxu0
      %1010 = vdwg.mxu0
      %1012 = vrot.lane.b32.xlu0 %v1006, 16
      %v1013 = vpop.permute.xlu0 %1012
      %v1015 = vadd.f32 %v963, %v1013
      %vm1016 = vcmask 261248
      %1017 = vst.msk [vmem:[#allocation5] sm:$0xff] %vm1016, %v1015
      %1018 = vst.msk [vmem:[%s932] sm:$0xff] %vm765, %v937
      %1019 = vrot.lane.b32.xlu0 %v664, 92
      %v1020 = vpop.permute.xlu0 %1019
      %1021 = vrot.lane.b32.xlu0 %v665, 92
      %v1022 = vpop.permute.xlu0 %1021
      %1025 = vrot.lane.b32.xlu0 %v656, 100
      %v1026 = vpop.permute.xlu0 %1025
      %1027 = vrot.lane.b32.xlu0 %v657, 100
      %v1028 = vpop.permute.xlu0 %1027
      %v1031 = vsel %vm682, %v1020, %v1026
      %v1032 = vsel %vm682, %v1022, %v1028
      %1033 = vrot.lane.b32.xlu0 %v662, 32
      %v1034 = vpop.permute.xlu0 %1033
      %1035 = vrot.lane.b32.xlu0 %v663, 32
      %v1036 = vpop.permute.xlu0 %1035
      %v1039 = vmul.f32 %v656, %v1034
      %v1040 = vmul.f32 %v657, %v1036
      %v1041 = vmul.f32 %v1031, %v660
      %v1042 = vmul.f32 %v1032, %v661
      %1045 = vrot.lane.b32.xlu0 %v1041, 32
      %v1046 = vpop.permute.xlu0 %1045
      %1047 = vrot.lane.b32.xlu0 %v1042, 32
      %v1048 = vpop.permute.xlu0 %1047
      %v1051 = vadd.f32 %v1039, %v1046
      %v1052 = vadd.f32 %v1040, %v1048
      %1055 = vrot.lane.b32.xlu0 %v1051, 96
      %v1056 = vpop.permute.xlu0 %1055
      %1057 = vrot.lane.b32.xlu0 %v1052, 96
      %v1058 = vpop.permute.xlu0 %1057
      %1061 = vrot.lane.b32.xlu0 %v656, 96
      %v1062 = vpop.permute.xlu0 %1061
      %1063 = vrot.lane.b32.xlu0 %v657, 96
      %v1064 = vpop.permute.xlu0 %1063
      %v1067 = vsel %vm691, %v1056, %v1062
      %v1068 = vsel %vm691, %v1058, %v1064
      %v1069 = vpack.c.bf16 %v1068, %v1067
      %v1070 = vld [vmem:[#allocation2] sm:$0xf]
      %v1072 = vunpack.c.l.b16 %v1070
      %v1073 = vpack.c.b16 %v1072, %v1072
      %1074 = vrot.lane.b32.xlu0 %v1073, 96
      %v1075 = vpop.permute.xlu0 %1074
      %v1077 = vsel %vm696, %v1075, 0
      %v1080 = vsel %vm696, %v1069, 0
      %1082 = vmatprep.subr.bf16.mxu0 0
      %1083 = vmatpush1.bf16.xpose.msra.mxu0 0
      %1084 = vmatprep.subr.bf16.mxu0 0
      %1085 = vmatpush1.bf16.xpose.msra.mxu0 0
      %1086 = vmatprep.subr.bf16.mxu0 0
      %1087 = vmatpush1.bf16.xpose.msra.mxu0 0
      %1088 = vmatprep.subr.bf16.mxu0 0
      %1089 = vmatpush1.bf16.xpose.msra.mxu0 0
      %1090 = vmatprep.subr.bf16.mxu0 0
      %1091 = vmatpush1.bf16.xpose.msra.mxu0 0
      %1092 = vmatprep.subr.bf16.mxu0 0
      %1093 = vmatpush1.bf16.xpose.msra.mxu0 0
      %1094 = vmatprep.subr.bf16.mxu0 0
      %1095 = vmatpush1.bf16.xpose.msra.mxu0 0
      %1096 = vmatprep.subr.bf16.mxu0 0
      %1097 = vmatpush1.bf16.xpose.msra.mxu0 %v1080
      %1098 = vmatprep.subr.bf16.mxu0 0
      %1099 = vmatpush2.bf16.xpose.msra.mxu0 0
      %1100 = vmatprep.subr.bf16.mxu0 0
      %1101 = vmatpush2.bf16.xpose.msra.mxu0 0
      %1102 = vmatprep.subr.bf16.mxu0 0
      %1103 = vmatpush2.bf16.xpose.msra.mxu0 0
      %1104 = vmatprep.subr.bf16.mxu0 0
      %1105 = vmatpush2.bf16.xpose.msra.mxu0 0
      %1106 = vmatprep.subr.bf16.mxu0 0
      %1107 = vmatpush2.bf16.xpose.msra.mxu0 0
      %1108 = vmatprep.subr.bf16.mxu0 0
      %1109 = vmatpush2.bf16.xpose.msra.mxu0 0
      %1110 = vmatprep.subr.bf16.mxu0 0
      %1111 = vmatpush2.bf16.xpose.msra.mxu0 0
      %1112 = vmatprep.subr.bf16.mxu0 0
      %1113 = vmatpush2.bf16.xpose.msra.mxu0 0
      %1114 = vmatprep.mubr.bf16.mxu0 0
      %1115 = vmatmul.mubr.bf16.gmra.mxu0 %v1077
      %v1116 = vpop.f32.mrf.mxu0
      %v1117 = vadd.f32 0.0, %v1116
      %v1118 = vpop.f32.mrf.mxu0
      %v1119 = vpop.f32.mrf.mxu0
      %v1120 = vpop.f32.mrf.mxu0
      %1121 = vdwg.mxu0
      %s1122 = scalar_lea.vmem [#allocation3], 16
      %v1123 = vld [vmem:[%s1122] sm:$0xff]
      %v1124 = vsel %vm696, %v1117, -inf
      %1125 = vmax.xlane.f32.xlu0 %v1124
      %v1126 = vpop.xlane.xlu0 %1125
      %v1127 = vmax.f32 %v1123, %v1126
      %v1128 = vsub.f32 %v1123, %v1127
      %v1129 = vmul.f32 %v1128, 1.442695
      %v1130 = vpow.pop %v1129
      %1132 = vset.pattern.permute.xlu0 0
      %1133 = vperm.xlu0 %1132, %v1127
      %v1134 = vpop.permute.xlu0 %1133
      %v1136 = vsub.f32 %v1117, %v1134
      %v1137 = vmul.f32 %v1136, 1.442695
      %v1138 = vpow.pop %v1137
      %s1139 = scalar_lea.vmem [#allocation4], 16
      %v1140 = vld [vmem:[%s1139] sm:$0xff]
      %v1141 = vmul.f32 %v1130, %v1140
      %v1142 = vsel %vm696, %v1138, 0.0
      %1143 = vadd.xlane.f32.xlu0 %v1142
      %v1144 = vpop.xlane.xlu0 %1143
      %v1145 = vadd.f32 %v1141, %v1144
      %1146 = vst.msk [vmem:[%s1139] sm:$0xff] %vm765, %v1145
      %v1147 = vld [vmem:[#allocation5] sm:$0xff]
      %1149 = vset.pattern.permute.xlu0 0
      %1150 = vperm.xlu0 %1149, %v1130
      %v1151 = vpop.permute.xlu0 %1150
      %v1153 = vmul.f32 %v1151, %v1147
      %v1154 = vpack.c.bf16 %v1138, %v1138
      %1155 = vrot.lane.b32.xlu0 %v779, 96
      %v1156 = vpop.permute.xlu0 %1155
      %v1159 = vsel %vm696, %v1154, 0
      %1161 = vmatprep.subr.bf16.mxu0 0
      %1162 = vmatpush1.bf16.msra.mxu0 0
      %1163 = vmatprep.subr.bf16.mxu0 0
      %1164 = vmatpush1.bf16.msra.mxu0 0
      %1165 = vmatprep.subr.bf16.mxu0 0
      %1166 = vmatpush1.bf16.msra.mxu0 0
      %1167 = vmatprep.subr.bf16.mxu0 0
      %1168 = vmatpush1.bf16.msra.mxu0 0
      %1169 = vmatprep.subr.bf16.mxu0 0
      %1170 = vmatpush1.bf16.msra.mxu0 0
      %1171 = vmatprep.subr.bf16.mxu0 0
      %1172 = vmatpush1.bf16.msra.mxu0 0
      %1173 = vmatprep.subr.bf16.mxu0 0
      %1174 = vmatpush1.bf16.msra.mxu0 0
      %1175 = vmatprep.subr.bf16.mxu0 0
      %1176 = vmatpush1.bf16.msra.mxu0 %v1156
      %1177 = vmatprep.subr.bf16.mxu0 0
      %1178 = vmatpush2.bf16.msra.mxu0 0
      %1179 = vmatprep.subr.bf16.mxu0 0
      %1180 = vmatpush2.bf16.msra.mxu0 0
      %1181 = vmatprep.subr.bf16.mxu0 0
      %1182 = vmatpush2.bf16.msra.mxu0 0
      %1183 = vmatprep.subr.bf16.mxu0 0
      %1184 = vmatpush2.bf16.msra.mxu0 0
      %1185 = vmatprep.subr.bf16.mxu0 0
      %1186 = vmatpush2.bf16.msra.mxu0 0
      %1187 = vmatprep.subr.bf16.mxu0 0
      %1188 = vmatpush2.bf16.msra.mxu0 0
      %1189 = vmatprep.subr.bf16.mxu0 0
      %1190 = vmatpush2.bf16.msra.mxu0 0
      %1191 = vmatprep.subr.bf16.mxu0 0
      %1192 = vmatpush2.bf16.msra.mxu0 0
      %1193 = vmatprep.mubr.bf16.mxu0 0
      %1194 = vmatmul.mubr.bf16.gmra.mxu0 %v1159
      %v1195 = vpop.f32.mrf.mxu0
      %v1196 = vadd.f32 0.0, %v1195
      %v1197 = vpop.f32.mrf.mxu0
      %v1198 = vpop.f32.mrf.mxu0
      %v1199 = vpop.f32.mrf.mxu0
      %1200 = vdwg.mxu0
      %1202 = vrot.lane.b32.xlu0 %v1196, 32
      %v1203 = vpop.permute.xlu0 %1202
      %v1205 = vadd.f32 %v1153, %v1203
      %vm1206 = vcmask 392448
      %1207 = vst.msk [vmem:[#allocation5] sm:$0xff] %vm1206, %v1205
      %1208 = vst.msk [vmem:[%s1122] sm:$0xff] %vm765, %v1127
      %1209 = vrot.lane.b32.xlu0 %v664, 76
      %v1210 = vpop.permute.xlu0 %1209
      %1211 = vrot.lane.b32.xlu0 %v665, 76
      %v1212 = vpop.permute.xlu0 %1211
      %1215 = vrot.lane.b32.xlu0 %v656, 84
      %v1216 = vpop.permute.xlu0 %1215
      %1217 = vrot.lane.b32.xlu0 %v657, 84
      %v1218 = vpop.permute.xlu0 %1217
      %v1221 = vsel %vm682, %v1210, %v1216
      %v1222 = vsel %vm682, %v1212, %v1218
      %1223 = vrot.lane.b32.xlu0 %v662, 48
      %v1224 = vpop.permute.xlu0 %1223
      %1225 = vrot.lane.b32.xlu0 %v663, 48
      %v1226 = vpop.permute.xlu0 %1225
      %v1229 = vmul.f32 %v656, %v1224
      %v1230 = vmul.f32 %v657, %v1226
      %v1231 = vmul.f32 %v1221, %v660
      %v1232 = vmul.f32 %v1222, %v661
      %1235 = vrot.lane.b32.xlu0 %v1231, 48
      %v1236 = vpop.permute.xlu0 %1235
      %1237 = vrot.lane.b32.xlu0 %v1232, 48
      %v1238 = vpop.permute.xlu0 %1237
      %v1241 = vadd.f32 %v1229, %v1236
      %v1242 = vadd.f32 %v1230, %v1238
      %1245 = vrot.lane.b32.xlu0 %v1241, 80
      %v1246 = vpop.permute.xlu0 %1245
      %1247 = vrot.lane.b32.xlu0 %v1242, 80
      %v1248 = vpop.permute.xlu0 %1247
      %1251 = vrot.lane.b32.xlu0 %v656, 80
      %v1252 = vpop.permute.xlu0 %1251
      %1253 = vrot.lane.b32.xlu0 %v657, 80
      %v1254 = vpop.permute.xlu0 %1253
      %v1257 = vsel %vm691, %v1246, %v1252
      %v1258 = vsel %vm691, %v1248, %v1254
      %v1259 = vpack.c.bf16 %v1258, %v1257
      %v1260 = vld [vmem:[#allocation2] sm:$0xf]
      %v1262 = vunpack.c.l.b16 %v1260
      %v1263 = vpack.c.b16 %v1262, %v1262
      %1264 = vrot.lane.b32.xlu0 %v1263, 80
      %v1265 = vpop.permute.xlu0 %1264
      %v1267 = vsel %vm696, %v1265, 0
      %v1270 = vsel %vm696, %v1259, 0
      %1272 = vmatprep.subr.bf16.mxu0 0
      %1273 = vmatpush1.bf16.xpose.msra.mxu0 0
      %1274 = vmatprep.subr.bf16.mxu0 0
      %1275 = vmatpush1.bf16.xpose.msra.mxu0 0
      %1276 = vmatprep.subr.bf16.mxu0 0
      %1277 = vmatpush1.bf16.xpose.msra.mxu0 0
      %1278 = vmatprep.subr.bf16.mxu0 0
      %1279 = vmatpush1.bf16.xpose.msra.mxu0 0
      %1280 = vmatprep.subr.bf16.mxu0 0
      %1281 = vmatpush1.bf16.xpose.msra.mxu0 0
      %1282 = vmatprep.subr.bf16.mxu0 0
      %1283 = vmatpush1.bf16.xpose.msra.mxu0 0
      %1284 = vmatprep.subr.bf16.mxu0 0
      %1285 = vmatpush1.bf16.xpose.msra.mxu0 0
      %1286 = vmatprep.subr.bf16.mxu0 0
      %1287 = vmatpush1.bf16.xpose.msra.mxu0 %v1270
      %1288 = vmatprep.subr.bf16.mxu0 0
      %1289 = vmatpush2.bf16.xpose.msra.mxu0 0
      %1290 = vmatprep.subr.bf16.mxu0 0
      %1291 = vmatpush2.bf16.xpose.msra.mxu0 0
      %1292 = vmatprep.subr.bf16.mxu0 0
      %1293 = vmatpush2.bf16.xpose.msra.mxu0 0
      %1294 = vmatprep.subr.bf16.mxu0 0
      %1295 = vmatpush2.bf16.xpose.msra.mxu0 0
      %1296 = vmatprep.subr.bf16.mxu0 0
      %1297 = vmatpush2.bf16.xpose.msra.mxu0 0
      %1298 = vmatprep.subr.bf16.mxu0 0
      %1299 = vmatpush2.bf16.xpose.msra.mxu0 0
      %1300 = vmatprep.subr.bf16.mxu0 0
      %1301 = vmatpush2.bf16.xpose.msra.mxu0 0
      %1302 = vmatprep.subr.bf16.mxu0 0
      %1303 = vmatpush2.bf16.xpose.msra.mxu0 0
      %1304 = vmatprep.mubr.bf16.mxu0 0
      %1305 = vmatmul.mubr.bf16.gmra.mxu0 %v1267
      %v1306 = vpop.f32.mrf.mxu0
      %v1307 = vadd.f32 0.0, %v1306
      %v1308 = vpop.f32.mrf.mxu0
      %v1309 = vpop.f32.mrf.mxu0
      %v1310 = vpop.f32.mrf.mxu0
      %1311 = vdwg.mxu0
      %s1312 = scalar_lea.vmem [#allocation3], 24
      %v1313 = vld [vmem:[%s1312] sm:$0xff]
      %v1314 = vsel %vm696, %v1307, -inf
      %1315 = vmax.xlane.f32.xlu0 %v1314
      %v1316 = vpop.xlane.xlu0 %1315
      %v1317 = vmax.f32 %v1313, %v1316
      %v1318 = vsub.f32 %v1313, %v1317
      %v1319 = vmul.f32 %v1318, 1.442695
      %v1320 = vpow.pop %v1319
      %1322 = vset.pattern.permute.xlu0 0
      %1323 = vperm.xlu0 %1322, %v1317
      %v1324 = vpop.permute.xlu0 %1323
      %v1326 = vsub.f32 %v1307, %v1324
      %v1327 = vmul.f32 %v1326, 1.442695
      %v1328 = vpow.pop %v1327
      %s1329 = scalar_lea.vmem [#allocation4], 24
      %v1330 = vld [vmem:[%s1329] sm:$0xff]
      %v1331 = vmul.f32 %v1320, %v1330
      %v1332 = vsel %vm696, %v1328, 0.0
      %1333 = vadd.xlane.f32.xlu0 %v1332
      %v1334 = vpop.xlane.xlu0 %1333
      %v1335 = vadd.f32 %v1331, %v1334
      %1336 = vst.msk [vmem:[%s1329] sm:$0xff] %vm765, %v1335
      %v1337 = vld [vmem:[#allocation5] sm:$0xff]
      %1339 = vset.pattern.permute.xlu0 0
      %1340 = vperm.xlu0 %1339, %v1320
      %v1341 = vpop.permute.xlu0 %1340
      %v1343 = vmul.f32 %v1341, %v1337
      %v1344 = vpack.c.bf16 %v1328, %v1328
      %1345 = vrot.lane.b32.xlu0 %v779, 80
      %v1346 = vpop.permute.xlu0 %1345
      %v1349 = vsel %vm696, %v1344, 0
      %1351 = vmatprep.subr.bf16.mxu0 0
      %1352 = vmatpush1.bf16.msra.mxu0 0
      %1353 = vmatprep.subr.bf16.mxu0 0
      %1354 = vmatpush1.bf16.msra.mxu0 0
      %1355 = vmatprep.subr.bf16.mxu0 0
      %1356 = vmatpush1.bf16.msra.mxu0 0
      %1357 = vmatprep.subr.bf16.mxu0 0
      %1358 = vmatpush1.bf16.msra.mxu0 0
      %1359 = vmatprep.subr.bf16.mxu0 0
      %1360 = vmatpush1.bf16.msra.mxu0 0
      %1361 = vmatprep.subr.bf16.mxu0 0
      %1362 = vmatpush1.bf16.msra.mxu0 0
      %1363 = vmatprep.subr.bf16.mxu0 0
      %1364 = vmatpush1.bf16.msra.mxu0 0
      %1365 = vmatprep.subr.bf16.mxu0 0
      %1366 = vmatpush1.bf16.msra.mxu0 %v1346
      %1367 = vmatprep.subr.bf16.mxu0 0
      %1368 = vmatpush2.bf16.msra.mxu0 0
      %1369 = vmatprep.subr.bf16.mxu0 0
      %1370 = vmatpush2.bf16.msra.mxu0 0
      %1371 = vmatprep.subr.bf16.mxu0 0
      %1372 = vmatpush2.bf16.msra.mxu0 0
      %1373 = vmatprep.subr.bf16.mxu0 0
      %1374 = vmatpush2.bf16.msra.mxu0 0
      %1375 = vmatprep.subr.bf16.mxu0 0
      %1376 = vmatpush2.bf16.msra.mxu0 0
      %1377 = vmatprep.subr.bf16.mxu0 0
      %1378 = vmatpush2.bf16.msra.mxu0 0
      %1379 = vmatprep.subr.bf16.mxu0 0
      %1380 = vmatpush2.bf16.msra.mxu0 0
      %1381 = vmatprep.subr.bf16.mxu0 0
      %1382 = vmatpush2.bf16.msra.mxu0 0
      %1383 = vmatprep.mubr.bf16.mxu0 0
      %1384 = vmatmul.mubr.bf16.gmra.mxu0 %v1349
      %v1385 = vpop.f32.mrf.mxu0
      %v1386 = vadd.f32 0.0, %v1385
      %v1387 = vpop.f32.mrf.mxu0
      %v1388 = vpop.f32.mrf.mxu0
      %v1389 = vpop.f32.mrf.mxu0
      %1390 = vdwg.mxu0
      %1392 = vrot.lane.b32.xlu0 %v1386, 48
      %v1393 = vpop.permute.xlu0 %1392
      %v1395 = vadd.f32 %v1343, %v1393
      %vm1396 = vcmask 523648
      %1397 = vst.msk [vmem:[#allocation5] sm:$0xff] %vm1396, %v1395
      %1398 = vst.msk [vmem:[%s1312] sm:$0xff] %vm765, %v1317
      // Predicated region
      $region53: #{cross_pre_norm_forward.8} parent=47 // pred_check
        %p1399 = pneg %p513
      $region54: #{cross_pre_norm_forward.8} parent=47 // pred_check_branch
        %1401 = sbr.rel (%p1399) target = $region56
      $region55: #{cross_pre_norm_forward.8} parent=47 // pred_region
        %v1402 = vld [vmem:[#allocation5] sm:$0xff]
        %v1403 = vld [vmem:[#allocation4] sm:$0xff]
        %1405 = vset.pattern.permute.xlu0 0
        %1406 = vperm.xlu0 %1405, %v1403
        %v1407 = vpop.permute.xlu0 %1406
        %v1409 = vrcp.pop %v1407
        %v1410 = vmul.f32 %v1402, %v1409
        %v1411 = vpack.c.bf16 %v1410, %v1410
        %v1412 = vld [vmem:[%s949] sm:$0xff]
        %1414 = vset.pattern.permute.xlu0 0
        %1415 = vperm.xlu0 %1414, %v1412
        %v1416 = vpop.permute.xlu0 %1415
        %v1418 = vrcp.pop %v1416
        %v1419 = vmul.f32 %v1402, %v1418
        %v1420 = vpack.c.bf16 %v1419, %v1419
        %v1421 = vld [vmem:[%s1139] sm:$0xff]
        %1423 = vset.pattern.permute.xlu0 0
        %1424 = vperm.xlu0 %1423, %v1421
        %v1425 = vpop.permute.xlu0 %1424
        %v1427 = vrcp.pop %v1425
        %v1428 = vmul.f32 %v1402, %v1427
        %v1429 = vpack.c.bf16 %v1428, %v1428
        %v1430 = vld [vmem:[%s1329] sm:$0xff]
        %1432 = vset.pattern.permute.xlu0 0
        %1433 = vperm.xlu0 %1432, %v1430
        %v1434 = vpop.permute.xlu0 %1433
        %v1436 = vrcp.pop %v1434
        %v1437 = vmul.f32 %v1402, %v1436
        %v1438 = vpack.c.bf16 %v1437, %v1437
        %v1441 = vsel %vm696, %v1411, %v1420
        %vm1442 = vcmask 261120
        %v1444 = vsel %vm1442, %v1441, %v1429
        %vm1445 = vcmask 392192
        %v1447 = vsel %vm1445, %v1444, %v1438
        %vm1449 = vcmask 519168
        %1450 = vst.msk [vmem:[%s511] sm:$0xf] %vm1449, %v1447
      $region56: #{cross_pre_norm_forward.8} parent=47 // pred_fallthru
        _
      %p1451 = scmp.lt.s32.totalorder %s23, 1
      %s1452 = scalar_select %p1451, %s23, 1
      %p1453 = scmp.lt.s32.totalorder %s24, 0
      %s1454 = scalar_select %p1453, %s24, 0
      %s1455 = sadd.s32 %s1454, %s1452
      %s1456 = smul.addr %s1455, 4
      %s1457 = scalar_lea.vmem %s7, %s1456
      // Predicated region
      $region57: #{cross_pre_norm_forward.8} parent=47 // pred_check
        %p1458 = pneg %p253
      $region58: #{cross_pre_norm_forward.8} parent=47 // pred_check_branch
        %1460 = sbr.rel (%p1458) target = $region60
      $region59: #{cross_pre_norm_forward.8} parent=47 // pred_region
        _
      $region60: #{cross_pre_norm_forward.8} parent=47 // pred_fallthru
        _
    $region48: #{cross_pre_norm_forward.8} parent=5 // pred_fallthru
      _
    %p1461 = scmp.le.s32.totalorder 2, %s13
    // Predicated region
    $region61: #{cross_pre_norm_forward.8} parent=5 // pred_check
      %p1462 = pneg %p1461
    $region62: #{cross_pre_norm_forward.8} parent=5 // pred_check_branch
      %1464 = sbr.rel (%p1462) target = $region64
    $region63: #{cross_pre_norm_forward.8} parent=5 // pred_region
      %s1465 = ssub.s32 %s13, 2
      // Predicated region
      $region65: #{cross_pre_norm_forward.8} parent=63 // pred_check
        %p1466 = pneg %p259
      $region66: #{cross_pre_norm_forward.8} parent=63 // pred_check_branch
        %1468 = sbr.rel (%p1466) target = $region68
      $region67: #{cross_pre_norm_forward.8} parent=63 // pred_region
        %p1469 = scmp.lt.s32.totalorder %s26, 1
        %s1470 = scalar_select %p1469, %s26, 1
        %p1471 = scmp.lt.s32.totalorder %s27, 0
        %s1472 = scalar_select %p1471, %s27, 0
        %s1473 = sadd.s32 %s1472, %s1470
        %s1474 = smul.addr %s1473, 4
        %s1475 = scalar_lea.vmem %s7, %s1474
      $region68: #{cross_pre_norm_forward.8} parent=63 // pred_fallthru
        _
    $region64: #{cross_pre_norm_forward.8} parent=5 // pred_fallthru
      _
  $region6: #{cross_pre_norm_forward.8} parent=0 // loop_footer
    %s17 = sadd.s32 1, %s13
  $region7: #{cross_pre_norm_forward.8} parent=0 // loop_footer_branch
    %12 = sbr.rel target = $region3
  $region8: #{cross_pre_norm_forward.8} parent=0 // loop_exit
    _

</llo_original>
